<compile_context>
chip_gen: v6e
topology: v6e:2x2x1
jax: 0.10.0
libtpu: 0.0.40
codegen_flags: <defaults>
</compile_context>

<pallas_src>
import math
import jax
import jax.numpy as jnp
from jax import lax
from jax.experimental import pallas as pl
from jax.experimental.pallas import tpu as pltpu

# ---- static config ----
B = 2          # batch
S = 8          # sequence length
H = 32         # hidden size
NH = 4         # num attention heads
DH = H // NH   # attention head size
LABEL_SIZE = 3
NUM_LABELS = 2 * LABEL_SIZE + 1  # relation-embedding table rows (input_label_graph)
LN_EPS = 1e-12
SCALE = 1.0 / math.sqrt(DH)
BS = B * S


def bert_graph_attention_kernel(hs_ref, mask_ref, arc_ref, w_ref, aux_ref, emb_ref, out_ref):
    hs = hs_ref[...]                     # (BS, H)   flattened hidden states
    mask = mask_ref[...]                 # (B, 1, S) additive attention mask (broadcast over queries)
    w_all = w_ref[...]                   # (H, 4H) = [Wq | Wk | Wv | Wo], lane-dense (32, 128)
    emb_k = emb_ref[0]                   # (NUM_LABELS, DH) relation-key table
    emb_v = emb_ref[1]                   # (NUM_LABELS, DH) relation-value table

    # ---- fused QKV projection: a single lane-dense MXU matmul for the whole batch ----
    qkv = jnp.dot(hs, w_all[:, :3 * H], preferred_element_type=jnp.float32)     # (BS, 3H)
    q = qkv[:, 0 * H:1 * H] + aux_ref[0]                                         # (BS, H)
    k = qkv[:, 1 * H:2 * H] + aux_ref[1]
    v = qkv[:, 2 * H:3 * H] + aux_ref[2]

    # ---- in-kernel relation-embedding "gather" as a one-hot matmul on the MXU ----
    # dp_keys[b,i,j,:] = emb_k[arc[b,i,j]]  ->  (BS, S, DH), resident in VMEM.
    arc2 = arc_ref[...].reshape(BS, S)                                           # (BS, S) int32
    iota = lax.broadcasted_iota(jnp.int32, (BS, S, NUM_LABELS), 2)
    onehot = (arc2[:, :, None] == iota).astype(jnp.float32)                      # (BS, S, L)
    oh2 = onehot.reshape(BS * S, NUM_LABELS)                                     # (BS*S, L)
    dpk = jnp.dot(oh2, emb_k, preferred_element_type=jnp.float32).reshape(BS, S, DH)
    dpv = jnp.dot(oh2, emb_v, preferred_element_type=jnp.float32).reshape(BS, S, DH)

    ctx_heads = []
    for h in range(NH):                  # static unroll (NH=4): lane-slice layout only;
        sl = slice(h * DH, (h + 1) * DH)  # every matmul below is batched over the full batch.
        qh = q[:, sl]                    # (BS, DH)
        qh3 = qh.reshape(B, S, DH)
        kh3 = k[:, sl].reshape(B, S, DH)
        vh3 = v[:, sl].reshape(B, S, DH)

        # standard scaled dot-product scores, batched over batch (MXU)
        sc = jnp.einsum('bqd,bkd->bqk', qh3, kh3,
                        preferred_element_type=jnp.float32) * SCALE              # (B, S, S)
        # relative_matmul_dp: rel[b,i,j] = sum_d q[b,i,d] * dp_keys[b,i,j,d]
        rel = jnp.sum(qh[:, None, :] * dpk, axis=-1).reshape(B, S, S)            # (B, S, S)
        scores = sc + rel + mask                                                 # mask (B,1,S)

        # numerically-stable softmax over keys (exact division: keeps 1e-4 tolerance)
        m = jnp.max(scores, axis=-1, keepdims=True)
        e = jnp.exp(scores - m)
        probs = e / jnp.sum(e, axis=-1, keepdims=True)                           # (B, S, S)
        # TODO(synk): attention-prob dropout omitted (prob=0.0 / eval mode -> identity)

        ctx = jnp.einsum('bqk,bkd->bqd', probs, vh3,
                         preferred_element_type=jnp.float32).reshape(BS, DH)     # (BS, DH)
        # relative_matmul_dpv: ctx_rel[b,i,d] = sum_j probs[b,i,j] * dp_values[b,i,j,d]
        pflat = probs.reshape(BS, S)
        ctx_rel = jnp.sum(pflat[:, :, None] * dpv, axis=1)                       # (BS, DH)
        ctx_heads.append(ctx + ctx_rel)

    # permute(0,2,1,3).view(..., all_head_size)  ==  concat heads along the feature axis
    ctx_all = jnp.concatenate(ctx_heads, axis=-1)                                # (BS, H)

    # ---- BertSelfOutput: dense -> (+ residual) -> LayerNorm ----
    dense = jnp.dot(ctx_all, w_all[:, 3 * H:], preferred_element_type=jnp.float32) + aux_ref[3]
    pre_ln = dense + hs
    mu = jnp.mean(pre_ln, axis=-1, keepdims=True)
    var = jnp.mean((pre_ln - mu) ** 2, axis=-1, keepdims=True)
    out = (pre_ln - mu) / jnp.sqrt(var + LN_EPS) * aux_ref[4] + aux_ref[5]

    out_ref[...] = out.reshape(B, S, H).astype(out_ref.dtype)


def bert_graph_attention(hidden_states, attention_mask, graph_arc, params):
    """hidden_states: (B,S,H) f32, attention_mask: (B,1,S) additive f32,
    graph_arc: (B,S,S) int32 relation ids."""
    hs_flat = hidden_states.reshape(BS, H)
    # fused weights / side-inputs (tiny, param-only precompute)
    w_all = jnp.concatenate(
        [params["wq"], params["wk"], params["wv"], params["wo"]], axis=1)        # (H, 4H)
    aux = jnp.stack([params["bq"], params["bk"], params["bv"],
                     params["bo"], params["ln_g"], params["ln_b"]], axis=0)      # (6, 1, H)
    emb = jnp.stack([params["emb_k"], params["emb_v"]], axis=0)                  # (2, L, DH)

    in_specs = [
        pl.BlockSpec((BS, H), lambda i: (0, 0)),                     # hidden_states (flat)
        pl.BlockSpec((B, 1, S), lambda i: (0, 0, 0)),                # attention_mask
        pl.BlockSpec((B, S, S), lambda i: (0, 0, 0)),                # graph_arc ids (int32)
        pl.BlockSpec((H, 4 * H), lambda i: (0, 0)),                  # fused [Wq|Wk|Wv|Wo]
        pl.BlockSpec((6, 1, H), lambda i: (0, 0, 0)),                # fused biases + LN params
        pl.BlockSpec((2, NUM_LABELS, DH), lambda i: (0, 0, 0)),      # relation tables
    ]
    out_spec = pl.BlockSpec((B, S, H), lambda i: (0, 0, 0))

    return pl.pallas_call(
        bert_graph_attention_kernel,
        out_shape=jax.ShapeDtypeStruct((B, S, H), jnp.float32),
        grid=(1,),                                                    # single fused invocation
        in_specs=in_specs,
        out_specs=out_spec,
        compiler_params=pltpu.CompilerParams(dimension_semantics=("arbitrary",)),
    )(hs_flat, attention_mask, graph_arc.astype(jnp.int32), w_all, aux, emb)


def reference_jax(hidden_states, attention_mask, graph_arc, params):
    """Pure-JAX mirror of the PyTorch forward (for correctness checking)."""
    dp_keys = jnp.take(params["emb_k"], graph_arc, axis=0)    # (B,S,S,DH)
    dp_values = jnp.take(params["emb_v"], graph_arc, axis=0)

    def proj(x, w, b):
        return x @ w + b[0]
    q = proj(hidden_states, params["wq"], params["bq"]).reshape(B, S, NH, DH).transpose(0, 2, 1, 3)
    k = proj(hidden_states, params["wk"], params["bk"]).reshape(B, S, NH, DH).transpose(0, 2, 1, 3)
    v = proj(hidden_states, params["wv"], params["bv"]).reshape(B, S, NH, DH).transpose(0, 2, 1, 3)

    scores = jnp.einsum("bhqd,bhkd->bhqk", q, k) * SCALE
    rel_k = jnp.einsum("bhqd,bqkd->bhqk", q, dp_keys)
    scores = scores + rel_k + attention_mask[:, None, :, :]
    probs = jax.nn.softmax(scores, axis=-1)
    ctx = jnp.einsum("bhqk,bhkd->bhqd", probs, v)
    ctx = ctx + jnp.einsum("bhqk,bqkd->bhqd", probs, dp_values)
    ctx = ctx.transpose(0, 2, 1, 3).reshape(B, S, H)

    dense = ctx @ params["wo"] + params["bo"][0]
    pre_ln = dense + hidden_states
    mu = jnp.mean(pre_ln, axis=-1, keepdims=True)
    var = jnp.mean((pre_ln - mu) ** 2, axis=-1, keepdims=True)
    return (pre_ln - mu) / jnp.sqrt(var + LN_EPS) * params["ln_g"][0] + params["ln_b"][0]


def make_params(key):
    ks = jax.random.split(key, 8)
    p = {
        "wq": 0.05 * jax.random.normal(ks[0], (H, H), jnp.float32),
        "wk": 0.05 * jax.random.normal(ks[1], (H, H), jnp.float32),
        "wv": 0.05 * jax.random.normal(ks[2], (H, H), jnp.float32),
        "wo": 0.05 * jax.random.normal(ks[3], (H, H), jnp.float32),
        "bq": 0.01 * jax.random.normal(ks[4], (1, H), jnp.float32),
        "bk": jnp.zeros((1, H), jnp.float32),
        "bv": 0.01 * jax.random.normal(ks[5], (1, H), jnp.float32),
        "bo": jnp.zeros((1, H), jnp.float32),
        "ln_g": jnp.ones((1, H), jnp.float32),
        "ln_b": jnp.zeros((1, H), jnp.float32),
    }
    # xavier-ish relation embeddings; row 0 zeroed (reset_parameters)
    emb_k = 0.1 * jax.random.normal(ks[6], (NUM_LABELS, DH), jnp.float32)
    emb_v = 0.1 * jax.random.normal(ks[7], (NUM_LABELS, DH), jnp.float32)
    p["emb_k"] = emb_k.at[0].set(0.0)
    p["emb_v"] = emb_v.at[0].set(0.0)
    return p


if __name__ == "__main__":
    root = jax.random.PRNGKey(0)
    k_p, k_x, k_g = jax.random.split(root, 3)

    params = make_params(k_p)
    hidden_states = jax.random.normal(k_x, (B, S, H), jnp.float32)
    # additive attention mask: batch 1 has its last two key positions masked out
    attention_mask = jnp.zeros((B, 1, S), jnp.float32)
    attention_mask = attention_mask.at[1, 0, S - 2:].set(-10000.0)
    graph_arc = jax.random.randint(k_g, (B, S, S), 0, NUM_LABELS, dtype=jnp.int32)

    out = bert_graph_attention(hidden_states, attention_mask, graph_arc, params)
    out = jax.block_until_ready(out)

    ref = reference_jax(hidden_states, attention_mask, graph_arc, params)
    assert out.shape == (B, S, H)
    assert jnp.allclose(out, ref, atol=1e-4, rtol=1e-4), float(jnp.max(jnp.abs(out - ref)))

    print("KERNEL_OK")
</pallas_src>

<mosaic_0001>
module attributes {stable_mosaic.version = 11 : i64} {
  func.func @bert_graph_attention_kernel(%arg0: i32, %arg1: memref<16x32xf32, #tpu.memory_space<vmem>>, %arg2: memref<2x1x8xf32, #tpu.memory_space<vmem>>, %arg3: memref<2x8x8xi32, #tpu.memory_space<vmem>>, %arg4: memref<32x128xf32, #tpu.memory_space<vmem>>, %arg5: memref<6x1x32xf32, #tpu.memory_space<vmem>>, %arg6: memref<2x7x8xf32, #tpu.memory_space<vmem>>, %arg7: memref<2x8x32xf32, #tpu.memory_space<vmem>>) attributes {dimension_semantics = [#tpu.dimension_semantics<arbitrary>], iteration_bounds = array<i64: 1>, scalar_prefetch = 0 : i64, scratch_operands = 0 : i64, tpu.core_type = #tpu.core_type<tc>, window_params = [{pipeline_mode = #tpu.pipeline_mode<synchronous>, transform_indices = @transform_0, window_bounds = array<i64: 16, 32>}, {pipeline_mode = #tpu.pipeline_mode<synchronous>, transform_indices = @transform_1, window_bounds = array<i64: 2, 1, 8>}, {pipeline_mode = #tpu.pipeline_mode<synchronous>, transform_indices = @transform_2, window_bounds = array<i64: 2, 8, 8>}, {pipeline_mode = #tpu.pipeline_mode<synchronous>, transform_indices = @transform_3, window_bounds = array<i64: 32, 128>}, {pipeline_mode = #tpu.pipeline_mode<synchronous>, transform_indices = @transform_4, window_bounds = array<i64: 6, 1, 32>}, {pipeline_mode = #tpu.pipeline_mode<synchronous>, transform_indices = @transform_5, window_bounds = array<i64: 2, 7, 8>}, {pipeline_mode = #tpu.pipeline_mode<synchronous>, transform_indices = @transform_6, window_bounds = array<i64: 2, 8, 32>}]} {
    %c0 = arith.constant 0 : index
    %c0_0 = arith.constant 0 : index
    %0 = vector.load %arg1[%c0, %c0_0] : memref<16x32xf32, #tpu.memory_space<vmem>>, vector<16x32xf32>
    %c0_1 = arith.constant 0 : index
    %c0_2 = arith.constant 0 : index
    %c0_3 = arith.constant 0 : index
    %1 = vector.load %arg2[%c0_1, %c0_2, %c0_3] : memref<2x1x8xf32, #tpu.memory_space<vmem>>, vector<2x1x8xf32>
    %c0_4 = arith.constant 0 : index
    %c0_5 = arith.constant 0 : index
    %2 = vector.load %arg4[%c0_4, %c0_5] : memref<32x128xf32, #tpu.memory_space<vmem>>, vector<32x128xf32>
    %c0_6 = arith.constant 0 : index
    %c0_7 = arith.constant 0 : index
    %c0_8 = arith.constant 0 : index
    %3 = vector.load %arg6[%c0_6, %c0_7, %c0_8] : memref<2x7x8xf32, #tpu.memory_space<vmem>>, vector<1x7x8xf32>
    %4 = vector.shape_cast %3 : vector<1x7x8xf32> to vector<7x8xf32>
    %c1 = arith.constant 1 : index
    %c0_9 = arith.constant 0 : index
    %c0_10 = arith.constant 0 : index
    %5 = vector.load %arg6[%c1, %c0_9, %c0_10] : memref<2x7x8xf32, #tpu.memory_space<vmem>>, vector<1x7x8xf32>
    %6 = vector.shape_cast %5 : vector<1x7x8xf32> to vector<7x8xf32>
    %7 = vector.extract_strided_slice %2 {offsets = [0, 0], sizes = [32, 96], strides = [1, 1]} : vector<32x128xf32> to vector<32x96xf32>
    %cst = arith.constant dense<0.000000e+00> : vector<16x96xf32>
    %8 = tpu.matmul %0, %7, %cst {dimension_numbers = #tpu.dot_dimension_numbers<[1], [0], [0], [1], [0, 0, 1, 1], [], []>} : vector<16x32xf32>, vector<32x96xf32>, vector<16x96xf32> -> vector<16x96xf32>
    %9 = vector.extract_strided_slice %8 {offsets = [0, 0], sizes = [16, 32], strides = [1, 1]} : vector<16x96xf32> to vector<16x32xf32>
    %c0_11 = arith.constant 0 : index
    %c0_12 = arith.constant 0 : index
    %c0_13 = arith.constant 0 : index
    %10 = vector.load %arg5[%c0_11, %c0_12, %c0_13] : memref<6x1x32xf32, #tpu.memory_space<vmem>>, vector<1x1x32xf32>
    %11 = vector.shape_cast %10 : vector<1x1x32xf32> to vector<1x32xf32>
    %12 = vector.broadcast %11 : vector<1x32xf32> to vector<16x32xf32>
    %13 = arith.addf %9, %12 : vector<16x32xf32>
    %14 = vector.extract_strided_slice %8 {offsets = [0, 32], sizes = [16, 32], strides = [1, 1]} : vector<16x96xf32> to vector<16x32xf32>
    %c1_14 = arith.constant 1 : index
    %c0_15 = arith.constant 0 : index
    %c0_16 = arith.constant 0 : index
    %15 = vector.load %arg5[%c1_14, %c0_15, %c0_16] : memref<6x1x32xf32, #tpu.memory_space<vmem>>, vector<1x1x32xf32>
    %16 = vector.shape_cast %15 : vector<1x1x32xf32> to vector<1x32xf32>
    %17 = vector.broadcast %16 : vector<1x32xf32> to vector<16x32xf32>
    %18 = arith.addf %14, %17 : vector<16x32xf32>
    %19 = vector.extract_strided_slice %8 {offsets = [0, 64], sizes = [16, 32], strides = [1, 1]} : vector<16x96xf32> to vector<16x32xf32>
    %c2 = arith.constant 2 : index
    %c0_17 = arith.constant 0 : index
    %c0_18 = arith.constant 0 : index
    %20 = vector.load %arg5[%c2, %c0_17, %c0_18] : memref<6x1x32xf32, #tpu.memory_space<vmem>>, vector<1x1x32xf32>
    %21 = vector.shape_cast %20 : vector<1x1x32xf32> to vector<1x32xf32>
    %22 = vector.broadcast %21 : vector<1x32xf32> to vector<16x32xf32>
    %23 = arith.addf %19, %22 : vector<16x32xf32>
    %c0_19 = arith.constant 0 : index
    %c0_20 = arith.constant 0 : index
    %c0_21 = arith.constant 0 : index
    %24 = vector.load %arg3[%c0_19, %c0_20, %c0_21] : memref<2x8x8xi32, #tpu.memory_space<vmem>>, vector<2x8x8xi32>
    %25 = vector.shape_cast %24 : vector<2x8x8xi32> to vector<16x8xi32>
    %26 = tpu.iota {dimensions = array<i32: 2>} : vector<16x8x7xi32>
    %27 = vector.shape_cast %25 : vector<16x8xi32> to vector<16x8x1xi32>
    %28 = vector.broadcast %27 : vector<16x8x1xi32> to vector<16x8x7xi32>
    %29 = arith.cmpi eq, %28, %26 : vector<16x8x7xi32>
    %30 = arith.extui %29 : vector<16x8x7xi1> to vector<16x8x7xi32>
    %31 = arith.sitofp %30 : vector<16x8x7xi32> to vector<16x8x7xf32>
    %32 = vector.shape_cast %31 : vector<16x8x7xf32> to vector<128x7xf32>
    %cst_22 = arith.constant dense<0.000000e+00> : vector<128x8xf32>
    %33 = tpu.matmul %32, %4, %cst_22 {dimension_numbers = #tpu.dot_dimension_numbers<[1], [0], [0], [1], [0, 0, 1, 1], [], []>} : vector<128x7xf32>, vector<7x8xf32>, vector<128x8xf32> -> vector<128x8xf32>
    %34 = vector.shape_cast %33 : vector<128x8xf32> to vector<16x8x8xf32>
    %cst_23 = arith.constant dense<0.000000e+00> : vector<128x8xf32>
    %35 = tpu.matmul %32, %6, %cst_23 {dimension_numbers = #tpu.dot_dimension_numbers<[1], [0], [0], [1], [0, 0, 1, 1], [], []>} : vector<128x7xf32>, vector<7x8xf32>, vector<128x8xf32> -> vector<128x8xf32>
    %36 = vector.shape_cast %35 : vector<128x8xf32> to vector<16x8x8xf32>
    %37 = vector.extract_strided_slice %13 {offsets = [0, 0], sizes = [16, 8], strides = [1, 1]} : vector<16x32xf32> to vector<16x8xf32>
    %38 = vector.shape_cast %37 : vector<16x8xf32> to vector<2x8x8xf32>
    %39 = vector.extract_strided_slice %18 {offsets = [0, 0], sizes = [16, 8], strides = [1, 1]} : vector<16x32xf32> to vector<16x8xf32>
    %40 = vector.shape_cast %39 : vector<16x8xf32> to vector<2x8x8xf32>
    %41 = vector.extract_strided_slice %23 {offsets = [0, 0], sizes = [16, 8], strides = [1, 1]} : vector<16x32xf32> to vector<16x8xf32>
    %42 = vector.shape_cast %41 : vector<16x8xf32> to vector<2x8x8xf32>
    "tpu.trace_start"() <{level = 10 : i32, message = "bqd,bkd->bqk"}> : () -> ()
    %cst_24 = arith.constant dense<0.000000e+00> : vector<2x8x8xf32>
    %43 = tpu.matmul %38, %40, %cst_24 {dimension_numbers = #tpu.dot_dimension_numbers<[2], [2], [1], [1], [0, 0, 0, 1, 1, 1], [0], [0]>} : vector<2x8x8xf32>, vector<2x8x8xf32>, vector<2x8x8xf32> -> vector<2x8x8xf32>
    "tpu.trace_stop"() : () -> ()
    %cst_25 = arith.constant 0.353553385 : f32
    %44 = vector.broadcast %cst_25 : f32 to vector<2x8x8xf32>
    %45 = arith.mulf %43, %44 : vector<2x8x8xf32>
    %46 = vector.shape_cast %37 : vector<16x8xf32> to vector<16x1x8xf32>
    %47 = vector.broadcast %46 : vector<16x1x8xf32> to vector<16x8x8xf32>
    %48 = arith.mulf %47, %34 : vector<16x8x8xf32>
    %cst_26 = arith.constant dense<0.000000e+00> : vector<16x8xf32>
    %49 = vector.multi_reduction <add>, %48, %cst_26 [2] : vector<16x8x8xf32> to vector<16x8xf32>
    %50 = vector.shape_cast %49 : vector<16x8xf32> to vector<2x8x8xf32>
    %51 = arith.addf %45, %50 : vector<2x8x8xf32>
    %52 = vector.broadcast %1 : vector<2x1x8xf32> to vector<2x8x8xf32>
    %53 = arith.addf %51, %52 : vector<2x8x8xf32>
    %cst_27 = arith.constant dense<0xFF800000> : vector<2x8xf32>
    %54 = vector.multi_reduction <maximumf>, %53, %cst_27 [2] : vector<2x8x8xf32> to vector<2x8xf32>
    %55 = vector.shape_cast %54 : vector<2x8xf32> to vector<2x8x1xf32>
    %56 = vector.broadcast %55 : vector<2x8x1xf32> to vector<2x8x8xf32>
    %57 = arith.subf %53, %56 : vector<2x8x8xf32>
    %58 = math.exp %57 : vector<2x8x8xf32>
    %cst_28 = arith.constant dense<0.000000e+00> : vector<2x8xf32>
    %59 = vector.multi_reduction <add>, %58, %cst_28 [2] : vector<2x8x8xf32> to vector<2x8xf32>
    %60 = vector.shape_cast %59 : vector<2x8xf32> to vector<2x8x1xf32>
    %61 = vector.broadcast %60 : vector<2x8x1xf32> to vector<2x8x8xf32>
    %62 = arith.divf %58, %61 : vector<2x8x8xf32>
    "tpu.trace_start"() <{level = 10 : i32, message = "bqk,bkd->bqd"}> : () -> ()
    %cst_29 = arith.constant dense<0.000000e+00> : vector<2x8x8xf32>
    %63 = tpu.matmul %62, %42, %cst_29 {dimension_numbers = #tpu.dot_dimension_numbers<[2], [1], [1], [2], [0, 0, 0, 1, 1, 2], [0], [0]>} : vector<2x8x8xf32>, vector<2x8x8xf32>, vector<2x8x8xf32> -> vector<2x8x8xf32>
    "tpu.trace_stop"() : () -> ()
    %64 = vector.shape_cast %63 : vector<2x8x8xf32> to vector<16x8xf32>
    %65 = vector.shape_cast %62 : vector<2x8x8xf32> to vector<16x8xf32>
    %66 = vector.shape_cast %65 : vector<16x8xf32> to vector<16x8x1xf32>
    %67 = vector.broadcast %66 : vector<16x8x1xf32> to vector<16x8x8xf32>
    %68 = arith.mulf %67, %36 : vector<16x8x8xf32>
    %cst_30 = arith.constant dense<0.000000e+00> : vector<16x8xf32>
    %69 = vector.multi_reduction <add>, %68, %cst_30 [1] : vector<16x8x8xf32> to vector<16x8xf32>
    %70 = arith.addf %64, %69 : vector<16x8xf32>
    %71 = vector.extract_strided_slice %13 {offsets = [0, 8], sizes = [16, 8], strides = [1, 1]} : vector<16x32xf32> to vector<16x8xf32>
    %72 = vector.shape_cast %71 : vector<16x8xf32> to vector<2x8x8xf32>
    %73 = vector.extract_strided_slice %18 {offsets = [0, 8], sizes = [16, 8], strides = [1, 1]} : vector<16x32xf32> to vector<16x8xf32>
    %74 = vector.shape_cast %73 : vector<16x8xf32> to vector<2x8x8xf32>
    %75 = vector.extract_strided_slice %23 {offsets = [0, 8], sizes = [16, 8], strides = [1, 1]} : vector<16x32xf32> to vector<16x8xf32>
    %76 = vector.shape_cast %75 : vector<16x8xf32> to vector<2x8x8xf32>
    "tpu.trace_start"() <{level = 10 : i32, message = "bqd,bkd->bqk"}> : () -> ()
    %cst_31 = arith.constant dense<0.000000e+00> : vector<2x8x8xf32>
    %77 = tpu.matmul %72, %74, %cst_31 {dimension_numbers = #tpu.dot_dimension_numbers<[2], [2], [1], [1], [0, 0, 0, 1, 1, 1], [0], [0]>} : vector<2x8x8xf32>, vector<2x8x8xf32>, vector<2x8x8xf32> -> vector<2x8x8xf32>
    "tpu.trace_stop"() : () -> ()
    %cst_32 = arith.constant 0.353553385 : f32
    %78 = vector.broadcast %cst_32 : f32 to vector<2x8x8xf32>
    %79 = arith.mulf %77, %78 : vector<2x8x8xf32>
    %80 = vector.shape_cast %71 : vector<16x8xf32> to vector<16x1x8xf32>
    %81 = vector.broadcast %80 : vector<16x1x8xf32> to vector<16x8x8xf32>
    %82 = arith.mulf %81, %34 : vector<16x8x8xf32>
    %cst_33 = arith.constant dense<0.000000e+00> : vector<16x8xf32>
    %83 = vector.multi_reduction <add>, %82, %cst_33 [2] : vector<16x8x8xf32> to vector<16x8xf32>
    %84 = vector.shape_cast %83 : vector<16x8xf32> to vector<2x8x8xf32>
    %85 = arith.addf %79, %84 : vector<2x8x8xf32>
    %86 = vector.broadcast %1 : vector<2x1x8xf32> to vector<2x8x8xf32>
    %87 = arith.addf %85, %86 : vector<2x8x8xf32>
    %cst_34 = arith.constant dense<0xFF800000> : vector<2x8xf32>
    %88 = vector.multi_reduction <maximumf>, %87, %cst_34 [2] : vector<2x8x8xf32> to vector<2x8xf32>
    %89 = vector.shape_cast %88 : vector<2x8xf32> to vector<2x8x1xf32>
    %90 = vector.broadcast %89 : vector<2x8x1xf32> to vector<2x8x8xf32>
    %91 = arith.subf %87, %90 : vector<2x8x8xf32>
    %92 = math.exp %91 : vector<2x8x8xf32>
    %cst_35 = arith.constant dense<0.000000e+00> : vector<2x8xf32>
    %93 = vector.multi_reduction <add>, %92, %cst_35 [2] : vector<2x8x8xf32> to vector<2x8xf32>
    %94 = vector.shape_cast %93 : vector<2x8xf32> to vector<2x8x1xf32>
    %95 = vector.broadcast %94 : vector<2x8x1xf32> to vector<2x8x8xf32>
    %96 = arith.divf %92, %95 : vector<2x8x8xf32>
    "tpu.trace_start"() <{level = 10 : i32, message = "bqk,bkd->bqd"}> : () -> ()
    %cst_36 = arith.constant dense<0.000000e+00> : vector<2x8x8xf32>
    %97 = tpu.matmul %96, %76, %cst_36 {dimension_numbers = #tpu.dot_dimension_numbers<[2], [1], [1], [2], [0, 0, 0, 1, 1, 2], [0], [0]>} : vector<2x8x8xf32>, vector<2x8x8xf32>, vector<2x8x8xf32> -> vector<2x8x8xf32>
    "tpu.trace_stop"() : () -> ()
    %98 = vector.shape_cast %97 : vector<2x8x8xf32> to vector<16x8xf32>
    %99 = vector.shape_cast %96 : vector<2x8x8xf32> to vector<16x8xf32>
    %100 = vector.shape_cast %99 : vector<16x8xf32> to vector<16x8x1xf32>
    %101 = vector.broadcast %100 : vector<16x8x1xf32> to vector<16x8x8xf32>
    %102 = arith.mulf %101, %36 : vector<16x8x8xf32>
    %cst_37 = arith.constant dense<0.000000e+00> : vector<16x8xf32>
    %103 = vector.multi_reduction <add>, %102, %cst_37 [1] : vector<16x8x8xf32> to vector<16x8xf32>
    %104 = arith.addf %98, %103 : vector<16x8xf32>
    %105 = vector.extract_strided_slice %13 {offsets = [0, 16], sizes = [16, 8], strides = [1, 1]} : vector<16x32xf32> to vector<16x8xf32>
    %106 = vector.shape_cast %105 : vector<16x8xf32> to vector<2x8x8xf32>
    %107 = vector.extract_strided_slice %18 {offsets = [0, 16], sizes = [16, 8], strides = [1, 1]} : vector<16x32xf32> to vector<16x8xf32>
    %108 = vector.shape_cast %107 : vector<16x8xf32> to vector<2x8x8xf32>
    %109 = vector.extract_strided_slice %23 {offsets = [0, 16], sizes = [16, 8], strides = [1, 1]} : vector<16x32xf32> to vector<16x8xf32>
    %110 = vector.shape_cast %109 : vector<16x8xf32> to vector<2x8x8xf32>
    "tpu.trace_start"() <{level = 10 : i32, message = "bqd,bkd->bqk"}> : () -> ()
    %cst_38 = arith.constant dense<0.000000e+00> : vector<2x8x8xf32>
    %111 = tpu.matmul %106, %108, %cst_38 {dimension_numbers = #tpu.dot_dimension_numbers<[2], [2], [1], [1], [0, 0, 0, 1, 1, 1], [0], [0]>} : vector<2x8x8xf32>, vector<2x8x8xf32>, vector<2x8x8xf32> -> vector<2x8x8xf32>
    "tpu.trace_stop"() : () -> ()
    %cst_39 = arith.constant 0.353553385 : f32
    %112 = vector.broadcast %cst_39 : f32 to vector<2x8x8xf32>
    %113 = arith.mulf %111, %112 : vector<2x8x8xf32>
    %114 = vector.shape_cast %105 : vector<16x8xf32> to vector<16x1x8xf32>
    %115 = vector.broadcast %114 : vector<16x1x8xf32> to vector<16x8x8xf32>
    %116 = arith.mulf %115, %34 : vector<16x8x8xf32>
    %cst_40 = arith.constant dense<0.000000e+00> : vector<16x8xf32>
    %117 = vector.multi_reduction <add>, %116, %cst_40 [2] : vector<16x8x8xf32> to vector<16x8xf32>
    %118 = vector.shape_cast %117 : vector<16x8xf32> to vector<2x8x8xf32>
    %119 = arith.addf %113, %118 : vector<2x8x8xf32>
    %120 = vector.broadcast %1 : vector<2x1x8xf32> to vector<2x8x8xf32>
    %121 = arith.addf %119, %120 : vector<2x8x8xf32>
    %cst_41 = arith.constant dense<0xFF800000> : vector<2x8xf32>
    %122 = vector.multi_reduction <maximumf>, %121, %cst_41 [2] : vector<2x8x8xf32> to vector<2x8xf32>
    %123 = vector.shape_cast %122 : vector<2x8xf32> to vector<2x8x1xf32>
    %124 = vector.broadcast %123 : vector<2x8x1xf32> to vector<2x8x8xf32>
    %125 = arith.subf %121, %124 : vector<2x8x8xf32>
    %126 = math.exp %125 : vector<2x8x8xf32>
    %cst_42 = arith.constant dense<0.000000e+00> : vector<2x8xf32>
    %127 = vector.multi_reduction <add>, %126, %cst_42 [2] : vector<2x8x8xf32> to vector<2x8xf32>
    %128 = vector.shape_cast %127 : vector<2x8xf32> to vector<2x8x1xf32>
    %129 = vector.broadcast %128 : vector<2x8x1xf32> to vector<2x8x8xf32>
    %130 = arith.divf %126, %129 : vector<2x8x8xf32>
    "tpu.trace_start"() <{level = 10 : i32, message = "bqk,bkd->bqd"}> : () -> ()
    %cst_43 = arith.constant dense<0.000000e+00> : vector<2x8x8xf32>
    %131 = tpu.matmul %130, %110, %cst_43 {dimension_numbers = #tpu.dot_dimension_numbers<[2], [1], [1], [2], [0, 0, 0, 1, 1, 2], [0], [0]>} : vector<2x8x8xf32>, vector<2x8x8xf32>, vector<2x8x8xf32> -> vector<2x8x8xf32>
    "tpu.trace_stop"() : () -> ()
    %132 = vector.shape_cast %131 : vector<2x8x8xf32> to vector<16x8xf32>
    %133 = vector.shape_cast %130 : vector<2x8x8xf32> to vector<16x8xf32>
    %134 = vector.shape_cast %133 : vector<16x8xf32> to vector<16x8x1xf32>
    %135 = vector.broadcast %134 : vector<16x8x1xf32> to vector<16x8x8xf32>
    %136 = arith.mulf %135, %36 : vector<16x8x8xf32>
    %cst_44 = arith.constant dense<0.000000e+00> : vector<16x8xf32>
    %137 = vector.multi_reduction <add>, %136, %cst_44 [1] : vector<16x8x8xf32> to vector<16x8xf32>
    %138 = arith.addf %132, %137 : vector<16x8xf32>
    %139 = vector.extract_strided_slice %13 {offsets = [0, 24], sizes = [16, 8], strides = [1, 1]} : vector<16x32xf32> to vector<16x8xf32>
    %140 = vector.shape_cast %139 : vector<16x8xf32> to vector<2x8x8xf32>
    %141 = vector.extract_strided_slice %18 {offsets = [0, 24], sizes = [16, 8], strides = [1, 1]} : vector<16x32xf32> to vector<16x8xf32>
    %142 = vector.shape_cast %141 : vector<16x8xf32> to vector<2x8x8xf32>
    %143 = vector.extract_strided_slice %23 {offsets = [0, 24], sizes = [16, 8], strides = [1, 1]} : vector<16x32xf32> to vector<16x8xf32>
    %144 = vector.shape_cast %143 : vector<16x8xf32> to vector<2x8x8xf32>
    "tpu.trace_start"() <{level = 10 : i32, message = "bqd,bkd->bqk"}> : () -> ()
    %cst_45 = arith.constant dense<0.000000e+00> : vector<2x8x8xf32>
    %145 = tpu.matmul %140, %142, %cst_45 {dimension_numbers = #tpu.dot_dimension_numbers<[2], [2], [1], [1], [0, 0, 0, 1, 1, 1], [0], [0]>} : vector<2x8x8xf32>, vector<2x8x8xf32>, vector<2x8x8xf32> -> vector<2x8x8xf32>
    "tpu.trace_stop"() : () -> ()
    %cst_46 = arith.constant 0.353553385 : f32
    %146 = vector.broadcast %cst_46 : f32 to vector<2x8x8xf32>
    %147 = arith.mulf %145, %146 : vector<2x8x8xf32>
    %148 = vector.shape_cast %139 : vector<16x8xf32> to vector<16x1x8xf32>
    %149 = vector.broadcast %148 : vector<16x1x8xf32> to vector<16x8x8xf32>
    %150 = arith.mulf %149, %34 : vector<16x8x8xf32>
    %cst_47 = arith.constant dense<0.000000e+00> : vector<16x8xf32>
    %151 = vector.multi_reduction <add>, %150, %cst_47 [2] : vector<16x8x8xf32> to vector<16x8xf32>
    %152 = vector.shape_cast %151 : vector<16x8xf32> to vector<2x8x8xf32>
    %153 = arith.addf %147, %152 : vector<2x8x8xf32>
    %154 = vector.broadcast %1 : vector<2x1x8xf32> to vector<2x8x8xf32>
    %155 = arith.addf %153, %154 : vector<2x8x8xf32>
    %cst_48 = arith.constant dense<0xFF800000> : vector<2x8xf32>
    %156 = vector.multi_reduction <maximumf>, %155, %cst_48 [2] : vector<2x8x8xf32> to vector<2x8xf32>
    %157 = vector.shape_cast %156 : vector<2x8xf32> to vector<2x8x1xf32>
    %158 = vector.broadcast %157 : vector<2x8x1xf32> to vector<2x8x8xf32>
    %159 = arith.subf %155, %158 : vector<2x8x8xf32>
    %160 = math.exp %159 : vector<2x8x8xf32>
    %cst_49 = arith.constant dense<0.000000e+00> : vector<2x8xf32>
    %161 = vector.multi_reduction <add>, %160, %cst_49 [2] : vector<2x8x8xf32> to vector<2x8xf32>
    %162 = vector.shape_cast %161 : vector<2x8xf32> to vector<2x8x1xf32>
    %163 = vector.broadcast %162 : vector<2x8x1xf32> to vector<2x8x8xf32>
    %164 = arith.divf %160, %163 : vector<2x8x8xf32>
    "tpu.trace_start"() <{level = 10 : i32, message = "bqk,bkd->bqd"}> : () -> ()
    %cst_50 = arith.constant dense<0.000000e+00> : vector<2x8x8xf32>
    %165 = tpu.matmul %164, %144, %cst_50 {dimension_numbers = #tpu.dot_dimension_numbers<[2], [1], [1], [2], [0, 0, 0, 1, 1, 2], [0], [0]>} : vector<2x8x8xf32>, vector<2x8x8xf32>, vector<2x8x8xf32> -> vector<2x8x8xf32>
    "tpu.trace_stop"() : () -> ()
    %166 = vector.shape_cast %165 : vector<2x8x8xf32> to vector<16x8xf32>
    %167 = vector.shape_cast %164 : vector<2x8x8xf32> to vector<16x8xf32>
    %168 = vector.shape_cast %167 : vector<16x8xf32> to vector<16x8x1xf32>
    %169 = vector.broadcast %168 : vector<16x8x1xf32> to vector<16x8x8xf32>
    %170 = arith.mulf %169, %36 : vector<16x8x8xf32>
    %cst_51 = arith.constant dense<0.000000e+00> : vector<16x8xf32>
    %171 = vector.multi_reduction <add>, %170, %cst_51 [1] : vector<16x8x8xf32> to vector<16x8xf32>
    %172 = arith.addf %166, %171 : vector<16x8xf32>
    %173 = tpu.concatenate %70, %104, %138, %172 in 1 : vector<16x8xf32>, vector<16x8xf32>, vector<16x8xf32>, vector<16x8xf32> -> vector<16x32xf32>
    %174 = vector.extract_strided_slice %2 {offsets = [0, 96], sizes = [32, 32], strides = [1, 1]} : vector<32x128xf32> to vector<32x32xf32>
    %cst_52 = arith.constant dense<0.000000e+00> : vector<16x32xf32>
    %175 = tpu.matmul %173, %174, %cst_52 {dimension_numbers = #tpu.dot_dimension_numbers<[1], [0], [0], [1], [0, 0, 1, 1], [], []>} : vector<16x32xf32>, vector<32x32xf32>, vector<16x32xf32> -> vector<16x32xf32>
    %c3 = arith.constant 3 : index
    %c0_53 = arith.constant 0 : index
    %c0_54 = arith.constant 0 : index
    %176 = vector.load %arg5[%c3, %c0_53, %c0_54] : memref<6x1x32xf32, #tpu.memory_space<vmem>>, vector<1x1x32xf32>
    %177 = vector.shape_cast %176 : vector<1x1x32xf32> to vector<1x32xf32>
    %178 = vector.broadcast %177 : vector<1x32xf32> to vector<16x32xf32>
    %179 = arith.addf %175, %178 : vector<16x32xf32>
    %180 = arith.addf %179, %0 : vector<16x32xf32>
    %cst_55 = arith.constant dense<0.000000e+00> : vector<16xf32>
    %181 = vector.multi_reduction <add>, %180, %cst_55 [1] : vector<16x32xf32> to vector<16xf32>
    %182 = vector.shape_cast %181 : vector<16xf32> to vector<16x1xf32>
    %cst_56 = arith.constant 3.200000e+01 : f32
    %183 = vector.broadcast %cst_56 : f32 to vector<16x1xf32>
    %184 = arith.divf %182, %183 : vector<16x1xf32>
    %185 = vector.broadcast %184 : vector<16x1xf32> to vector<16x32xf32>
    %186 = arith.subf %180, %185 : vector<16x32xf32>
    %187 = arith.mulf %186, %186 : vector<16x32xf32>
    %cst_57 = arith.constant dense<0.000000e+00> : vector<16xf32>
    %188 = vector.multi_reduction <add>, %187, %cst_57 [1] : vector<16x32xf32> to vector<16xf32>
    %189 = vector.shape_cast %188 : vector<16xf32> to vector<16x1xf32>
    %cst_58 = arith.constant 3.200000e+01 : f32
    %190 = vector.broadcast %cst_58 : f32 to vector<16x1xf32>
    %191 = arith.divf %189, %190 : vector<16x1xf32>
    %192 = vector.broadcast %184 : vector<16x1xf32> to vector<16x32xf32>
    %193 = arith.subf %180, %192 : vector<16x32xf32>
    %cst_59 = arith.constant 9.99999996E-13 : f32
    %194 = vector.broadcast %cst_59 : f32 to vector<16x1xf32>
    %195 = arith.addf %191, %194 : vector<16x1xf32>
    %196 = math.sqrt %195 : vector<16x1xf32>
    %197 = vector.broadcast %196 : vector<16x1xf32> to vector<16x32xf32>
    %198 = arith.divf %193, %197 : vector<16x32xf32>
    %c4 = arith.constant 4 : index
    %c0_60 = arith.constant 0 : index
    %c0_61 = arith.constant 0 : index
    %199 = vector.load %arg5[%c4, %c0_60, %c0_61] : memref<6x1x32xf32, #tpu.memory_space<vmem>>, vector<1x1x32xf32>
    %200 = vector.shape_cast %199 : vector<1x1x32xf32> to vector<1x32xf32>
    %201 = vector.broadcast %200 : vector<1x32xf32> to vector<16x32xf32>
    %202 = arith.mulf %198, %201 : vector<16x32xf32>
    %c5 = arith.constant 5 : index
    %c0_62 = arith.constant 0 : index
    %c0_63 = arith.constant 0 : index
    %203 = vector.load %arg5[%c5, %c0_62, %c0_63] : memref<6x1x32xf32, #tpu.memory_space<vmem>>, vector<1x1x32xf32>
    %204 = vector.shape_cast %203 : vector<1x1x32xf32> to vector<1x32xf32>
    %205 = vector.broadcast %204 : vector<1x32xf32> to vector<16x32xf32>
    %206 = arith.addf %202, %205 : vector<16x32xf32>
    %207 = vector.shape_cast %206 : vector<16x32xf32> to vector<2x8x32xf32>
    %c0_64 = arith.constant 0 : index
    %c0_65 = arith.constant 0 : index
    %c0_66 = arith.constant 0 : index
    %208 = vector.load %arg7[%c0_64, %c0_65, %c0_66] : memref<2x8x32xf32, #tpu.memory_space<vmem>>, vector<2x8x32xf32>
    tpu.vector_store %arg7[%c0_64, %c0_65, %c0_66], %207 {strides = array<i32>} : memref<2x8x32xf32, #tpu.memory_space<vmem>>, vector<2x8x32xf32>,
    return
  }
  func.func @transform_0(%arg0: i32) -> (i32, i32) {
    %c0_i32 = arith.constant 0 : i32
    %c0_i32_0 = arith.constant 0 : i32
    %c0_i32_1 = arith.constant 0 : i32
    return %c0_i32, %c0_i32_0 : i32, i32
  }
  func.func @transform_1(%arg0: i32) -> (i32, i32, i32) {
    %c0_i32 = arith.constant 0 : i32
    %c0_i32_0 = arith.constant 0 : i32
    %c0_i32_1 = arith.constant 0 : i32
    %c0_i32_2 = arith.constant 0 : i32
    return %c0_i32, %c0_i32_0, %c0_i32_1 : i32, i32, i32
  }
  func.func @transform_2(%arg0: i32) -> (i32, i32, i32) {
    %c0_i32 = arith.constant 0 : i32
    %c0_i32_0 = arith.constant 0 : i32
    %c0_i32_1 = arith.constant 0 : i32
    %c0_i32_2 = arith.constant 0 : i32
    return %c0_i32, %c0_i32_0, %c0_i32_1 : i32, i32, i32
  }
  func.func @transform_3(%arg0: i32) -> (i32, i32) {
    %c0_i32 = arith.constant 0 : i32
    %c0_i32_0 = arith.constant 0 : i32
    %c0_i32_1 = arith.constant 0 : i32
    return %c0_i32, %c0_i32_0 : i32, i32
  }
  func.func @transform_4(%arg0: i32) -> (i32, i32, i32) {
    %c0_i32 = arith.constant 0 : i32
    %c0_i32_0 = arith.constant 0 : i32
    %c0_i32_1 = arith.constant 0 : i32
    %c0_i32_2 = arith.constant 0 : i32
    return %c0_i32, %c0_i32_0, %c0_i32_1 : i32, i32, i32
  }
  func.func @transform_5(%arg0: i32) -> (i32, i32, i32) {
    %c0_i32 = arith.constant 0 : i32
    %c0_i32_0 = arith.constant 0 : i32
    %c0_i32_1 = arith.constant 0 : i32
    %c0_i32_2 = arith.constant 0 : i32
    return %c0_i32, %c0_i32_0, %c0_i32_1 : i32, i32, i32
  }
  func.func @transform_6(%arg0: i32) -> (i32, i32, i32) {
    %c0_i32 = arith.constant 0 : i32
    %c0_i32_0 = arith.constant 0 : i32
    %c0_i32_1 = arith.constant 0 : i32
    %c0_i32_2 = arith.constant 0 : i32
    return %c0_i32, %c0_i32_0, %c0_i32_1 : i32, i32, i32
  }
}

</mosaic_0001>

<llo_original>
// kernel: tpu_custom_call.1
$region0: #{tpu_custom_call.1}
  #allocation0 [shape = 'u32[]', space=smem, size = 0x4, offset = 0x4, fixed_abs, tag = 'smem constant byte address 0x4 - core index']
  #allocation1 [shape = 'u32[144,128]{1,0:T(1,128)}', space=vmem, size = 0x12000, scoped, tag = 'internal scratch']
  %s0 = inlined_call_operand.hbm [shape: f32[16,32], index: 0, kind: input, shape index: {}]
  %s1 = inlined_call_operand.vmem [shape: f32[2,1,8], index: 1, kind: input, shape index: {}]
  %s2 = inlined_call_operand.hbm [shape: s32[2,8,8], index: 2, kind: input, shape index: {}]
  %s3 = inlined_call_operand.vmem [shape: f32[32,128], index: 3, kind: input, shape index: {}]
  %s4 = inlined_call_operand.hbm [shape: f32[6,1,32], index: 4, kind: input, shape index: {}]
  %s5 = inlined_call_operand.vmem [shape: f32[2,7,8], index: 5, kind: input, shape index: {}]
  %s6 = inlined_call_operand.hbm [shape: f32[2,8,32], index: 6, kind: output, shape index: {}]
  %s7 = sld [smem:[#allocation0]]
  $region46: #{tpu_custom_call.1} parent=0
    _
  %s9 = ssub.s32 1, %s7
  %s10 = scalar_select 0, %s9, %s7
  $region1: #{tpu_custom_call.1} parent=0
    #allocation2 [shape = 'u8[8192]{0}', space=vmem, size = 0x2000, scoped, tag = 'input window, operand 0, single buffered']
    #allocation3 [shape = 's32[1]{0}', space=sflag, size = 0x4, scoped, tag = 'scoped memory for tpu_custom_call.1']
    #allocation4 [shape = 's32[1]{0}', space=sflag, size = 0x4, scoped, tag = 'scoped memory for tpu_custom_call.1']
    #allocation5 [shape = 'u8[8192]{0}', space=vmem, size = 0x2000, scoped, tag = 'input window, operand 2, single buffered']
    #allocation6 [shape = 's32[1]{0}', space=sflag, size = 0x4, scoped, tag = 'scoped memory for tpu_custom_call.1']
    #allocation7 [shape = 'u8[3072]{0}', space=vmem, size = 0xc00, scoped, tag = 'input window, operand 4, single buffered']
    #allocation8 [shape = 'u8[8192]{0}', space=vmem, size = 0x2000, scoped, tag = 'output window, operand 0, single buffered']
    %11 = vsyncpa [#allocation3], 0
    %12 = vsyncpa [#allocation6], 0
    %13 = vsyncpa [#allocation4], 0
    // Predicated region
    $region2: #{tpu_custom_call.1} parent=1 // pred_check
      _
    $region3: #{tpu_custom_call.1} parent=1 // pred_check_branch
      %15 = sbr.rel (0) target = $region5
    $region4: #{tpu_custom_call.1} parent=1 // pred_region
      %s17 = ssub.s32 256, 256
      %18 = vsyncadd [#allocation3], %s17
      %s19 = sshll.u32 [#allocation2], 4
      %s20 = int_to_ptr.vmem [resolvable:$true] %s19
      %25 = dma.hbm_to_vmem [thread:$0]  %s0, 256, %s20, [#allocation3], 128, 128, 8
    $region5: #{tpu_custom_call.1} parent=1 // pred_fallthru
      _
    // Predicated region
    $region6: #{tpu_custom_call.1} parent=1 // pred_check
      _
    $region7: #{tpu_custom_call.1} parent=1 // pred_check_branch
      %27 = sbr.rel (0) target = $region9
    $region8: #{tpu_custom_call.1} parent=1 // pred_region
      _
    $region9: #{tpu_custom_call.1} parent=1 // pred_fallthru
      _
    // Predicated region
    $region10: #{tpu_custom_call.1} parent=1 // pred_check
      _
    $region11: #{tpu_custom_call.1} parent=1 // pred_check_branch
      %29 = sbr.rel (0) target = $region13
    $region12: #{tpu_custom_call.1} parent=1 // pred_region
      %s31 = ssub.s32 256, 256
      %32 = vsyncadd [#allocation6], %s31
      %s33 = sshll.u32 [#allocation5], 4
      %s34 = int_to_ptr.vmem [resolvable:$true] %s33
      %39 = dma.hbm_to_vmem [thread:$0]  %s2, 256, %s34, [#allocation6], 128, 128, 8
    $region13: #{tpu_custom_call.1} parent=1 // pred_fallthru
      _
    // Predicated region
    $region14: #{tpu_custom_call.1} parent=1 // pred_check
      _
    $region15: #{tpu_custom_call.1} parent=1 // pred_check_branch
      %41 = sbr.rel (0) target = $region17
    $region16: #{tpu_custom_call.1} parent=1 // pred_region
      _
    $region17: #{tpu_custom_call.1} parent=1 // pred_fallthru
      _
    // Predicated region
    $region18: #{tpu_custom_call.1} parent=1 // pred_check
      _
    $region19: #{tpu_custom_call.1} parent=1 // pred_check_branch
      %43 = sbr.rel (0) target = $region21
    $region20: #{tpu_custom_call.1} parent=1 // pred_region
      %s45 = ssub.s32 96, 96
      %46 = vsyncadd [#allocation6], %s45
      %s47 = sshll.u32 [#allocation7], 4
      %s48 = int_to_ptr.vmem [resolvable:$true] %s47
      %53 = dma.hbm_to_vmem [thread:$0]  %s4, 96, %s48, [#allocation6], 16, 16, 1
    $region21: #{tpu_custom_call.1} parent=1 // pred_fallthru
      _
    // Predicated region
    $region22: #{tpu_custom_call.1} parent=1 // pred_check
      _
    $region23: #{tpu_custom_call.1} parent=1 // pred_check_branch
      %55 = sbr.rel (0) target = $region25
    $region24: #{tpu_custom_call.1} parent=1 // pred_region
      _
    $region25: #{tpu_custom_call.1} parent=1 // pred_fallthru
      _
    // Predicated region
    $region26: #{tpu_custom_call.1} parent=1 // pred_check
      _
    $region27: #{tpu_custom_call.1} parent=1 // pred_check_branch
      %57 = sbr.rel (0) target = $region29
    $region28: #{tpu_custom_call.1} parent=1 // pred_region
      %58 = dma.done [#allocation3], 256
    $region29: #{tpu_custom_call.1} parent=1 // pred_fallthru
      _
    // Predicated region
    $region30: #{tpu_custom_call.1} parent=1 // pred_check
      _
    $region31: #{tpu_custom_call.1} parent=1 // pred_check_branch
      %60 = sbr.rel (0) target = $region33
    $region32: #{tpu_custom_call.1} parent=1 // pred_region
      %61 = dma.done [#allocation6], 256
    $region33: #{tpu_custom_call.1} parent=1 // pred_fallthru
      _
    // Predicated region
    $region34: #{tpu_custom_call.1} parent=1 // pred_check
      _
    $region35: #{tpu_custom_call.1} parent=1 // pred_check_branch
      %63 = sbr.rel (0) target = $region37
    $region36: #{tpu_custom_call.1} parent=1 // pred_region
      %64 = dma.done [#allocation6], 96
    $region37: #{tpu_custom_call.1} parent=1 // pred_fallthru
      _
    %v65 = vld [vmem:[#allocation2] sm:$0xff]
    %v66 = vld [vmem:[#allocation2 + $0x8] sm:$0xff]
    %v67 = vld [vmem:[%s1] sm:$0x1]
    %v68 = vld [vmem:[%s1 + $0x1] sm:$0x1]
    %v69 = vld [vmem:[%s3] sm:$0xff]
    %v70 = vld [vmem:[%s3 + $0x8] sm:$0xff]
    %v71 = vld [vmem:[%s3 + $0x10] sm:$0xff]
    %v72 = vld [vmem:[%s3 + $0x18] sm:$0xff]
    %v73 = vld [vmem:[%s5] sm:$0x7f]
    %s74 = scalar_lea.vmem %s5, 8
    %v75 = vld [vmem:[%s74] sm:$0x7f]
    %vm76 = vcmask 261120
    %v78 = vsel %vm76, %v65, 0
    %v81 = vsel %vm76, %v66, 0
    %83 = vmatprep.subr.mxu0 0.0
    %84 = vmatpush1.msra.mxu0 0.0
    %85 = vmatprep.subr.mxu0 0.0
    %86 = vmatpush1.msra.mxu0 0.0
    %87 = vmatprep.subr.mxu0 0.0
    %88 = vmatpush1.msra.mxu0 0.0
    %89 = vmatprep.subr.mxu0 0.0
    %90 = vmatpush1.msra.mxu0 0.0
    %91 = vmatprep.subr.mxu0 0.0
    %92 = vmatpush1.msra.mxu0 0.0
    %93 = vmatprep.subr.mxu0 0.0
    %94 = vmatpush1.msra.mxu0 0.0
    %95 = vmatprep.subr.mxu0 0.0
    %96 = vmatpush1.msra.mxu0 0.0
    %97 = vmatprep.subr.mxu0 0.0
    %98 = vmatpush1.msra.mxu0 0.0
    %99 = vmatprep.subr.mxu0 0.0
    %100 = vmatpush1.msra.mxu0 0.0
    %101 = vmatprep.subr.mxu0 0.0
    %102 = vmatpush1.msra.mxu0 0.0
    %103 = vmatprep.subr.mxu0 0.0
    %104 = vmatpush1.msra.mxu0 0.0
    %105 = vmatprep.subr.mxu0 0.0
    %106 = vmatpush1.msra.mxu0 0.0
    %107 = vmatprep.subr.mxu0 0.0
    %108 = vmatpush1.msra.mxu0 %v72
    %109 = vmatprep.subr.mxu0 0.0
    %110 = vmatpush1.msra.mxu0 %v71
    %111 = vmatprep.subr.mxu0 0.0
    %112 = vmatpush1.msra.mxu0 %v70
    %113 = vmatprep.subr.mxu0 0.0
    %114 = vmatpush1.msra.mxu0 %v69
    %115 = vmatprep.subr.mxu0 0.0
    %116 = vmatpush2.msra.mxu0 0.0
    %117 = vmatprep.subr.mxu0 0.0
    %118 = vmatpush2.msra.mxu0 0.0
    %119 = vmatprep.subr.mxu0 0.0
    %120 = vmatpush2.msra.mxu0 0.0
    %121 = vmatprep.subr.mxu0 0.0
    %122 = vmatpush2.msra.mxu0 0.0
    %123 = vmatprep.subr.mxu0 0.0
    %124 = vmatpush2.msra.mxu0 0.0
    %125 = vmatprep.subr.mxu0 0.0
    %126 = vmatpush2.msra.mxu0 0.0
    %127 = vmatprep.subr.mxu0 0.0
    %128 = vmatpush2.msra.mxu0 0.0
    %129 = vmatprep.subr.mxu0 0.0
    %130 = vmatpush2.msra.mxu0 0.0
    %131 = vmatprep.subr.mxu0 0.0
    %132 = vmatpush2.msra.mxu0 0.0
    %133 = vmatprep.subr.mxu0 0.0
    %134 = vmatpush2.msra.mxu0 0.0
    %135 = vmatprep.subr.mxu0 0.0
    %136 = vmatpush2.msra.mxu0 0.0
    %137 = vmatprep.subr.mxu0 0.0
    %138 = vmatpush2.msra.mxu0 0.0
    %139 = vmatprep.subr.mxu0 0.0
    %140 = vmatpush2.msra.mxu0 0.0
    %141 = vmatprep.subr.mxu0 0.0
    %142 = vmatpush2.msra.mxu0 0.0
    %143 = vmatprep.subr.mxu0 0.0
    %144 = vmatpush2.msra.mxu0 0.0
    %145 = vmatprep.subr.mxu0 0.0
    %146 = vmatpush2.msra.mxu0 0.0
    %147 = vmatprep.mubr.f32.mxu0 0.0
    %148 = vmatmul.mubr.f32.gmra.mxu0 %v78
    %v149 = vpop.f32.mrf.mxu0
    %v150 = vadd.f32 0.0, %v149
    %v151 = vpop.f32.mrf.mxu0
    %152 = vmatprep.mubr.f32.mxu0 0.0
    %153 = vmatmul.mubr.f32.gmra.mxu0 %v81
    %v154 = vpop.f32.mrf.mxu0
    %v155 = vadd.f32 0.0, %v154
    %v156 = vpop.f32.mrf.mxu0
    %157 = vdwg.mxu0
    %v158 = vld [vmem:[#allocation7] sm:$0x1]
    %v160 = vlaneseq
    %v161 = vshrl.u32 %v160, 7
    %v162 = vsub.s32 0, %v161
    %v163 = vrot.slane %v158, %v162
    %v165 = vadd.f32 %v150, %v163
    %v166 = vadd.f32 %v155, %v163
    %s167 = scalar_lea.vmem [#allocation7], 1
    %v168 = vld [vmem:[%s167] sm:$0x1]
    %v170 = vlaneseq
    %v171 = vshrl.u32 %v170, 7
    %v172 = vsub.s32 0, %v171
    %v173 = vrot.slane %v168, %v172
    %174 = vrot.lane.b32.xlu0 %v173, 32
    %v175 = vpop.permute.xlu0 %174
    %v177 = vadd.f32 %v150, %v175
    %v178 = vadd.f32 %v155, %v175
    %s179 = scalar_lea.vmem [#allocation7], 2
    %v180 = vld [vmem:[%s179] sm:$0x1]
    %v182 = vlaneseq
    %v183 = vshrl.u32 %v182, 7
    %v184 = vsub.s32 0, %v183
    %v185 = vrot.slane %v180, %v184
    %186 = vrot.lane.b32.xlu0 %v185, 64
    %v187 = vpop.permute.xlu0 %186
    %v189 = vadd.f32 %v150, %v187
    %v190 = vadd.f32 %v155, %v187
    %v191 = vld [vmem:[#allocation5] sm:$0xff]
    %v192 = vld [vmem:[#allocation5 + $0x8] sm:$0xff]
    %v193 = vlaneseq
    %v194 = vand.u32 %v193, 127
    %v195 = vlaneseq
    %v196 = vshrl.u32 %v195, 7
    %v197 = vsub.s32 0, %v196
    %v198 = vrot.slane %v191, %v197
    %200 = vbcast.lane.b32.xlu0 %v198, 256
    %v201 = vpop.permute.xlu0 %200
    %v202 = vlaneseq
    %v203 = vshrl.u32 %v202, 7
    %v204 = vsub.s32 1, %v203
    %v205 = vrot.slane %v191, %v204
    %207 = vbcast.lane.b32.xlu0 %v205, 256
    %v208 = vpop.permute.xlu0 %207
    %v209 = vlaneseq
    %v210 = vshrl.u32 %v209, 7
    %v211 = vsub.s32 2, %v210
    %v212 = vrot.slane %v191, %v211
    %214 = vbcast.lane.b32.xlu0 %v212, 256
    %v215 = vpop.permute.xlu0 %214
    %v216 = vlaneseq
    %v217 = vshrl.u32 %v216, 7
    %v218 = vsub.s32 3, %v217
    %v219 = vrot.slane %v191, %v218
    %221 = vbcast.lane.b32.xlu0 %v219, 256
    %v222 = vpop.permute.xlu0 %221
    %v223 = vlaneseq
    %v224 = vshrl.u32 %v223, 7
    %v225 = vsub.s32 4, %v224
    %v226 = vrot.slane %v191, %v225
    %228 = vbcast.lane.b32.xlu0 %v226, 256
    %v229 = vpop.permute.xlu0 %228
    %v230 = vlaneseq
    %v231 = vshrl.u32 %v230, 7
    %v232 = vsub.s32 5, %v231
    %v233 = vrot.slane %v191, %v232
    %235 = vbcast.lane.b32.xlu0 %v233, 256
    %v236 = vpop.permute.xlu0 %235
    %v237 = vlaneseq
    %v238 = vshrl.u32 %v237, 7
    %v239 = vsub.s32 6, %v238
    %v240 = vrot.slane %v191, %v239
    %242 = vbcast.lane.b32.xlu0 %v240, 256
    %v243 = vpop.permute.xlu0 %242
    %v244 = vlaneseq
    %v245 = vshrl.u32 %v244, 7
    %v246 = vsub.s32 7, %v245
    %v247 = vrot.slane %v191, %v246
    %249 = vbcast.lane.b32.xlu0 %v247, 256
    %v250 = vpop.permute.xlu0 %249
    %v251 = vlaneseq
    %v252 = vshrl.u32 %v251, 7
    %v253 = vsub.s32 0, %v252
    %v254 = vrot.slane %v192, %v253
    %256 = vbcast.lane.b32.xlu0 %v254, 256
    %v257 = vpop.permute.xlu0 %256
    %v258 = vlaneseq
    %v259 = vshrl.u32 %v258, 7
    %v260 = vsub.s32 1, %v259
    %v261 = vrot.slane %v192, %v260
    %263 = vbcast.lane.b32.xlu0 %v261, 256
    %v264 = vpop.permute.xlu0 %263
    %v265 = vlaneseq
    %v266 = vshrl.u32 %v265, 7
    %v267 = vsub.s32 2, %v266
    %v268 = vrot.slane %v192, %v267
    %270 = vbcast.lane.b32.xlu0 %v268, 256
    %v271 = vpop.permute.xlu0 %270
    %v272 = vlaneseq
    %v273 = vshrl.u32 %v272, 7
    %v274 = vsub.s32 3, %v273
    %v275 = vrot.slane %v192, %v274
    %277 = vbcast.lane.b32.xlu0 %v275, 256
    %v278 = vpop.permute.xlu0 %277
    %v279 = vlaneseq
    %v280 = vshrl.u32 %v279, 7
    %v281 = vsub.s32 4, %v280
    %v282 = vrot.slane %v192, %v281
    %284 = vbcast.lane.b32.xlu0 %v282, 256
    %v285 = vpop.permute.xlu0 %284
    %v286 = vlaneseq
    %v287 = vshrl.u32 %v286, 7
    %v288 = vsub.s32 5, %v287
    %v289 = vrot.slane %v192, %v288
    %291 = vbcast.lane.b32.xlu0 %v289, 256
    %v292 = vpop.permute.xlu0 %291
    %v293 = vlaneseq
    %v294 = vshrl.u32 %v293, 7
    %v295 = vsub.s32 6, %v294
    %v296 = vrot.slane %v192, %v295
    %298 = vbcast.lane.b32.xlu0 %v296, 256
    %v299 = vpop.permute.xlu0 %298
    %v300 = vlaneseq
    %v301 = vshrl.u32 %v300, 7
    %v302 = vsub.s32 7, %v301
    %v303 = vrot.slane %v192, %v302
    %305 = vbcast.lane.b32.xlu0 %v303, 256
    %v306 = vpop.permute.xlu0 %305
    %vm307 = vcmp.eq.s32.totalorder %v201, %v194
    %vm308 = vcmp.eq.s32.totalorder %v208, %v194
    %vm309 = vcmp.eq.s32.totalorder %v215, %v194
    %vm310 = vcmp.eq.s32.totalorder %v222, %v194
    %vm311 = vcmp.eq.s32.totalorder %v229, %v194
    %vm312 = vcmp.eq.s32.totalorder %v236, %v194
    %vm313 = vcmp.eq.s32.totalorder %v243, %v194
    %vm314 = vcmp.eq.s32.totalorder %v250, %v194
    %vm315 = vcmp.eq.s32.totalorder %v257, %v194
    %vm316 = vcmp.eq.s32.totalorder %v264, %v194
    %vm317 = vcmp.eq.s32.totalorder %v271, %v194
    %vm318 = vcmp.eq.s32.totalorder %v278, %v194
    %vm319 = vcmp.eq.s32.totalorder %v285, %v194
    %vm320 = vcmp.eq.s32.totalorder %v292, %v194
    %vm321 = vcmp.eq.s32.totalorder %v299, %v194
    %vm322 = vcmp.eq.s32.totalorder %v306, %v194
    %v323 = vsel %vm307, 1, 0
    %v324 = vsel %vm308, 1, 0
    %v325 = vsel %vm309, 1, 0
    %v326 = vsel %vm310, 1, 0
    %v327 = vsel %vm311, 1, 0
    %v328 = vsel %vm312, 1, 0
    %v329 = vsel %vm313, 1, 0
    %v330 = vsel %vm314, 1, 0
    %v331 = vsel %vm315, 1, 0
    %v332 = vsel %vm316, 1, 0
    %v333 = vsel %vm317, 1, 0
    %v334 = vsel %vm318, 1, 0
    %v335 = vsel %vm319, 1, 0
    %v336 = vsel %vm320, 1, 0
    %v337 = vsel %vm321, 1, 0
    %v338 = vsel %vm322, 1, 0
    %v339 = vcvt.s32.f32 %v323
    %v340 = vcvt.s32.f32 %v324
    %v341 = vcvt.s32.f32 %v325
    %v342 = vcvt.s32.f32 %v326
    %v343 = vcvt.s32.f32 %v327
    %v344 = vcvt.s32.f32 %v328
    %v345 = vcvt.s32.f32 %v329
    %v346 = vcvt.s32.f32 %v330
    %v347 = vcvt.s32.f32 %v331
    %v348 = vcvt.s32.f32 %v332
    %v349 = vcvt.s32.f32 %v333
    %v350 = vcvt.s32.f32 %v334
    %v351 = vcvt.s32.f32 %v335
    %v352 = vcvt.s32.f32 %v336
    %v353 = vcvt.s32.f32 %v337
    %v354 = vcvt.s32.f32 %v338
    %vm355 = vcmask 56320
    %v357 = vsel %vm355, %v339, 0
    %v360 = vsel %vm355, %v340, 0
    %v363 = vsel %vm355, %v341, 0
    %v366 = vsel %vm355, %v342, 0
    %v369 = vsel %vm355, %v343, 0
    %v372 = vsel %vm355, %v344, 0
    %v375 = vsel %vm355, %v345, 0
    %v378 = vsel %vm355, %v346, 0
    %v381 = vsel %vm355, %v347, 0
    %v384 = vsel %vm355, %v348, 0
    %v387 = vsel %vm355, %v349, 0
    %v390 = vsel %vm355, %v350, 0
    %v393 = vsel %vm355, %v351, 0
    %v396 = vsel %vm355, %v352, 0
    %v399 = vsel %vm355, %v353, 0
    %v402 = vsel %vm355, %v354, 0
    %vm404 = vcmask 1046528
    %v406 = vsel %vm404, %v73, 0
    %408 = vmatprep.subr.mxu0 0.0
    %409 = vmatpush1.msra.mxu0 0.0
    %410 = vmatprep.subr.mxu0 0.0
    %411 = vmatpush1.msra.mxu0 0.0
    %412 = vmatprep.subr.mxu0 0.0
    %413 = vmatpush1.msra.mxu0 0.0
    %414 = vmatprep.subr.mxu0 0.0
    %415 = vmatpush1.msra.mxu0 0.0
    %416 = vmatprep.subr.mxu0 0.0
    %417 = vmatpush1.msra.mxu0 0.0
    %418 = vmatprep.subr.mxu0 0.0
    %419 = vmatpush1.msra.mxu0 0.0
    %420 = vmatprep.subr.mxu0 0.0
    %421 = vmatpush1.msra.mxu0 0.0
    %422 = vmatprep.subr.mxu0 0.0
    %423 = vmatpush1.msra.mxu0 0.0
    %424 = vmatprep.subr.mxu0 0.0
    %425 = vmatpush1.msra.mxu0 0.0
    %426 = vmatprep.subr.mxu0 0.0
    %427 = vmatpush1.msra.mxu0 0.0
    %428 = vmatprep.subr.mxu0 0.0
    %429 = vmatpush1.msra.mxu0 0.0
    %430 = vmatprep.subr.mxu0 0.0
    %431 = vmatpush1.msra.mxu0 0.0
    %432 = vmatprep.subr.mxu0 0.0
    %433 = vmatpush1.msra.mxu0 0.0
    %434 = vmatprep.subr.mxu0 0.0
    %435 = vmatpush1.msra.mxu0 0.0
    %436 = vmatprep.subr.mxu0 0.0
    %437 = vmatpush1.msra.mxu0 0.0
    %438 = vmatprep.subr.mxu0 0.0
    %439 = vmatpush1.msra.mxu0 %v406
    %440 = vmatprep.subr.mxu0 0.0
    %441 = vmatpush2.msra.mxu0 0.0
    %442 = vmatprep.subr.mxu0 0.0
    %443 = vmatpush2.msra.mxu0 0.0
    %444 = vmatprep.subr.mxu0 0.0
    %445 = vmatpush2.msra.mxu0 0.0
    %446 = vmatprep.subr.mxu0 0.0
    %447 = vmatpush2.msra.mxu0 0.0
    %448 = vmatprep.subr.mxu0 0.0
    %449 = vmatpush2.msra.mxu0 0.0
    %450 = vmatprep.subr.mxu0 0.0
    %451 = vmatpush2.msra.mxu0 0.0
    %452 = vmatprep.subr.mxu0 0.0
    %453 = vmatpush2.msra.mxu0 0.0
    %454 = vmatprep.subr.mxu0 0.0
    %455 = vmatpush2.msra.mxu0 0.0
    %456 = vmatprep.subr.mxu0 0.0
    %457 = vmatpush2.msra.mxu0 0.0
    %458 = vmatprep.subr.mxu0 0.0
    %459 = vmatpush2.msra.mxu0 0.0
    %460 = vmatprep.subr.mxu0 0.0
    %461 = vmatpush2.msra.mxu0 0.0
    %462 = vmatprep.subr.mxu0 0.0
    %463 = vmatpush2.msra.mxu0 0.0
    %464 = vmatprep.subr.mxu0 0.0
    %465 = vmatpush2.msra.mxu0 0.0
    %466 = vmatprep.subr.mxu0 0.0
    %467 = vmatpush2.msra.mxu0 0.0
    %468 = vmatprep.subr.mxu0 0.0
    %469 = vmatpush2.msra.mxu0 0.0
    %470 = vmatprep.subr.mxu0 0.0
    %471 = vmatpush2.msra.mxu0 0.0
    %472 = vmatprep.mubr.f32.mxu0 0.0
    %473 = vmatmul.mubr.f32.gmra.mxu0 %v357
    %v474 = vpop.f32.mrf.mxu0
    %v475 = vadd.f32 0.0, %v474
    %v476 = vpop.f32.mrf.mxu0
    %477 = vmatprep.mubr.f32.mxu0 0.0
    %478 = vmatmul.mubr.f32.gmra.mxu0 %v360
    %v479 = vpop.f32.mrf.mxu0
    %v480 = vadd.f32 0.0, %v479
    %v481 = vpop.f32.mrf.mxu0
    %482 = vmatprep.mubr.f32.mxu0 0.0
    %483 = vmatmul.mubr.f32.gmra.mxu0 %v363
    %v484 = vpop.f32.mrf.mxu0
    %v485 = vadd.f32 0.0, %v484
    %v486 = vpop.f32.mrf.mxu0
    %487 = vmatprep.mubr.f32.mxu0 0.0
    %488 = vmatmul.mubr.f32.gmra.mxu0 %v366
    %v489 = vpop.f32.mrf.mxu0
    %v490 = vadd.f32 0.0, %v489
    %v491 = vpop.f32.mrf.mxu0
    %492 = vmatprep.mubr.f32.mxu0 0.0
    %493 = vmatmul.mubr.f32.gmra.mxu0 %v369
    %v494 = vpop.f32.mrf.mxu0
    %v495 = vadd.f32 0.0, %v494
    %v496 = vpop.f32.mrf.mxu0
    %497 = vmatprep.mubr.f32.mxu0 0.0
    %498 = vmatmul.mubr.f32.gmra.mxu0 %v372
    %v499 = vpop.f32.mrf.mxu0
    %v500 = vadd.f32 0.0, %v499
    %v501 = vpop.f32.mrf.mxu0
    %502 = vmatprep.mubr.f32.mxu0 0.0
    %503 = vmatmul.mubr.f32.gmra.mxu0 %v375
    %v504 = vpop.f32.mrf.mxu0
    %v505 = vadd.f32 0.0, %v504
    %v506 = vpop.f32.mrf.mxu0
    %507 = vmatprep.mubr.f32.mxu0 0.0
    %508 = vmatmul.mubr.f32.gmra.mxu0 %v378
    %v509 = vpop.f32.mrf.mxu0
    %v510 = vadd.f32 0.0, %v509
    %v511 = vpop.f32.mrf.mxu0
    %512 = vmatprep.mubr.f32.mxu0 0.0
    %513 = vmatmul.mubr.f32.gmra.mxu0 %v381
    %v514 = vpop.f32.mrf.mxu0
    %v515 = vadd.f32 0.0, %v514
    %v516 = vpop.f32.mrf.mxu0
    %517 = vmatprep.mubr.f32.mxu0 0.0
    %518 = vmatmul.mubr.f32.gmra.mxu0 %v384
    %v519 = vpop.f32.mrf.mxu0
    %v520 = vadd.f32 0.0, %v519
    %v521 = vpop.f32.mrf.mxu0
    %522 = vmatprep.mubr.f32.mxu0 0.0
    %523 = vmatmul.mubr.f32.gmra.mxu0 %v387
    %v524 = vpop.f32.mrf.mxu0
    %v525 = vadd.f32 0.0, %v524
    %v526 = vpop.f32.mrf.mxu0
    %527 = vmatprep.mubr.f32.mxu0 0.0
    %528 = vmatmul.mubr.f32.gmra.mxu0 %v390
    %v529 = vpop.f32.mrf.mxu0
    %v530 = vadd.f32 0.0, %v529
    %v531 = vpop.f32.mrf.mxu0
    %532 = vmatprep.mubr.f32.mxu0 0.0
    %533 = vmatmul.mubr.f32.gmra.mxu0 %v393
    %v534 = vpop.f32.mrf.mxu0
    %v535 = vadd.f32 0.0, %v534
    %v536 = vpop.f32.mrf.mxu0
    %537 = vmatprep.mubr.f32.mxu0 0.0
    %538 = vmatmul.mubr.f32.gmra.mxu0 %v396
    %v539 = vpop.f32.mrf.mxu0
    %v540 = vadd.f32 0.0, %v539
    %v541 = vpop.f32.mrf.mxu0
    %542 = vmatprep.mubr.f32.mxu0 0.0
    %543 = vmatmul.mubr.f32.gmra.mxu0 %v399
    %v544 = vpop.f32.mrf.mxu0
    %v545 = vadd.f32 0.0, %v544
    %v546 = vpop.f32.mrf.mxu0
    %547 = vmatprep.mubr.f32.mxu0 0.0
    %548 = vmatmul.mubr.f32.gmra.mxu0 %v402
    %v549 = vpop.f32.mrf.mxu0
    %v550 = vadd.f32 0.0, %v549
    %v551 = vpop.f32.mrf.mxu0
    %552 = vdwg.mxu0
    %v554 = vsel %vm404, %v75, 0
    %556 = vmatprep.subr.mxu0 0.0
    %557 = vmatpush1.msra.mxu0 0.0
    %558 = vmatprep.subr.mxu0 0.0
    %559 = vmatpush1.msra.mxu0 0.0
    %560 = vmatprep.subr.mxu0 0.0
    %561 = vmatpush1.msra.mxu0 0.0
    %562 = vmatprep.subr.mxu0 0.0
    %563 = vmatpush1.msra.mxu0 0.0
    %564 = vmatprep.subr.mxu0 0.0
    %565 = vmatpush1.msra.mxu0 0.0
    %566 = vmatprep.subr.mxu0 0.0
    %567 = vmatpush1.msra.mxu0 0.0
    %568 = vmatprep.subr.mxu0 0.0
    %569 = vmatpush1.msra.mxu0 0.0
    %570 = vmatprep.subr.mxu0 0.0
    %571 = vmatpush1.msra.mxu0 0.0
    %572 = vmatprep.subr.mxu0 0.0
    %573 = vmatpush1.msra.mxu0 0.0
    %574 = vmatprep.subr.mxu0 0.0
    %575 = vmatpush1.msra.mxu0 0.0
    %576 = vmatprep.subr.mxu0 0.0
    %577 = vmatpush1.msra.mxu0 0.0
    %578 = vmatprep.subr.mxu0 0.0
    %579 = vmatpush1.msra.mxu0 0.0
    %580 = vmatprep.subr.mxu0 0.0
    %581 = vmatpush1.msra.mxu0 0.0
    %582 = vmatprep.subr.mxu0 0.0
    %583 = vmatpush1.msra.mxu0 0.0
    %584 = vmatprep.subr.mxu0 0.0
    %585 = vmatpush1.msra.mxu0 0.0
    %586 = vmatprep.subr.mxu0 0.0
    %587 = vmatpush1.msra.mxu0 %v554
    %588 = vmatprep.subr.mxu0 0.0
    %589 = vmatpush2.msra.mxu0 0.0
    %590 = vmatprep.subr.mxu0 0.0
    %591 = vmatpush2.msra.mxu0 0.0
    %592 = vmatprep.subr.mxu0 0.0
    %593 = vmatpush2.msra.mxu0 0.0
    %594 = vmatprep.subr.mxu0 0.0
    %595 = vmatpush2.msra.mxu0 0.0
    %596 = vmatprep.subr.mxu0 0.0
    %597 = vmatpush2.msra.mxu0 0.0
    %598 = vmatprep.subr.mxu0 0.0
    %599 = vmatpush2.msra.mxu0 0.0
    %600 = vmatprep.subr.mxu0 0.0
    %601 = vmatpush2.msra.mxu0 0.0
    %602 = vmatprep.subr.mxu0 0.0
    %603 = vmatpush2.msra.mxu0 0.0
    %604 = vmatprep.subr.mxu0 0.0
    %605 = vmatpush2.msra.mxu0 0.0
    %606 = vmatprep.subr.mxu0 0.0
    %607 = vmatpush2.msra.mxu0 0.0
    %608 = vmatprep.subr.mxu0 0.0
    %609 = vmatpush2.msra.mxu0 0.0
    %610 = vmatprep.subr.mxu0 0.0
    %611 = vmatpush2.msra.mxu0 0.0
    %612 = vmatprep.subr.mxu0 0.0
    %613 = vmatpush2.msra.mxu0 0.0
    %614 = vmatprep.subr.mxu0 0.0
    %615 = vmatpush2.msra.mxu0 0.0
    %616 = vmatprep.subr.mxu0 0.0
    %617 = vmatpush2.msra.mxu0 0.0
    %618 = vmatprep.subr.mxu0 0.0
    %619 = vmatpush2.msra.mxu0 0.0
    %620 = vmatprep.mubr.f32.mxu0 0.0
    %621 = vmatmul.mubr.f32.gmra.mxu0 %v357
    %v622 = vpop.f32.mrf.mxu0
    %v623 = vadd.f32 0.0, %v622
    %v624 = vpop.f32.mrf.mxu0
    %625 = vmatprep.mubr.f32.mxu0 0.0
    %626 = vmatmul.mubr.f32.gmra.mxu0 %v360
    %v627 = vpop.f32.mrf.mxu0
    %v628 = vadd.f32 0.0, %v627
    %v629 = vpop.f32.mrf.mxu0
    %630 = vmatprep.mubr.f32.mxu0 0.0
    %631 = vmatmul.mubr.f32.gmra.mxu0 %v363
    %v632 = vpop.f32.mrf.mxu0
    %v633 = vadd.f32 0.0, %v632
    %v634 = vpop.f32.mrf.mxu0
    %635 = vmatprep.mubr.f32.mxu0 0.0
    %636 = vmatmul.mubr.f32.gmra.mxu0 %v366
    %v637 = vpop.f32.mrf.mxu0
    %v638 = vadd.f32 0.0, %v637
    %v639 = vpop.f32.mrf.mxu0
    %640 = vmatprep.mubr.f32.mxu0 0.0
    %641 = vmatmul.mubr.f32.gmra.mxu0 %v369
    %v642 = vpop.f32.mrf.mxu0
    %v643 = vadd.f32 0.0, %v642
    %v644 = vpop.f32.mrf.mxu0
    %645 = vmatprep.mubr.f32.mxu0 0.0
    %646 = vmatmul.mubr.f32.gmra.mxu0 %v372
    %v647 = vpop.f32.mrf.mxu0
    %v648 = vadd.f32 0.0, %v647
    %v649 = vpop.f32.mrf.mxu0
    %650 = vmatprep.mubr.f32.mxu0 0.0
    %651 = vmatmul.mubr.f32.gmra.mxu0 %v375
    %v652 = vpop.f32.mrf.mxu0
    %v653 = vadd.f32 0.0, %v652
    %v654 = vpop.f32.mrf.mxu0
    %655 = vmatprep.mubr.f32.mxu0 0.0
    %656 = vmatmul.mubr.f32.gmra.mxu0 %v378
    %v657 = vpop.f32.mrf.mxu0
    %v658 = vadd.f32 0.0, %v657
    %v659 = vpop.f32.mrf.mxu0
    %660 = vmatprep.mubr.f32.mxu0 0.0
    %661 = vmatmul.mubr.f32.gmra.mxu0 %v381
    %v662 = vpop.f32.mrf.mxu0
    %v663 = vadd.f32 0.0, %v662
    %v664 = vpop.f32.mrf.mxu0
    %665 = vmatprep.mubr.f32.mxu0 0.0
    %666 = vmatmul.mubr.f32.gmra.mxu0 %v384
    %v667 = vpop.f32.mrf.mxu0
    %v668 = vadd.f32 0.0, %v667
    %v669 = vpop.f32.mrf.mxu0
    %670 = vmatprep.mubr.f32.mxu0 0.0
    %671 = vmatmul.mubr.f32.gmra.mxu0 %v387
    %v672 = vpop.f32.mrf.mxu0
    %v673 = vadd.f32 0.0, %v672
    %v674 = vpop.f32.mrf.mxu0
    %675 = vmatprep.mubr.f32.mxu0 0.0
    %676 = vmatmul.mubr.f32.gmra.mxu0 %v390
    %v677 = vpop.f32.mrf.mxu0
    %v678 = vadd.f32 0.0, %v677
    %v679 = vpop.f32.mrf.mxu0
    %680 = vmatprep.mubr.f32.mxu0 0.0
    %681 = vmatmul.mubr.f32.gmra.mxu0 %v393
    %v682 = vpop.f32.mrf.mxu0
    %v683 = vadd.f32 0.0, %v682
    %v684 = vpop.f32.mrf.mxu0
    %685 = vmatprep.mubr.f32.mxu0 0.0
    %686 = vmatmul.mubr.f32.gmra.mxu0 %v396
    %v687 = vpop.f32.mrf.mxu0
    %v688 = vadd.f32 0.0, %v687
    %v689 = vpop.f32.mrf.mxu0
    %690 = vmatprep.mubr.f32.mxu0 0.0
    %691 = vmatmul.mubr.f32.gmra.mxu0 %v399
    %v692 = vpop.f32.mrf.mxu0
    %v693 = vadd.f32 0.0, %v692
    %v694 = vpop.f32.mrf.mxu0
    %695 = vmatprep.mubr.f32.mxu0 0.0
    %696 = vmatmul.mubr.f32.gmra.mxu0 %v402
    %v697 = vpop.f32.mrf.mxu0
    %v698 = vadd.f32 0.0, %v697
    %v699 = vpop.f32.mrf.mxu0
    %700 = vdwg.mxu0
    %702 = vrot.lane.b32.xlu0 %v177, 96
    %v703 = vpop.permute.xlu0 %702
    %vm704 = vcmask 64512
    %v706 = vsel %vm704, %v165, 0
    %v708 = vsel %vm704, %v703, 0
    %710 = vmatprep.subr.mxu0 0.0
    %711 = vmatpush1.xpose.msra.mxu0 0.0
    %712 = vmatprep.subr.mxu0 0.0
    %713 = vmatpush1.xpose.msra.mxu0 0.0
    %714 = vmatprep.subr.mxu0 0.0
    %715 = vmatpush1.xpose.msra.mxu0 0.0
    %716 = vmatprep.subr.mxu0 0.0
    %717 = vmatpush1.xpose.msra.mxu0 0.0
    %718 = vmatprep.subr.mxu0 0.0
    %719 = vmatpush1.xpose.msra.mxu0 0.0
    %720 = vmatprep.subr.mxu0 0.0
    %721 = vmatpush1.xpose.msra.mxu0 0.0
    %722 = vmatprep.subr.mxu0 0.0
    %723 = vmatpush1.xpose.msra.mxu0 0.0
    %724 = vmatprep.subr.mxu0 0.0
    %725 = vmatpush1.xpose.msra.mxu0 0.0
    %726 = vmatprep.subr.mxu0 0.0
    %727 = vmatpush1.xpose.msra.mxu0 0.0
    %728 = vmatprep.subr.mxu0 0.0
    %729 = vmatpush1.xpose.msra.mxu0 0.0
    %730 = vmatprep.subr.mxu0 0.0
    %731 = vmatpush1.xpose.msra.mxu0 0.0
    %732 = vmatprep.subr.mxu0 0.0
    %733 = vmatpush1.xpose.msra.mxu0 0.0
    %734 = vmatprep.subr.mxu0 0.0
    %735 = vmatpush1.xpose.msra.mxu0 0.0
    %736 = vmatprep.subr.mxu0 0.0
    %737 = vmatpush1.xpose.msra.mxu0 0.0
    %738 = vmatprep.subr.mxu0 0.0
    %739 = vmatpush1.xpose.msra.mxu0 0.0
    %740 = vmatprep.subr.mxu0 0.0
    %741 = vmatpush1.xpose.msra.mxu0 %v708
    %742 = vmatprep.subr.mxu0 0.0
    %743 = vmatpush2.xpose.msra.mxu0 0.0
    %744 = vmatprep.subr.mxu0 0.0
    %745 = vmatpush2.xpose.msra.mxu0 0.0
    %746 = vmatprep.subr.mxu0 0.0
    %747 = vmatpush2.xpose.msra.mxu0 0.0
    %748 = vmatprep.subr.mxu0 0.0
    %749 = vmatpush2.xpose.msra.mxu0 0.0
    %750 = vmatprep.subr.mxu0 0.0
    %751 = vmatpush2.xpose.msra.mxu0 0.0
    %752 = vmatprep.subr.mxu0 0.0
    %753 = vmatpush2.xpose.msra.mxu0 0.0
    %754 = vmatprep.subr.mxu0 0.0
    %755 = vmatpush2.xpose.msra.mxu0 0.0
    %756 = vmatprep.subr.mxu0 0.0
    %757 = vmatpush2.xpose.msra.mxu0 0.0
    %758 = vmatprep.subr.mxu0 0.0
    %759 = vmatpush2.xpose.msra.mxu0 0.0
    %760 = vmatprep.subr.mxu0 0.0
    %761 = vmatpush2.xpose.msra.mxu0 0.0
    %762 = vmatprep.subr.mxu0 0.0
    %763 = vmatpush2.xpose.msra.mxu0 0.0
    %764 = vmatprep.subr.mxu0 0.0
    %765 = vmatpush2.xpose.msra.mxu0 0.0
    %766 = vmatprep.subr.mxu0 0.0
    %767 = vmatpush2.xpose.msra.mxu0 0.0
    %768 = vmatprep.subr.mxu0 0.0
    %769 = vmatpush2.xpose.msra.mxu0 0.0
    %770 = vmatprep.subr.mxu0 0.0
    %771 = vmatpush2.xpose.msra.mxu0 0.0
    %772 = vmatprep.subr.mxu0 0.0
    %773 = vmatpush2.xpose.msra.mxu0 0.0
    %774 = vmatprep.mubr.f32.mxu0 0.0
    %775 = vmatmul.mubr.f32.gmra.mxu0 %v706
    %v776 = vpop.f32.mrf.mxu0
    %v777 = vadd.f32 0.0, %v776
    %v778 = vpop.f32.mrf.mxu0
    %779 = vdwg.mxu0
    %781 = vrot.lane.b32.xlu0 %v178, 96
    %v782 = vpop.permute.xlu0 %781
    %v784 = vsel %vm704, %v166, 0
    %v786 = vsel %vm704, %v782, 0
    %788 = vmatprep.subr.mxu0 0.0
    %789 = vmatpush1.xpose.msra.mxu0 0.0
    %790 = vmatprep.subr.mxu0 0.0
    %791 = vmatpush1.xpose.msra.mxu0 0.0
    %792 = vmatprep.subr.mxu0 0.0
    %793 = vmatpush1.xpose.msra.mxu0 0.0
    %794 = vmatprep.subr.mxu0 0.0
    %795 = vmatpush1.xpose.msra.mxu0 0.0
    %796 = vmatprep.subr.mxu0 0.0
    %797 = vmatpush1.xpose.msra.mxu0 0.0
    %798 = vmatprep.subr.mxu0 0.0
    %799 = vmatpush1.xpose.msra.mxu0 0.0
    %800 = vmatprep.subr.mxu0 0.0
    %801 = vmatpush1.xpose.msra.mxu0 0.0
    %802 = vmatprep.subr.mxu0 0.0
    %803 = vmatpush1.xpose.msra.mxu0 0.0
    %804 = vmatprep.subr.mxu0 0.0
    %805 = vmatpush1.xpose.msra.mxu0 0.0
    %806 = vmatprep.subr.mxu0 0.0
    %807 = vmatpush1.xpose.msra.mxu0 0.0
    %808 = vmatprep.subr.mxu0 0.0
    %809 = vmatpush1.xpose.msra.mxu0 0.0
    %810 = vmatprep.subr.mxu0 0.0
    %811 = vmatpush1.xpose.msra.mxu0 0.0
    %812 = vmatprep.subr.mxu0 0.0
    %813 = vmatpush1.xpose.msra.mxu0 0.0
    %814 = vmatprep.subr.mxu0 0.0
    %815 = vmatpush1.xpose.msra.mxu0 0.0
    %816 = vmatprep.subr.mxu0 0.0
    %817 = vmatpush1.xpose.msra.mxu0 0.0
    %818 = vmatprep.subr.mxu0 0.0
    %819 = vmatpush1.xpose.msra.mxu0 %v786
    %820 = vmatprep.subr.mxu0 0.0
    %821 = vmatpush2.xpose.msra.mxu0 0.0
    %822 = vmatprep.subr.mxu0 0.0
    %823 = vmatpush2.xpose.msra.mxu0 0.0
    %824 = vmatprep.subr.mxu0 0.0
    %825 = vmatpush2.xpose.msra.mxu0 0.0
    %826 = vmatprep.subr.mxu0 0.0
    %827 = vmatpush2.xpose.msra.mxu0 0.0
    %828 = vmatprep.subr.mxu0 0.0
    %829 = vmatpush2.xpose.msra.mxu0 0.0
    %830 = vmatprep.subr.mxu0 0.0
    %831 = vmatpush2.xpose.msra.mxu0 0.0
    %832 = vmatprep.subr.mxu0 0.0
    %833 = vmatpush2.xpose.msra.mxu0 0.0
    %834 = vmatprep.subr.mxu0 0.0
    %835 = vmatpush2.xpose.msra.mxu0 0.0
    %836 = vmatprep.subr.mxu0 0.0
    %837 = vmatpush2.xpose.msra.mxu0 0.0
    %838 = vmatprep.subr.mxu0 0.0
    %839 = vmatpush2.xpose.msra.mxu0 0.0
    %840 = vmatprep.subr.mxu0 0.0
    %841 = vmatpush2.xpose.msra.mxu0 0.0
    %842 = vmatprep.subr.mxu0 0.0
    %843 = vmatpush2.xpose.msra.mxu0 0.0
    %844 = vmatprep.subr.mxu0 0.0
    %845 = vmatpush2.xpose.msra.mxu0 0.0
    %846 = vmatprep.subr.mxu0 0.0
    %847 = vmatpush2.xpose.msra.mxu0 0.0
    %848 = vmatprep.subr.mxu0 0.0
    %849 = vmatpush2.xpose.msra.mxu0 0.0
    %850 = vmatprep.subr.mxu0 0.0
    %851 = vmatpush2.xpose.msra.mxu0 0.0
    %852 = vmatprep.mubr.f32.mxu0 0.0
    %853 = vmatmul.mubr.f32.gmra.mxu0 %v784
    %v854 = vpop.f32.mrf.mxu0
    %v855 = vadd.f32 0.0, %v854
    %v856 = vpop.f32.mrf.mxu0
    %857 = vdwg.mxu0
    %v858 = vmul.f32 %v777, 0.35355338
    %v859 = vmul.f32 %v855, 0.35355338
    %v860 = vcombine.high %v165, %v165
    %v862 = vunpack.c.l.s4 1966171168
    %v863 = vunpack.c.0.s8 %v862
    %v864 = vlaneseq
    %v865 = vshrl.u32 %v864, 7
    %v866 = vsub.s32 %v863, %v865
    %v867 = vrot.slane %v165, %v866
    %v869 = vunpack.c.l.s4 1966171168
    %v870 = vunpack.c.0.s8 %v869
    %v871 = vlaneseq
    %v872 = vshrl.u32 %v871, 7
    %v873 = vsub.s32 %v870, %v872
    %v874 = vrot.slane %v860, %v873
    %v875 = vcombine.high %v867, %v867
    %v876 = vcombine.high %v874, %v874
    %v878 = vunpack.c.l.s4 1966171168
    %v879 = vunpack.c.0.s8 %v878
    %v880 = vlaneseq
    %v881 = vshrl.u32 %v880, 7
    %v882 = vsub.s32 %v879, %v881
    %v883 = vrot.slane %v867, %v882
    %v885 = vunpack.c.l.s4 1966171168
    %v886 = vunpack.c.0.s8 %v885
    %v887 = vlaneseq
    %v888 = vshrl.u32 %v887, 7
    %v889 = vsub.s32 %v886, %v888
    %v890 = vrot.slane %v874, %v889
    %v892 = vunpack.c.l.s4 1966171168
    %v893 = vunpack.c.0.s8 %v892
    %v894 = vlaneseq
    %v895 = vshrl.u32 %v894, 7
    %v896 = vsub.s32 %v893, %v895
    %v897 = vrot.slane %v875, %v896
    %v899 = vunpack.c.l.s4 1966171168
    %v900 = vunpack.c.0.s8 %v899
    %v901 = vlaneseq
    %v902 = vshrl.u32 %v901, 7
    %v903 = vsub.s32 %v900, %v902
    %v904 = vrot.slane %v876, %v903
    %v905 = vcombine.high %v883, %v883
    %v906 = vcombine.high %v890, %v890
    %v907 = vcombine.high %v897, %v897
    %v908 = vcombine.high %v904, %v904
    %v909 = vcombine.high %v166, %v166
    %v911 = vunpack.c.l.s4 1966171168
    %v912 = vunpack.c.0.s8 %v911
    %v913 = vlaneseq
    %v914 = vshrl.u32 %v913, 7
    %v915 = vsub.s32 %v912, %v914
    %v916 = vrot.slane %v166, %v915
    %v918 = vunpack.c.l.s4 1966171168
    %v919 = vunpack.c.0.s8 %v918
    %v920 = vlaneseq
    %v921 = vshrl.u32 %v920, 7
    %v922 = vsub.s32 %v919, %v921
    %v923 = vrot.slane %v909, %v922
    %v924 = vcombine.high %v916, %v916
    %v925 = vcombine.high %v923, %v923
    %v927 = vunpack.c.l.s4 1966171168
    %v928 = vunpack.c.0.s8 %v927
    %v929 = vlaneseq
    %v930 = vshrl.u32 %v929, 7
    %v931 = vsub.s32 %v928, %v930
    %v932 = vrot.slane %v916, %v931
    %v934 = vunpack.c.l.s4 1966171168
    %v935 = vunpack.c.0.s8 %v934
    %v936 = vlaneseq
    %v937 = vshrl.u32 %v936, 7
    %v938 = vsub.s32 %v935, %v937
    %v939 = vrot.slane %v923, %v938
    %v941 = vunpack.c.l.s4 1966171168
    %v942 = vunpack.c.0.s8 %v941
    %v943 = vlaneseq
    %v944 = vshrl.u32 %v943, 7
    %v945 = vsub.s32 %v942, %v944
    %v946 = vrot.slane %v924, %v945
    %v948 = vunpack.c.l.s4 1966171168
    %v949 = vunpack.c.0.s8 %v948
    %v950 = vlaneseq
    %v951 = vshrl.u32 %v950, 7
    %v952 = vsub.s32 %v949, %v951
    %v953 = vrot.slane %v925, %v952
    %v954 = vcombine.high %v932, %v932
    %v955 = vcombine.high %v939, %v939
    %v956 = vcombine.high %v946, %v946
    %v957 = vcombine.high %v953, %v953
    %v958 = vlaneseq
    %v959 = vshrl.u32 %v958, 7
    %v960 = vsub.s32 0, %v959
    %v961 = vrot.slane %v883, %v960
    %v962 = vlaneseq
    %v963 = vshrl.u32 %v962, 7
    %v964 = vsub.s32 0, %v963
    %v965 = vrot.slane %v897, %v964
    %v966 = vlaneseq
    %v967 = vshrl.u32 %v966, 7
    %v968 = vsub.s32 0, %v967
    %v969 = vrot.slane %v905, %v968
    %v970 = vlaneseq
    %v971 = vshrl.u32 %v970, 7
    %v972 = vsub.s32 0, %v971
    %v973 = vrot.slane %v907, %v972
    %v974 = vlaneseq
    %v975 = vshrl.u32 %v974, 7
    %v976 = vsub.s32 0, %v975
    %v977 = vrot.slane %v890, %v976
    %v978 = vlaneseq
    %v979 = vshrl.u32 %v978, 7
    %v980 = vsub.s32 0, %v979
    %v981 = vrot.slane %v904, %v980
    %v982 = vlaneseq
    %v983 = vshrl.u32 %v982, 7
    %v984 = vsub.s32 0, %v983
    %v985 = vrot.slane %v906, %v984
    %v986 = vlaneseq
    %v987 = vshrl.u32 %v986, 7
    %v988 = vsub.s32 0, %v987
    %v989 = vrot.slane %v908, %v988
    %v990 = vlaneseq
    %v991 = vshrl.u32 %v990, 7
    %v992 = vsub.s32 0, %v991
    %v993 = vrot.slane %v932, %v992
    %v994 = vlaneseq
    %v995 = vshrl.u32 %v994, 7
    %v996 = vsub.s32 0, %v995
    %v997 = vrot.slane %v946, %v996
    %v998 = vlaneseq
    %v999 = vshrl.u32 %v998, 7
    %v1000 = vsub.s32 0, %v999
    %v1001 = vrot.slane %v954, %v1000
    %v1002 = vlaneseq
    %v1003 = vshrl.u32 %v1002, 7
    %v1004 = vsub.s32 0, %v1003
    %v1005 = vrot.slane %v956, %v1004
    %v1006 = vlaneseq
    %v1007 = vshrl.u32 %v1006, 7
    %v1008 = vsub.s32 0, %v1007
    %v1009 = vrot.slane %v939, %v1008
    %v1010 = vlaneseq
    %v1011 = vshrl.u32 %v1010, 7
    %v1012 = vsub.s32 0, %v1011
    %v1013 = vrot.slane %v953, %v1012
    %v1014 = vlaneseq
    %v1015 = vshrl.u32 %v1014, 7
    %v1016 = vsub.s32 0, %v1015
    %v1017 = vrot.slane %v955, %v1016
    %v1018 = vlaneseq
    %v1019 = vshrl.u32 %v1018, 7
    %v1020 = vsub.s32 0, %v1019
    %v1021 = vrot.slane %v957, %v1020
    %v1038 = vmul.f32 %v961, %v475
    %v1039 = vmul.f32 %v965, %v480
    %v1040 = vmul.f32 %v969, %v485
    %v1041 = vmul.f32 %v973, %v490
    %v1042 = vmul.f32 %v977, %v495
    %v1043 = vmul.f32 %v981, %v500
    %v1044 = vmul.f32 %v985, %v505
    %v1045 = vmul.f32 %v989, %v510
    %v1046 = vmul.f32 %v993, %v515
    %v1047 = vmul.f32 %v997, %v520
    %v1048 = vmul.f32 %v1001, %v525
    %v1049 = vmul.f32 %v1005, %v530
    %v1050 = vmul.f32 %v1009, %v535
    %v1051 = vmul.f32 %v1013, %v540
    %v1052 = vmul.f32 %v1017, %v545
    %v1053 = vmul.f32 %v1021, %v550
    %v1054 = vsel %vm704, %v1038, 0.0
    %1055 = vadd.xlane.f32.xlu0 %v1054
    %v1056 = vpop.xlane.xlu0 %1055
    %v1057 = vsel %vm704, %v1039, 0.0
    %1058 = vadd.xlane.f32.xlu0 %v1057
    %v1059 = vpop.xlane.xlu0 %1058
    %v1060 = vsel %vm704, %v1040, 0.0
    %1061 = vadd.xlane.f32.xlu0 %v1060
    %v1062 = vpop.xlane.xlu0 %1061
    %v1063 = vsel %vm704, %v1041, 0.0
    %1064 = vadd.xlane.f32.xlu0 %v1063
    %v1065 = vpop.xlane.xlu0 %1064
    %v1066 = vsel %vm704, %v1042, 0.0
    %1067 = vadd.xlane.f32.xlu0 %v1066
    %v1068 = vpop.xlane.xlu0 %1067
    %v1069 = vsel %vm704, %v1043, 0.0
    %1070 = vadd.xlane.f32.xlu0 %v1069
    %v1071 = vpop.xlane.xlu0 %1070
    %v1072 = vsel %vm704, %v1044, 0.0
    %1073 = vadd.xlane.f32.xlu0 %v1072
    %v1074 = vpop.xlane.xlu0 %1073
    %v1075 = vsel %vm704, %v1045, 0.0
    %1076 = vadd.xlane.f32.xlu0 %v1075
    %v1077 = vpop.xlane.xlu0 %1076
    %v1078 = vsel %vm704, %v1046, 0.0
    %1079 = vadd.xlane.f32.xlu0 %v1078
    %v1080 = vpop.xlane.xlu0 %1079
    %v1081 = vsel %vm704, %v1047, 0.0
    %1082 = vadd.xlane.f32.xlu0 %v1081
    %v1083 = vpop.xlane.xlu0 %1082
    %v1084 = vsel %vm704, %v1048, 0.0
    %1085 = vadd.xlane.f32.xlu0 %v1084
    %v1086 = vpop.xlane.xlu0 %1085
    %v1087 = vsel %vm704, %v1049, 0.0
    %1088 = vadd.xlane.f32.xlu0 %v1087
    %v1089 = vpop.xlane.xlu0 %1088
    %v1090 = vsel %vm704, %v1050, 0.0
    %1091 = vadd.xlane.f32.xlu0 %v1090
    %v1092 = vpop.xlane.xlu0 %1091
    %v1093 = vsel %vm704, %v1051, 0.0
    %1094 = vadd.xlane.f32.xlu0 %v1093
    %v1095 = vpop.xlane.xlu0 %1094
    %v1096 = vsel %vm704, %v1052, 0.0
    %1097 = vadd.xlane.f32.xlu0 %v1096
    %v1098 = vpop.xlane.xlu0 %1097
    %v1099 = vsel %vm704, %v1053, 0.0
    %1100 = vadd.xlane.f32.xlu0 %v1099
    %v1101 = vpop.xlane.xlu0 %1100
    %v1118 = vlaneseq
    %v1119 = vshrl.u32 %v1118, 7
    %v1120 = vsub.s32 %v194, %v1119
    %v1121 = vrot.slane %v1056, %v1120
    %v1122 = vlaneseq
    %v1123 = vshrl.u32 %v1122, 7
    %v1124 = vsub.s32 %v194, %v1123
    %v1125 = vrot.slane %v1059, %v1124
    %v1126 = vlaneseq
    %v1127 = vshrl.u32 %v1126, 7
    %v1128 = vsub.s32 %v194, %v1127
    %v1129 = vrot.slane %v1062, %v1128
    %v1130 = vlaneseq
    %v1131 = vshrl.u32 %v1130, 7
    %v1132 = vsub.s32 %v194, %v1131
    %v1133 = vrot.slane %v1065, %v1132
    %v1134 = vlaneseq
    %v1135 = vshrl.u32 %v1134, 7
    %v1136 = vsub.s32 %v194, %v1135
    %v1137 = vrot.slane %v1068, %v1136
    %v1138 = vlaneseq
    %v1139 = vshrl.u32 %v1138, 7
    %v1140 = vsub.s32 %v194, %v1139
    %v1141 = vrot.slane %v1071, %v1140
    %v1142 = vlaneseq
    %v1143 = vshrl.u32 %v1142, 7
    %v1144 = vsub.s32 %v194, %v1143
    %v1145 = vrot.slane %v1074, %v1144
    %v1146 = vlaneseq
    %v1147 = vshrl.u32 %v1146, 7
    %v1148 = vsub.s32 %v194, %v1147
    %v1149 = vrot.slane %v1077, %v1148
    %v1150 = vlaneseq
    %v1151 = vshrl.u32 %v1150, 7
    %v1152 = vsub.s32 %v194, %v1151
    %v1153 = vrot.slane %v1080, %v1152
    %v1154 = vlaneseq
    %v1155 = vshrl.u32 %v1154, 7
    %v1156 = vsub.s32 %v194, %v1155
    %v1157 = vrot.slane %v1083, %v1156
    %v1158 = vlaneseq
    %v1159 = vshrl.u32 %v1158, 7
    %v1160 = vsub.s32 %v194, %v1159
    %v1161 = vrot.slane %v1086, %v1160
    %v1162 = vlaneseq
    %v1163 = vshrl.u32 %v1162, 7
    %v1164 = vsub.s32 %v194, %v1163
    %v1165 = vrot.slane %v1089, %v1164
    %v1166 = vlaneseq
    %v1167 = vshrl.u32 %v1166, 7
    %v1168 = vsub.s32 %v194, %v1167
    %v1169 = vrot.slane %v1092, %v1168
    %v1170 = vlaneseq
    %v1171 = vshrl.u32 %v1170, 7
    %v1172 = vsub.s32 %v194, %v1171
    %v1173 = vrot.slane %v1095, %v1172
    %v1174 = vlaneseq
    %v1175 = vshrl.u32 %v1174, 7
    %v1176 = vsub.s32 %v194, %v1175
    %v1177 = vrot.slane %v1098, %v1176
    %v1178 = vlaneseq
    %v1179 = vshrl.u32 %v1178, 7
    %v1180 = vsub.s32 %v194, %v1179
    %v1181 = vrot.slane %v1101, %v1180
    %vm1182 = vcmask 1041409
    %v1183 = vsel %vm1182, %v1125, %v1121
    %vm1184 = vcmask 1042434
    %v1185 = vsel %vm1184, %v1129, %v1183
    %vm1186 = vcmask 1043459
    %v1187 = vsel %vm1186, %v1133, %v1185
    %vm1188 = vcmask 1044484
    %v1189 = vsel %vm1188, %v1137, %v1187
    %vm1190 = vcmask 1045509
    %v1191 = vsel %vm1190, %v1141, %v1189
    %vm1192 = vcmask 1046534
    %v1193 = vsel %vm1192, %v1145, %v1191
    %vm1194 = vcmask 1047559
    %v1195 = vsel %vm1194, %v1149, %v1193
    %v1196 = vsel %vm1182, %v1157, %v1153
    %v1197 = vsel %vm1184, %v1161, %v1196
    %v1198 = vsel %vm1186, %v1165, %v1197
    %v1199 = vsel %vm1188, %v1169, %v1198
    %v1200 = vsel %vm1190, %v1173, %v1199
    %v1201 = vsel %vm1192, %v1177, %v1200
    %v1202 = vsel %vm1194, %v1181, %v1201
    %v1205 = vadd.f32 %v858, %v1195
    %v1206 = vadd.f32 %v859, %v1202
    %v1209 = vlaneseq
    %v1210 = vshrl.u32 %v1209, 7
    %v1211 = vsub.s32 0, %v1210
    %v1212 = vrot.slane %v67, %v1211
    %v1213 = vlaneseq
    %v1214 = vshrl.u32 %v1213, 7
    %v1215 = vsub.s32 0, %v1214
    %v1216 = vrot.slane %v68, %v1215
    %v1219 = vadd.f32 %v1205, %v1212
    %v1220 = vadd.f32 %v1206, %v1216
    %v1221 = vsel %vm704, %v1219, -inf
    %1222 = vmax.xlane.f32.xlu0 %v1221
    %v1223 = vpop.xlane.xlu0 %1222
    %v1224 = vsel %vm704, %v1220, -inf
    %1225 = vmax.xlane.f32.xlu0 %v1224
    %v1226 = vpop.xlane.xlu0 %1225
    %v1227 = vsub.f32 %v1219, %v1223
    %v1228 = vsub.f32 %v1220, %v1226
    %v1229 = vmul.f32 %v1227, 1.442695
    %v1230 = vpow.pop %v1229
    %v1231 = vmul.f32 %v1228, 1.442695
    %v1232 = vpow.pop %v1231
    %v1233 = vsel %vm704, %v1230, 0.0
    %1234 = vadd.xlane.f32.xlu0 %v1233
    %v1235 = vpop.xlane.xlu0 %1234
    %v1236 = vsel %vm704, %v1232, 0.0
    %1237 = vadd.xlane.f32.xlu0 %v1236
    %v1238 = vpop.xlane.xlu0 %1237
    %v1239 = vrcp.pop %v1235
    %v1240 = vmul.f32 %v1230, %v1239
    %v1241 = vrcp.pop %v1238
    %v1242 = vmul.f32 %v1232, %v1241
    %1244 = vrot.lane.b32.xlu0 %v189, 64
    %v1245 = vpop.permute.xlu0 %1244
    %v1248 = vsel %vm704, %v1240, 0
    %1250 = vmatprep.subr.mxu0 0.0
    %1251 = vmatpush1.msra.mxu0 0.0
    %1252 = vmatprep.subr.mxu0 0.0
    %1253 = vmatpush1.msra.mxu0 0.0
    %1254 = vmatprep.subr.mxu0 0.0
    %1255 = vmatpush1.msra.mxu0 0.0
    %1256 = vmatprep.subr.mxu0 0.0
    %1257 = vmatpush1.msra.mxu0 0.0
    %1258 = vmatprep.subr.mxu0 0.0
    %1259 = vmatpush1.msra.mxu0 0.0
    %1260 = vmatprep.subr.mxu0 0.0
    %1261 = vmatpush1.msra.mxu0 0.0
    %1262 = vmatprep.subr.mxu0 0.0
    %1263 = vmatpush1.msra.mxu0 0.0
    %1264 = vmatprep.subr.mxu0 0.0
    %1265 = vmatpush1.msra.mxu0 0.0
    %1266 = vmatprep.subr.mxu0 0.0
    %1267 = vmatpush1.msra.mxu0 0.0
    %1268 = vmatprep.subr.mxu0 0.0
    %1269 = vmatpush1.msra.mxu0 0.0
    %1270 = vmatprep.subr.mxu0 0.0
    %1271 = vmatpush1.msra.mxu0 0.0
    %1272 = vmatprep.subr.mxu0 0.0
    %1273 = vmatpush1.msra.mxu0 0.0
    %1274 = vmatprep.subr.mxu0 0.0
    %1275 = vmatpush1.msra.mxu0 0.0
    %1276 = vmatprep.subr.mxu0 0.0
    %1277 = vmatpush1.msra.mxu0 0.0
    %1278 = vmatprep.subr.mxu0 0.0
    %1279 = vmatpush1.msra.mxu0 0.0
    %1280 = vmatprep.subr.mxu0 0.0
    %1281 = vmatpush1.msra.mxu0 %v1245
    %1282 = vmatprep.subr.mxu0 0.0
    %1283 = vmatpush2.msra.mxu0 0.0
    %1284 = vmatprep.subr.mxu0 0.0
    %1285 = vmatpush2.msra.mxu0 0.0
    %1286 = vmatprep.subr.mxu0 0.0
    %1287 = vmatpush2.msra.mxu0 0.0
    %1288 = vmatprep.subr.mxu0 0.0
    %1289 = vmatpush2.msra.mxu0 0.0
    %1290 = vmatprep.subr.mxu0 0.0
    %1291 = vmatpush2.msra.mxu0 0.0
    %1292 = vmatprep.subr.mxu0 0.0
    %1293 = vmatpush2.msra.mxu0 0.0
    %1294 = vmatprep.subr.mxu0 0.0
    %1295 = vmatpush2.msra.mxu0 0.0
    %1296 = vmatprep.subr.mxu0 0.0
    %1297 = vmatpush2.msra.mxu0 0.0
    %1298 = vmatprep.subr.mxu0 0.0
    %1299 = vmatpush2.msra.mxu0 0.0
    %1300 = vmatprep.subr.mxu0 0.0
    %1301 = vmatpush2.msra.mxu0 0.0
    %1302 = vmatprep.subr.mxu0 0.0
    %1303 = vmatpush2.msra.mxu0 0.0
    %1304 = vmatprep.subr.mxu0 0.0
    %1305 = vmatpush2.msra.mxu0 0.0
    %1306 = vmatprep.subr.mxu0 0.0
    %1307 = vmatpush2.msra.mxu0 0.0
    %1308 = vmatprep.subr.mxu0 0.0
    %1309 = vmatpush2.msra.mxu0 0.0
    %1310 = vmatprep.subr.mxu0 0.0
    %1311 = vmatpush2.msra.mxu0 0.0
    %1312 = vmatprep.subr.mxu0 0.0
    %1313 = vmatpush2.msra.mxu0 0.0
    %1314 = vmatprep.mubr.f32.mxu0 0.0
    %1315 = vmatmul.mubr.f32.gmra.mxu0 %v1248
    %v1316 = vpop.f32.mrf.mxu0
    %v1317 = vadd.f32 0.0, %v1316
    %v1318 = vpop.f32.mrf.mxu0
    %1319 = vdwg.mxu0
    %1321 = vrot.lane.b32.xlu0 %v190, 64
    %v1322 = vpop.permute.xlu0 %1321
    %v1325 = vsel %vm704, %v1242, 0
    %1327 = vmatprep.subr.mxu0 0.0
    %1328 = vmatpush1.msra.mxu0 0.0
    %1329 = vmatprep.subr.mxu0 0.0
    %1330 = vmatpush1.msra.mxu0 0.0
    %1331 = vmatprep.subr.mxu0 0.0
    %1332 = vmatpush1.msra.mxu0 0.0
    %1333 = vmatprep.subr.mxu0 0.0
    %1334 = vmatpush1.msra.mxu0 0.0
    %1335 = vmatprep.subr.mxu0 0.0
    %1336 = vmatpush1.msra.mxu0 0.0
    %1337 = vmatprep.subr.mxu0 0.0
    %1338 = vmatpush1.msra.mxu0 0.0
    %1339 = vmatprep.subr.mxu0 0.0
    %1340 = vmatpush1.msra.mxu0 0.0
    %1341 = vmatprep.subr.mxu0 0.0
    %1342 = vmatpush1.msra.mxu0 0.0
    %1343 = vmatprep.subr.mxu0 0.0
    %1344 = vmatpush1.msra.mxu0 0.0
    %1345 = vmatprep.subr.mxu0 0.0
    %1346 = vmatpush1.msra.mxu0 0.0
    %1347 = vmatprep.subr.mxu0 0.0
    %1348 = vmatpush1.msra.mxu0 0.0
    %1349 = vmatprep.subr.mxu0 0.0
    %1350 = vmatpush1.msra.mxu0 0.0
    %1351 = vmatprep.subr.mxu0 0.0
    %1352 = vmatpush1.msra.mxu0 0.0
    %1353 = vmatprep.subr.mxu0 0.0
    %1354 = vmatpush1.msra.mxu0 0.0
    %1355 = vmatprep.subr.mxu0 0.0
    %1356 = vmatpush1.msra.mxu0 0.0
    %1357 = vmatprep.subr.mxu0 0.0
    %1358 = vmatpush1.msra.mxu0 %v1322
    %1359 = vmatprep.subr.mxu0 0.0
    %1360 = vmatpush2.msra.mxu0 0.0
    %1361 = vmatprep.subr.mxu0 0.0
    %1362 = vmatpush2.msra.mxu0 0.0
    %1363 = vmatprep.subr.mxu0 0.0
    %1364 = vmatpush2.msra.mxu0 0.0
    %1365 = vmatprep.subr.mxu0 0.0
    %1366 = vmatpush2.msra.mxu0 0.0
    %1367 = vmatprep.subr.mxu0 0.0
    %1368 = vmatpush2.msra.mxu0 0.0
    %1369 = vmatprep.subr.mxu0 0.0
    %1370 = vmatpush2.msra.mxu0 0.0
    %1371 = vmatprep.subr.mxu0 0.0
    %1372 = vmatpush2.msra.mxu0 0.0
    %1373 = vmatprep.subr.mxu0 0.0
    %1374 = vmatpush2.msra.mxu0 0.0
    %1375 = vmatprep.subr.mxu0 0.0
    %1376 = vmatpush2.msra.mxu0 0.0
    %1377 = vmatprep.subr.mxu0 0.0
    %1378 = vmatpush2.msra.mxu0 0.0
    %1379 = vmatprep.subr.mxu0 0.0
    %1380 = vmatpush2.msra.mxu0 0.0
    %1381 = vmatprep.subr.mxu0 0.0
    %1382 = vmatpush2.msra.mxu0 0.0
    %1383 = vmatprep.subr.mxu0 0.0
    %1384 = vmatpush2.msra.mxu0 0.0
    %1385 = vmatprep.subr.mxu0 0.0
    %1386 = vmatpush2.msra.mxu0 0.0
    %1387 = vmatprep.subr.mxu0 0.0
    %1388 = vmatpush2.msra.mxu0 0.0
    %1389 = vmatprep.subr.mxu0 0.0
    %1390 = vmatpush2.msra.mxu0 0.0
    %1391 = vmatprep.mubr.f32.mxu0 0.0
    %1392 = vmatmul.mubr.f32.gmra.mxu0 %v1325
    %v1393 = vpop.f32.mrf.mxu0
    %v1394 = vadd.f32 0.0, %v1393
    %v1395 = vpop.f32.mrf.mxu0
    %1396 = vdwg.mxu0
    %v1397 = vlaneseq
    %v1398 = vshrl.u32 %v1397, 7
    %v1399 = vsub.s32 0, %v1398
    %v1400 = vrot.slane %v1240, %v1399
    %1402 = vbcast.lane.b32.xlu0 %v1400, 256
    %v1403 = vpop.permute.xlu0 %1402
    %v1404 = vlaneseq
    %v1405 = vshrl.u32 %v1404, 7
    %v1406 = vsub.s32 1, %v1405
    %v1407 = vrot.slane %v1240, %v1406
    %1409 = vbcast.lane.b32.xlu0 %v1407, 256
    %v1410 = vpop.permute.xlu0 %1409
    %v1411 = vlaneseq
    %v1412 = vshrl.u32 %v1411, 7
    %v1413 = vsub.s32 2, %v1412
    %v1414 = vrot.slane %v1240, %v1413
    %1416 = vbcast.lane.b32.xlu0 %v1414, 256
    %v1417 = vpop.permute.xlu0 %1416
    %v1418 = vlaneseq
    %v1419 = vshrl.u32 %v1418, 7
    %v1420 = vsub.s32 3, %v1419
    %v1421 = vrot.slane %v1240, %v1420
    %1423 = vbcast.lane.b32.xlu0 %v1421, 256
    %v1424 = vpop.permute.xlu0 %1423
    %v1425 = vlaneseq
    %v1426 = vshrl.u32 %v1425, 7
    %v1427 = vsub.s32 4, %v1426
    %v1428 = vrot.slane %v1240, %v1427
    %1430 = vbcast.lane.b32.xlu0 %v1428, 256
    %v1431 = vpop.permute.xlu0 %1430
    %v1432 = vlaneseq
    %v1433 = vshrl.u32 %v1432, 7
    %v1434 = vsub.s32 5, %v1433
    %v1435 = vrot.slane %v1240, %v1434
    %1437 = vbcast.lane.b32.xlu0 %v1435, 256
    %v1438 = vpop.permute.xlu0 %1437
    %v1439 = vlaneseq
    %v1440 = vshrl.u32 %v1439, 7
    %v1441 = vsub.s32 6, %v1440
    %v1442 = vrot.slane %v1240, %v1441
    %1444 = vbcast.lane.b32.xlu0 %v1442, 256
    %v1445 = vpop.permute.xlu0 %1444
    %v1446 = vlaneseq
    %v1447 = vshrl.u32 %v1446, 7
    %v1448 = vsub.s32 7, %v1447
    %v1449 = vrot.slane %v1240, %v1448
    %1451 = vbcast.lane.b32.xlu0 %v1449, 256
    %v1452 = vpop.permute.xlu0 %1451
    %v1453 = vlaneseq
    %v1454 = vshrl.u32 %v1453, 7
    %v1455 = vsub.s32 0, %v1454
    %v1456 = vrot.slane %v1242, %v1455
    %1458 = vbcast.lane.b32.xlu0 %v1456, 256
    %v1459 = vpop.permute.xlu0 %1458
    %v1460 = vlaneseq
    %v1461 = vshrl.u32 %v1460, 7
    %v1462 = vsub.s32 1, %v1461
    %v1463 = vrot.slane %v1242, %v1462
    %1465 = vbcast.lane.b32.xlu0 %v1463, 256
    %v1466 = vpop.permute.xlu0 %1465
    %v1467 = vlaneseq
    %v1468 = vshrl.u32 %v1467, 7
    %v1469 = vsub.s32 2, %v1468
    %v1470 = vrot.slane %v1242, %v1469
    %1472 = vbcast.lane.b32.xlu0 %v1470, 256
    %v1473 = vpop.permute.xlu0 %1472
    %v1474 = vlaneseq
    %v1475 = vshrl.u32 %v1474, 7
    %v1476 = vsub.s32 3, %v1475
    %v1477 = vrot.slane %v1242, %v1476
    %1479 = vbcast.lane.b32.xlu0 %v1477, 256
    %v1480 = vpop.permute.xlu0 %1479
    %v1481 = vlaneseq
    %v1482 = vshrl.u32 %v1481, 7
    %v1483 = vsub.s32 4, %v1482
    %v1484 = vrot.slane %v1242, %v1483
    %1486 = vbcast.lane.b32.xlu0 %v1484, 256
    %v1487 = vpop.permute.xlu0 %1486
    %v1488 = vlaneseq
    %v1489 = vshrl.u32 %v1488, 7
    %v1490 = vsub.s32 5, %v1489
    %v1491 = vrot.slane %v1242, %v1490
    %1493 = vbcast.lane.b32.xlu0 %v1491, 256
    %v1494 = vpop.permute.xlu0 %1493
    %v1495 = vlaneseq
    %v1496 = vshrl.u32 %v1495, 7
    %v1497 = vsub.s32 6, %v1496
    %v1498 = vrot.slane %v1242, %v1497
    %1500 = vbcast.lane.b32.xlu0 %v1498, 256
    %v1501 = vpop.permute.xlu0 %1500
    %v1502 = vlaneseq
    %v1503 = vshrl.u32 %v1502, 7
    %v1504 = vsub.s32 7, %v1503
    %v1505 = vrot.slane %v1242, %v1504
    %1507 = vbcast.lane.b32.xlu0 %v1505, 256
    %v1508 = vpop.permute.xlu0 %1507
    %v1509 = vmul.f32 %v1403, %v623
    %v1510 = vmul.f32 %v1410, %v628
    %v1511 = vmul.f32 %v1417, %v633
    %v1512 = vmul.f32 %v1424, %v638
    %v1513 = vmul.f32 %v1431, %v643
    %v1514 = vmul.f32 %v1438, %v648
    %v1515 = vmul.f32 %v1445, %v653
    %v1516 = vmul.f32 %v1452, %v658
    %v1517 = vmul.f32 %v1459, %v663
    %v1518 = vmul.f32 %v1466, %v668
    %v1519 = vmul.f32 %v1473, %v673
    %v1520 = vmul.f32 %v1480, %v678
    %v1521 = vmul.f32 %v1487, %v683
    %v1522 = vmul.f32 %v1494, %v688
    %v1523 = vmul.f32 %v1501, %v693
    %v1524 = vmul.f32 %v1508, %v698
    %v1525 = vsel %vm704, %v1509, 0.0
    %v1526 = vrot.slane %v1525, 4
    %v1527 = vadd.f32 %v1525, %v1526
    %v1528 = vrot.slane %v1527, 2
    %v1529 = vadd.f32 %v1527, %v1528
    %v1530 = vrot.slane %v1529, 1
    %v1531 = vadd.f32 %v1529, %v1530
    %v1532 = vsel %vm704, %v1510, 0.0
    %v1533 = vrot.slane %v1532, 4
    %v1534 = vadd.f32 %v1532, %v1533
    %v1535 = vrot.slane %v1534, 2
    %v1536 = vadd.f32 %v1534, %v1535
    %v1537 = vrot.slane %v1536, 1
    %v1538 = vadd.f32 %v1536, %v1537
    %v1539 = vsel %vm704, %v1511, 0.0
    %v1540 = vrot.slane %v1539, 4
    %v1541 = vadd.f32 %v1539, %v1540
    %v1542 = vrot.slane %v1541, 2
    %v1543 = vadd.f32 %v1541, %v1542
    %v1544 = vrot.slane %v1543, 1
    %v1545 = vadd.f32 %v1543, %v1544
    %v1546 = vsel %vm704, %v1512, 0.0
    %v1547 = vrot.slane %v1546, 4
    %v1548 = vadd.f32 %v1546, %v1547
    %v1549 = vrot.slane %v1548, 2
    %v1550 = vadd.f32 %v1548, %v1549
    %v1551 = vrot.slane %v1550, 1
    %v1552 = vadd.f32 %v1550, %v1551
    %v1553 = vsel %vm704, %v1513, 0.0
    %v1554 = vrot.slane %v1553, 4
    %v1555 = vadd.f32 %v1553, %v1554
    %v1556 = vrot.slane %v1555, 2
    %v1557 = vadd.f32 %v1555, %v1556
    %v1558 = vrot.slane %v1557, 1
    %v1559 = vadd.f32 %v1557, %v1558
    %v1560 = vsel %vm704, %v1514, 0.0
    %v1561 = vrot.slane %v1560, 4
    %v1562 = vadd.f32 %v1560, %v1561
    %v1563 = vrot.slane %v1562, 2
    %v1564 = vadd.f32 %v1562, %v1563
    %v1565 = vrot.slane %v1564, 1
    %v1566 = vadd.f32 %v1564, %v1565
    %v1567 = vsel %vm704, %v1515, 0.0
    %v1568 = vrot.slane %v1567, 4
    %v1569 = vadd.f32 %v1567, %v1568
    %v1570 = vrot.slane %v1569, 2
    %v1571 = vadd.f32 %v1569, %v1570
    %v1572 = vrot.slane %v1571, 1
    %v1573 = vadd.f32 %v1571, %v1572
    %v1574 = vsel %vm704, %v1516, 0.0
    %v1575 = vrot.slane %v1574, 4
    %v1576 = vadd.f32 %v1574, %v1575
    %v1577 = vrot.slane %v1576, 2
    %v1578 = vadd.f32 %v1576, %v1577
    %v1579 = vrot.slane %v1578, 1
    %v1580 = vadd.f32 %v1578, %v1579
    %v1581 = vsel %vm704, %v1517, 0.0
    %v1582 = vrot.slane %v1581, 4
    %v1583 = vadd.f32 %v1581, %v1582
    %v1584 = vrot.slane %v1583, 2
    %v1585 = vadd.f32 %v1583, %v1584
    %v1586 = vrot.slane %v1585, 1
    %v1587 = vadd.f32 %v1585, %v1586
    %v1588 = vsel %vm704, %v1518, 0.0
    %v1589 = vrot.slane %v1588, 4
    %v1590 = vadd.f32 %v1588, %v1589
    %v1591 = vrot.slane %v1590, 2
    %v1592 = vadd.f32 %v1590, %v1591
    %v1593 = vrot.slane %v1592, 1
    %v1594 = vadd.f32 %v1592, %v1593
    %v1595 = vsel %vm704, %v1519, 0.0
    %v1596 = vrot.slane %v1595, 4
    %v1597 = vadd.f32 %v1595, %v1596
    %v1598 = vrot.slane %v1597, 2
    %v1599 = vadd.f32 %v1597, %v1598
    %v1600 = vrot.slane %v1599, 1
    %v1601 = vadd.f32 %v1599, %v1600
    %v1602 = vsel %vm704, %v1520, 0.0
    %v1603 = vrot.slane %v1602, 4
    %v1604 = vadd.f32 %v1602, %v1603
    %v1605 = vrot.slane %v1604, 2
    %v1606 = vadd.f32 %v1604, %v1605
    %v1607 = vrot.slane %v1606, 1
    %v1608 = vadd.f32 %v1606, %v1607
    %v1609 = vsel %vm704, %v1521, 0.0
    %v1610 = vrot.slane %v1609, 4
    %v1611 = vadd.f32 %v1609, %v1610
    %v1612 = vrot.slane %v1611, 2
    %v1613 = vadd.f32 %v1611, %v1612
    %v1614 = vrot.slane %v1613, 1
    %v1615 = vadd.f32 %v1613, %v1614
    %v1616 = vsel %vm704, %v1522, 0.0
    %v1617 = vrot.slane %v1616, 4
    %v1618 = vadd.f32 %v1616, %v1617
    %v1619 = vrot.slane %v1618, 2
    %v1620 = vadd.f32 %v1618, %v1619
    %v1621 = vrot.slane %v1620, 1
    %v1622 = vadd.f32 %v1620, %v1621
    %v1623 = vsel %vm704, %v1523, 0.0
    %v1624 = vrot.slane %v1623, 4
    %v1625 = vadd.f32 %v1623, %v1624
    %v1626 = vrot.slane %v1625, 2
    %v1627 = vadd.f32 %v1625, %v1626
    %v1628 = vrot.slane %v1627, 1
    %v1629 = vadd.f32 %v1627, %v1628
    %v1630 = vsel %vm704, %v1524, 0.0
    %v1631 = vrot.slane %v1630, 4
    %v1632 = vadd.f32 %v1630, %v1631
    %v1633 = vrot.slane %v1632, 2
    %v1634 = vadd.f32 %v1632, %v1633
    %v1635 = vrot.slane %v1634, 1
    %v1636 = vadd.f32 %v1634, %v1635
    %v1653 = vsel %vm1182, %v1538, %v1531
    %v1654 = vsel %vm1184, %v1545, %v1653
    %v1655 = vsel %vm1186, %v1552, %v1654
    %v1656 = vsel %vm1188, %v1559, %v1655
    %v1657 = vsel %vm1190, %v1566, %v1656
    %v1658 = vsel %vm1192, %v1573, %v1657
    %v1659 = vsel %vm1194, %v1580, %v1658
    %v1660 = vsel %vm1182, %v1594, %v1587
    %v1661 = vsel %vm1184, %v1601, %v1660
    %v1662 = vsel %vm1186, %v1608, %v1661
    %v1663 = vsel %vm1188, %v1615, %v1662
    %v1664 = vsel %vm1190, %v1622, %v1663
    %v1665 = vsel %vm1192, %v1629, %v1664
    %v1666 = vsel %vm1194, %v1636, %v1665
    %v1669 = vadd.f32 %v1317, %v1659
    %v1670 = vadd.f32 %v1394, %v1666
    %1671 = vrot.lane.b32.xlu0 %v165, 120
    %v1672 = vpop.permute.xlu0 %1671
    %1673 = vrot.lane.b32.xlu0 %v177, 88
    %v1674 = vpop.permute.xlu0 %1673
    %v1675 = vsel %vm704, %v1672, 0
    %v1677 = vsel %vm704, %v1674, 0
    %1679 = vmatprep.subr.mxu0 0.0
    %1680 = vmatpush1.xpose.msra.mxu0 0.0
    %1681 = vmatprep.subr.mxu0 0.0
    %1682 = vmatpush1.xpose.msra.mxu0 0.0
    %1683 = vmatprep.subr.mxu0 0.0
    %1684 = vmatpush1.xpose.msra.mxu0 0.0
    %1685 = vmatprep.subr.mxu0 0.0
    %1686 = vmatpush1.xpose.msra.mxu0 0.0
    %1687 = vmatprep.subr.mxu0 0.0
    %1688 = vmatpush1.xpose.msra.mxu0 0.0
    %1689 = vmatprep.subr.mxu0 0.0
    %1690 = vmatpush1.xpose.msra.mxu0 0.0
    %1691 = vmatprep.subr.mxu0 0.0
    %1692 = vmatpush1.xpose.msra.mxu0 0.0
    %1693 = vmatprep.subr.mxu0 0.0
    %1694 = vmatpush1.xpose.msra.mxu0 0.0
    %1695 = vmatprep.subr.mxu0 0.0
    %1696 = vmatpush1.xpose.msra.mxu0 0.0
    %1697 = vmatprep.subr.mxu0 0.0
    %1698 = vmatpush1.xpose.msra.mxu0 0.0
    %1699 = vmatprep.subr.mxu0 0.0
    %1700 = vmatpush1.xpose.msra.mxu0 0.0
    %1701 = vmatprep.subr.mxu0 0.0
    %1702 = vmatpush1.xpose.msra.mxu0 0.0
    %1703 = vmatprep.subr.mxu0 0.0
    %1704 = vmatpush1.xpose.msra.mxu0 0.0
    %1705 = vmatprep.subr.mxu0 0.0
    %1706 = vmatpush1.xpose.msra.mxu0 0.0
    %1707 = vmatprep.subr.mxu0 0.0
    %1708 = vmatpush1.xpose.msra.mxu0 0.0
    %1709 = vmatprep.subr.mxu0 0.0
    %1710 = vmatpush1.xpose.msra.mxu0 %v1677
    %1711 = vmatprep.subr.mxu0 0.0
    %1712 = vmatpush2.xpose.msra.mxu0 0.0
    %1713 = vmatprep.subr.mxu0 0.0
    %1714 = vmatpush2.xpose.msra.mxu0 0.0
    %1715 = vmatprep.subr.mxu0 0.0
    %1716 = vmatpush2.xpose.msra.mxu0 0.0
    %1717 = vmatprep.subr.mxu0 0.0
    %1718 = vmatpush2.xpose.msra.mxu0 0.0
    %1719 = vmatprep.subr.mxu0 0.0
    %1720 = vmatpush2.xpose.msra.mxu0 0.0
    %1721 = vmatprep.subr.mxu0 0.0
    %1722 = vmatpush2.xpose.msra.mxu0 0.0
    %1723 = vmatprep.subr.mxu0 0.0
    %1724 = vmatpush2.xpose.msra.mxu0 0.0
    %1725 = vmatprep.subr.mxu0 0.0
    %1726 = vmatpush2.xpose.msra.mxu0 0.0
    %1727 = vmatprep.subr.mxu0 0.0
    %1728 = vmatpush2.xpose.msra.mxu0 0.0
    %1729 = vmatprep.subr.mxu0 0.0
    %1730 = vmatpush2.xpose.msra.mxu0 0.0
    %1731 = vmatprep.subr.mxu0 0.0
    %1732 = vmatpush2.xpose.msra.mxu0 0.0
    %1733 = vmatprep.subr.mxu0 0.0
    %1734 = vmatpush2.xpose.msra.mxu0 0.0
    %1735 = vmatprep.subr.mxu0 0.0
    %1736 = vmatpush2.xpose.msra.mxu0 0.0
    %1737 = vmatprep.subr.mxu0 0.0
    %1738 = vmatpush2.xpose.msra.mxu0 0.0
    %1739 = vmatprep.subr.mxu0 0.0
    %1740 = vmatpush2.xpose.msra.mxu0 0.0
    %1741 = vmatprep.subr.mxu0 0.0
    %1742 = vmatpush2.xpose.msra.mxu0 0.0
    %1743 = vmatprep.mubr.f32.mxu0 0.0
    %1744 = vmatmul.mubr.f32.gmra.mxu0 %v1675
    %v1745 = vpop.f32.mrf.mxu0
    %v1746 = vadd.f32 0.0, %v1745
    %v1747 = vpop.f32.mrf.mxu0
    %1748 = vdwg.mxu0
    %1749 = vrot.lane.b32.xlu0 %v166, 120
    %v1750 = vpop.permute.xlu0 %1749
    %1751 = vrot.lane.b32.xlu0 %v178, 88
    %v1752 = vpop.permute.xlu0 %1751
    %v1753 = vsel %vm704, %v1750, 0
    %v1755 = vsel %vm704, %v1752, 0
    %1757 = vmatprep.subr.mxu0 0.0
    %1758 = vmatpush1.xpose.msra.mxu0 0.0
    %1759 = vmatprep.subr.mxu0 0.0
    %1760 = vmatpush1.xpose.msra.mxu0 0.0
    %1761 = vmatprep.subr.mxu0 0.0
    %1762 = vmatpush1.xpose.msra.mxu0 0.0
    %1763 = vmatprep.subr.mxu0 0.0
    %1764 = vmatpush1.xpose.msra.mxu0 0.0
    %1765 = vmatprep.subr.mxu0 0.0
    %1766 = vmatpush1.xpose.msra.mxu0 0.0
    %1767 = vmatprep.subr.mxu0 0.0
    %1768 = vmatpush1.xpose.msra.mxu0 0.0
    %1769 = vmatprep.subr.mxu0 0.0
    %1770 = vmatpush1.xpose.msra.mxu0 0.0
    %1771 = vmatprep.subr.mxu0 0.0
    %1772 = vmatpush1.xpose.msra.mxu0 0.0
    %1773 = vmatprep.subr.mxu0 0.0
    %1774 = vmatpush1.xpose.msra.mxu0 0.0
    %1775 = vmatprep.subr.mxu0 0.0
    %1776 = vmatpush1.xpose.msra.mxu0 0.0
    %1777 = vmatprep.subr.mxu0 0.0
    %1778 = vmatpush1.xpose.msra.mxu0 0.0
    %1779 = vmatprep.subr.mxu0 0.0
    %1780 = vmatpush1.xpose.msra.mxu0 0.0
    %1781 = vmatprep.subr.mxu0 0.0
    %1782 = vmatpush1.xpose.msra.mxu0 0.0
    %1783 = vmatprep.subr.mxu0 0.0
    %1784 = vmatpush1.xpose.msra.mxu0 0.0
    %1785 = vmatprep.subr.mxu0 0.0
    %1786 = vmatpush1.xpose.msra.mxu0 0.0
    %1787 = vmatprep.subr.mxu0 0.0
    %1788 = vmatpush1.xpose.msra.mxu0 %v1755
    %1789 = vmatprep.subr.mxu0 0.0
    %1790 = vmatpush2.xpose.msra.mxu0 0.0
    %1791 = vmatprep.subr.mxu0 0.0
    %1792 = vmatpush2.xpose.msra.mxu0 0.0
    %1793 = vmatprep.subr.mxu0 0.0
    %1794 = vmatpush2.xpose.msra.mxu0 0.0
    %1795 = vmatprep.subr.mxu0 0.0
    %1796 = vmatpush2.xpose.msra.mxu0 0.0
    %1797 = vmatprep.subr.mxu0 0.0
    %1798 = vmatpush2.xpose.msra.mxu0 0.0
    %1799 = vmatprep.subr.mxu0 0.0
    %1800 = vmatpush2.xpose.msra.mxu0 0.0
    %1801 = vmatprep.subr.mxu0 0.0
    %1802 = vmatpush2.xpose.msra.mxu0 0.0
    %1803 = vmatprep.subr.mxu0 0.0
    %1804 = vmatpush2.xpose.msra.mxu0 0.0
    %1805 = vmatprep.subr.mxu0 0.0
    %1806 = vmatpush2.xpose.msra.mxu0 0.0
    %1807 = vmatprep.subr.mxu0 0.0
    %1808 = vmatpush2.xpose.msra.mxu0 0.0
    %1809 = vmatprep.subr.mxu0 0.0
    %1810 = vmatpush2.xpose.msra.mxu0 0.0
    %1811 = vmatprep.subr.mxu0 0.0
    %1812 = vmatpush2.xpose.msra.mxu0 0.0
    %1813 = vmatprep.subr.mxu0 0.0
    %1814 = vmatpush2.xpose.msra.mxu0 0.0
    %1815 = vmatprep.subr.mxu0 0.0
    %1816 = vmatpush2.xpose.msra.mxu0 0.0
    %1817 = vmatprep.subr.mxu0 0.0
    %1818 = vmatpush2.xpose.msra.mxu0 0.0
    %1819 = vmatprep.subr.mxu0 0.0
    %1820 = vmatpush2.xpose.msra.mxu0 0.0
    %1821 = vmatprep.mubr.f32.mxu0 0.0
    %1822 = vmatmul.mubr.f32.gmra.mxu0 %v1753
    %v1823 = vpop.f32.mrf.mxu0
    %v1824 = vadd.f32 0.0, %v1823
    %v1825 = vpop.f32.mrf.mxu0
    %1826 = vdwg.mxu0
    %v1827 = vmul.f32 %v1746, 0.35355338
    %v1828 = vmul.f32 %v1824, 0.35355338
    %1845 = vrot.lane.b32.xlu0 %v475, 8
    %v1846 = vpop.permute.xlu0 %1845
    %1847 = vrot.lane.b32.xlu0 %v480, 8
    %v1848 = vpop.permute.xlu0 %1847
    %1849 = vrot.lane.b32.xlu0 %v485, 8
    %v1850 = vpop.permute.xlu0 %1849
    %1851 = vrot.lane.b32.xlu0 %v490, 8
    %v1852 = vpop.permute.xlu0 %1851
    %1853 = vrot.lane.b32.xlu0 %v495, 8
    %v1854 = vpop.permute.xlu0 %1853
    %1855 = vrot.lane.b32.xlu0 %v500, 8
    %v1856 = vpop.permute.xlu0 %1855
    %1857 = vrot.lane.b32.xlu0 %v505, 8
    %v1858 = vpop.permute.xlu0 %1857
    %1859 = vrot.lane.b32.xlu0 %v510, 8
    %v1860 = vpop.permute.xlu0 %1859
    %1861 = vrot.lane.b32.xlu0 %v515, 8
    %v1862 = vpop.permute.xlu0 %1861
    %1863 = vrot.lane.b32.xlu0 %v520, 8
    %v1864 = vpop.permute.xlu0 %1863
    %1865 = vrot.lane.b32.xlu0 %v525, 8
    %v1866 = vpop.permute.xlu0 %1865
    %1867 = vrot.lane.b32.xlu0 %v530, 8
    %v1868 = vpop.permute.xlu0 %1867
    %1869 = vrot.lane.b32.xlu0 %v535, 8
    %v1870 = vpop.permute.xlu0 %1869
    %1871 = vrot.lane.b32.xlu0 %v540, 8
    %v1872 = vpop.permute.xlu0 %1871
    %1873 = vrot.lane.b32.xlu0 %v545, 8
    %v1874 = vpop.permute.xlu0 %1873
    %1875 = vrot.lane.b32.xlu0 %v550, 8
    %v1876 = vpop.permute.xlu0 %1875
    %v1893 = vmul.f32 %v961, %v1846
    %v1894 = vmul.f32 %v965, %v1848
    %v1895 = vmul.f32 %v969, %v1850
    %v1896 = vmul.f32 %v973, %v1852
    %v1897 = vmul.f32 %v977, %v1854
    %v1898 = vmul.f32 %v981, %v1856
    %v1899 = vmul.f32 %v985, %v1858
    %v1900 = vmul.f32 %v989, %v1860
    %v1901 = vmul.f32 %v993, %v1862
    %v1902 = vmul.f32 %v997, %v1864
    %v1903 = vmul.f32 %v1001, %v1866
    %v1904 = vmul.f32 %v1005, %v1868
    %v1905 = vmul.f32 %v1009, %v1870
    %v1906 = vmul.f32 %v1013, %v1872
    %v1907 = vmul.f32 %v1017, %v1874
    %v1908 = vmul.f32 %v1021, %v1876
    %1925 = vrot.lane.b32.xlu0 %v1893, 120
    %v1926 = vpop.permute.xlu0 %1925
    %1927 = vrot.lane.b32.xlu0 %v1894, 120
    %v1928 = vpop.permute.xlu0 %1927
    %1929 = vrot.lane.b32.xlu0 %v1895, 120
    %v1930 = vpop.permute.xlu0 %1929
    %1931 = vrot.lane.b32.xlu0 %v1896, 120
    %v1932 = vpop.permute.xlu0 %1931
    %1933 = vrot.lane.b32.xlu0 %v1897, 120
    %v1934 = vpop.permute.xlu0 %1933
    %1935 = vrot.lane.b32.xlu0 %v1898, 120
    %v1936 = vpop.permute.xlu0 %1935
    %1937 = vrot.lane.b32.xlu0 %v1899, 120
    %v1938 = vpop.permute.xlu0 %1937
    %1939 = vrot.lane.b32.xlu0 %v1900, 120
    %v1940 = vpop.permute.xlu0 %1939
    %1941 = vrot.lane.b32.xlu0 %v1901, 120
    %v1942 = vpop.permute.xlu0 %1941
    %1943 = vrot.lane.b32.xlu0 %v1902, 120
    %v1944 = vpop.permute.xlu0 %1943
    %1945 = vrot.lane.b32.xlu0 %v1903, 120
    %v1946 = vpop.permute.xlu0 %1945
    %1947 = vrot.lane.b32.xlu0 %v1904, 120
    %v1948 = vpop.permute.xlu0 %1947
    %1949 = vrot.lane.b32.xlu0 %v1905, 120
    %v1950 = vpop.permute.xlu0 %1949
    %1951 = vrot.lane.b32.xlu0 %v1906, 120
    %v1952 = vpop.permute.xlu0 %1951
    %1953 = vrot.lane.b32.xlu0 %v1907, 120
    %v1954 = vpop.permute.xlu0 %1953
    %1955 = vrot.lane.b32.xlu0 %v1908, 120
    %v1956 = vpop.permute.xlu0 %1955
    %v1973 = vsel %vm704, %v1926, 0.0
    %1974 = vadd.xlane.f32.xlu0 %v1973
    %v1975 = vpop.xlane.xlu0 %1974
    %v1976 = vsel %vm704, %v1928, 0.0
    %1977 = vadd.xlane.f32.xlu0 %v1976
    %v1978 = vpop.xlane.xlu0 %1977
    %v1979 = vsel %vm704, %v1930, 0.0
    %1980 = vadd.xlane.f32.xlu0 %v1979
    %v1981 = vpop.xlane.xlu0 %1980
    %v1982 = vsel %vm704, %v1932, 0.0
    %1983 = vadd.xlane.f32.xlu0 %v1982
    %v1984 = vpop.xlane.xlu0 %1983
    %v1985 = vsel %vm704, %v1934, 0.0
    %1986 = vadd.xlane.f32.xlu0 %v1985
    %v1987 = vpop.xlane.xlu0 %1986
    %v1988 = vsel %vm704, %v1936, 0.0
    %1989 = vadd.xlane.f32.xlu0 %v1988
    %v1990 = vpop.xlane.xlu0 %1989
    %v1991 = vsel %vm704, %v1938, 0.0
    %1992 = vadd.xlane.f32.xlu0 %v1991
    %v1993 = vpop.xlane.xlu0 %1992
    %v1994 = vsel %vm704, %v1940, 0.0
    %1995 = vadd.xlane.f32.xlu0 %v1994
    %v1996 = vpop.xlane.xlu0 %1995
    %v1997 = vsel %vm704, %v1942, 0.0
    %1998 = vadd.xlane.f32.xlu0 %v1997
    %v1999 = vpop.xlane.xlu0 %1998
    %v2000 = vsel %vm704, %v1944, 0.0
    %2001 = vadd.xlane.f32.xlu0 %v2000
    %v2002 = vpop.xlane.xlu0 %2001
    %v2003 = vsel %vm704, %v1946, 0.0
    %2004 = vadd.xlane.f32.xlu0 %v2003
    %v2005 = vpop.xlane.xlu0 %2004
    %v2006 = vsel %vm704, %v1948, 0.0
    %2007 = vadd.xlane.f32.xlu0 %v2006
    %v2008 = vpop.xlane.xlu0 %2007
    %v2009 = vsel %vm704, %v1950, 0.0
    %2010 = vadd.xlane.f32.xlu0 %v2009
    %v2011 = vpop.xlane.xlu0 %2010
    %v2012 = vsel %vm704, %v1952, 0.0
    %2013 = vadd.xlane.f32.xlu0 %v2012
    %v2014 = vpop.xlane.xlu0 %2013
    %v2015 = vsel %vm704, %v1954, 0.0
    %2016 = vadd.xlane.f32.xlu0 %v2015
    %v2017 = vpop.xlane.xlu0 %2016
    %v2018 = vsel %vm704, %v1956, 0.0
    %2019 = vadd.xlane.f32.xlu0 %v2018
    %v2020 = vpop.xlane.xlu0 %2019
    %v2037 = vlaneseq
    %v2038 = vshrl.u32 %v2037, 7
    %v2039 = vsub.s32 %v194, %v2038
    %v2040 = vrot.slane %v1975, %v2039
    %v2041 = vlaneseq
    %v2042 = vshrl.u32 %v2041, 7
    %v2043 = vsub.s32 %v194, %v2042
    %v2044 = vrot.slane %v1978, %v2043
    %v2045 = vlaneseq
    %v2046 = vshrl.u32 %v2045, 7
    %v2047 = vsub.s32 %v194, %v2046
    %v2048 = vrot.slane %v1981, %v2047
    %v2049 = vlaneseq
    %v2050 = vshrl.u32 %v2049, 7
    %v2051 = vsub.s32 %v194, %v2050
    %v2052 = vrot.slane %v1984, %v2051
    %v2053 = vlaneseq
    %v2054 = vshrl.u32 %v2053, 7
    %v2055 = vsub.s32 %v194, %v2054
    %v2056 = vrot.slane %v1987, %v2055
    %v2057 = vlaneseq
    %v2058 = vshrl.u32 %v2057, 7
    %v2059 = vsub.s32 %v194, %v2058
    %v2060 = vrot.slane %v1990, %v2059
    %v2061 = vlaneseq
    %v2062 = vshrl.u32 %v2061, 7
    %v2063 = vsub.s32 %v194, %v2062
    %v2064 = vrot.slane %v1993, %v2063
    %v2065 = vlaneseq
    %v2066 = vshrl.u32 %v2065, 7
    %v2067 = vsub.s32 %v194, %v2066
    %v2068 = vrot.slane %v1996, %v2067
    %v2069 = vlaneseq
    %v2070 = vshrl.u32 %v2069, 7
    %v2071 = vsub.s32 %v194, %v2070
    %v2072 = vrot.slane %v1999, %v2071
    %v2073 = vlaneseq
    %v2074 = vshrl.u32 %v2073, 7
    %v2075 = vsub.s32 %v194, %v2074
    %v2076 = vrot.slane %v2002, %v2075
    %v2077 = vlaneseq
    %v2078 = vshrl.u32 %v2077, 7
    %v2079 = vsub.s32 %v194, %v2078
    %v2080 = vrot.slane %v2005, %v2079
    %v2081 = vlaneseq
    %v2082 = vshrl.u32 %v2081, 7
    %v2083 = vsub.s32 %v194, %v2082
    %v2084 = vrot.slane %v2008, %v2083
    %v2085 = vlaneseq
    %v2086 = vshrl.u32 %v2085, 7
    %v2087 = vsub.s32 %v194, %v2086
    %v2088 = vrot.slane %v2011, %v2087
    %v2089 = vlaneseq
    %v2090 = vshrl.u32 %v2089, 7
    %v2091 = vsub.s32 %v194, %v2090
    %v2092 = vrot.slane %v2014, %v2091
    %v2093 = vlaneseq
    %v2094 = vshrl.u32 %v2093, 7
    %v2095 = vsub.s32 %v194, %v2094
    %v2096 = vrot.slane %v2017, %v2095
    %v2097 = vlaneseq
    %v2098 = vshrl.u32 %v2097, 7
    %v2099 = vsub.s32 %v194, %v2098
    %v2100 = vrot.slane %v2020, %v2099
    %v2101 = vsel %vm1182, %v2044, %v2040
    %v2102 = vsel %vm1184, %v2048, %v2101
    %v2103 = vsel %vm1186, %v2052, %v2102
    %v2104 = vsel %vm1188, %v2056, %v2103
    %v2105 = vsel %vm1190, %v2060, %v2104
    %v2106 = vsel %vm1192, %v2064, %v2105
    %v2107 = vsel %vm1194, %v2068, %v2106
    %v2108 = vsel %vm1182, %v2076, %v2072
    %v2109 = vsel %vm1184, %v2080, %v2108
    %v2110 = vsel %vm1186, %v2084, %v2109
    %v2111 = vsel %vm1188, %v2088, %v2110
    %v2112 = vsel %vm1190, %v2092, %v2111
    %v2113 = vsel %vm1192, %v2096, %v2112
    %v2114 = vsel %vm1194, %v2100, %v2113
    %v2117 = vadd.f32 %v1827, %v2107
    %v2118 = vadd.f32 %v1828, %v2114
    %v2119 = vadd.f32 %v2117, %v1212
    %v2120 = vadd.f32 %v2118, %v1216
    %v2121 = vsel %vm704, %v2119, -inf
    %2122 = vmax.xlane.f32.xlu0 %v2121
    %v2123 = vpop.xlane.xlu0 %2122
    %v2124 = vsel %vm704, %v2120, -inf
    %2125 = vmax.xlane.f32.xlu0 %v2124
    %v2126 = vpop.xlane.xlu0 %2125
    %v2127 = vsub.f32 %v2119, %v2123
    %v2128 = vsub.f32 %v2120, %v2126
    %v2129 = vmul.f32 %v2127, 1.442695
    %v2130 = vpow.pop %v2129
    %v2131 = vmul.f32 %v2128, 1.442695
    %v2132 = vpow.pop %v2131
    %v2133 = vsel %vm704, %v2130, 0.0
    %2134 = vadd.xlane.f32.xlu0 %v2133
    %v2135 = vpop.xlane.xlu0 %2134
    %v2136 = vsel %vm704, %v2132, 0.0
    %2137 = vadd.xlane.f32.xlu0 %v2136
    %v2138 = vpop.xlane.xlu0 %2137
    %v2139 = vrcp.pop %v2135
    %v2140 = vmul.f32 %v2130, %v2139
    %v2141 = vrcp.pop %v2138
    %v2142 = vmul.f32 %v2132, %v2141
    %2143 = vrot.lane.b32.xlu0 %v189, 56
    %v2144 = vpop.permute.xlu0 %2143
    %v2147 = vsel %vm704, %v2140, 0
    %2149 = vmatprep.subr.mxu0 0.0
    %2150 = vmatpush1.msra.mxu0 0.0
    %2151 = vmatprep.subr.mxu0 0.0
    %2152 = vmatpush1.msra.mxu0 0.0
    %2153 = vmatprep.subr.mxu0 0.0
    %2154 = vmatpush1.msra.mxu0 0.0
    %2155 = vmatprep.subr.mxu0 0.0
    %2156 = vmatpush1.msra.mxu0 0.0
    %2157 = vmatprep.subr.mxu0 0.0
    %2158 = vmatpush1.msra.mxu0 0.0
    %2159 = vmatprep.subr.mxu0 0.0
    %2160 = vmatpush1.msra.mxu0 0.0
    %2161 = vmatprep.subr.mxu0 0.0
    %2162 = vmatpush1.msra.mxu0 0.0
    %2163 = vmatprep.subr.mxu0 0.0
    %2164 = vmatpush1.msra.mxu0 0.0
    %2165 = vmatprep.subr.mxu0 0.0
    %2166 = vmatpush1.msra.mxu0 0.0
    %2167 = vmatprep.subr.mxu0 0.0
    %2168 = vmatpush1.msra.mxu0 0.0
    %2169 = vmatprep.subr.mxu0 0.0
    %2170 = vmatpush1.msra.mxu0 0.0
    %2171 = vmatprep.subr.mxu0 0.0
    %2172 = vmatpush1.msra.mxu0 0.0
    %2173 = vmatprep.subr.mxu0 0.0
    %2174 = vmatpush1.msra.mxu0 0.0
    %2175 = vmatprep.subr.mxu0 0.0
    %2176 = vmatpush1.msra.mxu0 0.0
    %2177 = vmatprep.subr.mxu0 0.0
    %2178 = vmatpush1.msra.mxu0 0.0
    %2179 = vmatprep.subr.mxu0 0.0
    %2180 = vmatpush1.msra.mxu0 %v2144
    %2181 = vmatprep.subr.mxu0 0.0
    %2182 = vmatpush2.msra.mxu0 0.0
    %2183 = vmatprep.subr.mxu0 0.0
    %2184 = vmatpush2.msra.mxu0 0.0
    %2185 = vmatprep.subr.mxu0 0.0
    %2186 = vmatpush2.msra.mxu0 0.0
    %2187 = vmatprep.subr.mxu0 0.0
    %2188 = vmatpush2.msra.mxu0 0.0
    %2189 = vmatprep.subr.mxu0 0.0
    %2190 = vmatpush2.msra.mxu0 0.0
    %2191 = vmatprep.subr.mxu0 0.0
    %2192 = vmatpush2.msra.mxu0 0.0
    %2193 = vmatprep.subr.mxu0 0.0
    %2194 = vmatpush2.msra.mxu0 0.0
    %2195 = vmatprep.subr.mxu0 0.0
    %2196 = vmatpush2.msra.mxu0 0.0
    %2197 = vmatprep.subr.mxu0 0.0
    %2198 = vmatpush2.msra.mxu0 0.0
    %2199 = vmatprep.subr.mxu0 0.0
    %2200 = vmatpush2.msra.mxu0 0.0
    %2201 = vmatprep.subr.mxu0 0.0
    %2202 = vmatpush2.msra.mxu0 0.0
    %2203 = vmatprep.subr.mxu0 0.0
    %2204 = vmatpush2.msra.mxu0 0.0
    %2205 = vmatprep.subr.mxu0 0.0
    %2206 = vmatpush2.msra.mxu0 0.0
    %2207 = vmatprep.subr.mxu0 0.0
    %2208 = vmatpush2.msra.mxu0 0.0
    %2209 = vmatprep.subr.mxu0 0.0
    %2210 = vmatpush2.msra.mxu0 0.0
    %2211 = vmatprep.subr.mxu0 0.0
    %2212 = vmatpush2.msra.mxu0 0.0
    %2213 = vmatprep.mubr.f32.mxu0 0.0
    %2214 = vmatmul.mubr.f32.gmra.mxu0 %v2147
    %v2215 = vpop.f32.mrf.mxu0
    %v2216 = vadd.f32 0.0, %v2215
    %v2217 = vpop.f32.mrf.mxu0
    %2218 = vdwg.mxu0
    %2219 = vrot.lane.b32.xlu0 %v190, 56
    %v2220 = vpop.permute.xlu0 %2219
    %v2223 = vsel %vm704, %v2142, 0
    %2225 = vmatprep.subr.mxu0 0.0
    %2226 = vmatpush1.msra.mxu0 0.0
    %2227 = vmatprep.subr.mxu0 0.0
    %2228 = vmatpush1.msra.mxu0 0.0
    %2229 = vmatprep.subr.mxu0 0.0
    %2230 = vmatpush1.msra.mxu0 0.0
    %2231 = vmatprep.subr.mxu0 0.0
    %2232 = vmatpush1.msra.mxu0 0.0
    %2233 = vmatprep.subr.mxu0 0.0
    %2234 = vmatpush1.msra.mxu0 0.0
    %2235 = vmatprep.subr.mxu0 0.0
    %2236 = vmatpush1.msra.mxu0 0.0
    %2237 = vmatprep.subr.mxu0 0.0
    %2238 = vmatpush1.msra.mxu0 0.0
    %2239 = vmatprep.subr.mxu0 0.0
    %2240 = vmatpush1.msra.mxu0 0.0
    %2241 = vmatprep.subr.mxu0 0.0
    %2242 = vmatpush1.msra.mxu0 0.0
    %2243 = vmatprep.subr.mxu0 0.0
    %2244 = vmatpush1.msra.mxu0 0.0
    %2245 = vmatprep.subr.mxu0 0.0
    %2246 = vmatpush1.msra.mxu0 0.0
    %2247 = vmatprep.subr.mxu0 0.0
    %2248 = vmatpush1.msra.mxu0 0.0
    %2249 = vmatprep.subr.mxu0 0.0
    %2250 = vmatpush1.msra.mxu0 0.0
    %2251 = vmatprep.subr.mxu0 0.0
    %2252 = vmatpush1.msra.mxu0 0.0
    %2253 = vmatprep.subr.mxu0 0.0
    %2254 = vmatpush1.msra.mxu0 0.0
    %2255 = vmatprep.subr.mxu0 0.0
    %2256 = vmatpush1.msra.mxu0 %v2220
    %2257 = vmatprep.subr.mxu0 0.0
    %2258 = vmatpush2.msra.mxu0 0.0
    %2259 = vmatprep.subr.mxu0 0.0
    %2260 = vmatpush2.msra.mxu0 0.0
    %2261 = vmatprep.subr.mxu0 0.0
    %2262 = vmatpush2.msra.mxu0 0.0
    %2263 = vmatprep.subr.mxu0 0.0
    %2264 = vmatpush2.msra.mxu0 0.0
    %2265 = vmatprep.subr.mxu0 0.0
    %2266 = vmatpush2.msra.mxu0 0.0
    %2267 = vmatprep.subr.mxu0 0.0
    %2268 = vmatpush2.msra.mxu0 0.0
    %2269 = vmatprep.subr.mxu0 0.0
    %2270 = vmatpush2.msra.mxu0 0.0
    %2271 = vmatprep.subr.mxu0 0.0
    %2272 = vmatpush2.msra.mxu0 0.0
    %2273 = vmatprep.subr.mxu0 0.0
    %2274 = vmatpush2.msra.mxu0 0.0
    %2275 = vmatprep.subr.mxu0 0.0
    %2276 = vmatpush2.msra.mxu0 0.0
    %2277 = vmatprep.subr.mxu0 0.0
    %2278 = vmatpush2.msra.mxu0 0.0
    %2279 = vmatprep.subr.mxu0 0.0
    %2280 = vmatpush2.msra.mxu0 0.0
    %2281 = vmatprep.subr.mxu0 0.0
    %2282 = vmatpush2.msra.mxu0 0.0
    %2283 = vmatprep.subr.mxu0 0.0
    %2284 = vmatpush2.msra.mxu0 0.0
    %2285 = vmatprep.subr.mxu0 0.0
    %2286 = vmatpush2.msra.mxu0 0.0
    %2287 = vmatprep.subr.mxu0 0.0
    %2288 = vmatpush2.msra.mxu0 0.0
    %2289 = vmatprep.mubr.f32.mxu0 0.0
    %2290 = vmatmul.mubr.f32.gmra.mxu0 %v2223
    %v2291 = vpop.f32.mrf.mxu0
    %v2292 = vadd.f32 0.0, %v2291
    %v2293 = vpop.f32.mrf.mxu0
    %2294 = vdwg.mxu0
    %v2295 = vlaneseq
    %v2296 = vshrl.u32 %v2295, 7
    %v2297 = vsub.s32 0, %v2296
    %v2298 = vrot.slane %v2140, %v2297
    %2300 = vbcast.lane.b32.xlu0 %v2298, 256
    %v2301 = vpop.permute.xlu0 %2300
    %v2302 = vlaneseq
    %v2303 = vshrl.u32 %v2302, 7
    %v2304 = vsub.s32 1, %v2303
    %v2305 = vrot.slane %v2140, %v2304
    %2307 = vbcast.lane.b32.xlu0 %v2305, 256
    %v2308 = vpop.permute.xlu0 %2307
    %v2309 = vlaneseq
    %v2310 = vshrl.u32 %v2309, 7
    %v2311 = vsub.s32 2, %v2310
    %v2312 = vrot.slane %v2140, %v2311
    %2314 = vbcast.lane.b32.xlu0 %v2312, 256
    %v2315 = vpop.permute.xlu0 %2314
    %v2316 = vlaneseq
    %v2317 = vshrl.u32 %v2316, 7
    %v2318 = vsub.s32 3, %v2317
    %v2319 = vrot.slane %v2140, %v2318
    %2321 = vbcast.lane.b32.xlu0 %v2319, 256
    %v2322 = vpop.permute.xlu0 %2321
    %v2323 = vlaneseq
    %v2324 = vshrl.u32 %v2323, 7
    %v2325 = vsub.s32 4, %v2324
    %v2326 = vrot.slane %v2140, %v2325
    %2328 = vbcast.lane.b32.xlu0 %v2326, 256
    %v2329 = vpop.permute.xlu0 %2328
    %v2330 = vlaneseq
    %v2331 = vshrl.u32 %v2330, 7
    %v2332 = vsub.s32 5, %v2331
    %v2333 = vrot.slane %v2140, %v2332
    %2335 = vbcast.lane.b32.xlu0 %v2333, 256
    %v2336 = vpop.permute.xlu0 %2335
    %v2337 = vlaneseq
    %v2338 = vshrl.u32 %v2337, 7
    %v2339 = vsub.s32 6, %v2338
    %v2340 = vrot.slane %v2140, %v2339
    %2342 = vbcast.lane.b32.xlu0 %v2340, 256
    %v2343 = vpop.permute.xlu0 %2342
    %v2344 = vlaneseq
    %v2345 = vshrl.u32 %v2344, 7
    %v2346 = vsub.s32 7, %v2345
    %v2347 = vrot.slane %v2140, %v2346
    %2349 = vbcast.lane.b32.xlu0 %v2347, 256
    %v2350 = vpop.permute.xlu0 %2349
    %v2351 = vlaneseq
    %v2352 = vshrl.u32 %v2351, 7
    %v2353 = vsub.s32 0, %v2352
    %v2354 = vrot.slane %v2142, %v2353
    %2356 = vbcast.lane.b32.xlu0 %v2354, 256
    %v2357 = vpop.permute.xlu0 %2356
    %v2358 = vlaneseq
    %v2359 = vshrl.u32 %v2358, 7
    %v2360 = vsub.s32 1, %v2359
    %v2361 = vrot.slane %v2142, %v2360
    %2363 = vbcast.lane.b32.xlu0 %v2361, 256
    %v2364 = vpop.permute.xlu0 %2363
    %v2365 = vlaneseq
    %v2366 = vshrl.u32 %v2365, 7
    %v2367 = vsub.s32 2, %v2366
    %v2368 = vrot.slane %v2142, %v2367
    %2370 = vbcast.lane.b32.xlu0 %v2368, 256
    %v2371 = vpop.permute.xlu0 %2370
    %v2372 = vlaneseq
    %v2373 = vshrl.u32 %v2372, 7
    %v2374 = vsub.s32 3, %v2373
    %v2375 = vrot.slane %v2142, %v2374
    %2377 = vbcast.lane.b32.xlu0 %v2375, 256
    %v2378 = vpop.permute.xlu0 %2377
    %v2379 = vlaneseq
    %v2380 = vshrl.u32 %v2379, 7
    %v2381 = vsub.s32 4, %v2380
    %v2382 = vrot.slane %v2142, %v2381
    %2384 = vbcast.lane.b32.xlu0 %v2382, 256
    %v2385 = vpop.permute.xlu0 %2384
    %v2386 = vlaneseq
    %v2387 = vshrl.u32 %v2386, 7
    %v2388 = vsub.s32 5, %v2387
    %v2389 = vrot.slane %v2142, %v2388
    %2391 = vbcast.lane.b32.xlu0 %v2389, 256
    %v2392 = vpop.permute.xlu0 %2391
    %v2393 = vlaneseq
    %v2394 = vshrl.u32 %v2393, 7
    %v2395 = vsub.s32 6, %v2394
    %v2396 = vrot.slane %v2142, %v2395
    %2398 = vbcast.lane.b32.xlu0 %v2396, 256
    %v2399 = vpop.permute.xlu0 %2398
    %v2400 = vlaneseq
    %v2401 = vshrl.u32 %v2400, 7
    %v2402 = vsub.s32 7, %v2401
    %v2403 = vrot.slane %v2142, %v2402
    %2405 = vbcast.lane.b32.xlu0 %v2403, 256
    %v2406 = vpop.permute.xlu0 %2405
    %v2407 = vmul.f32 %v2301, %v623
    %v2408 = vmul.f32 %v2308, %v628
    %v2409 = vmul.f32 %v2315, %v633
    %v2410 = vmul.f32 %v2322, %v638
    %v2411 = vmul.f32 %v2329, %v643
    %v2412 = vmul.f32 %v2336, %v648
    %v2413 = vmul.f32 %v2343, %v653
    %v2414 = vmul.f32 %v2350, %v658
    %v2415 = vmul.f32 %v2357, %v663
    %v2416 = vmul.f32 %v2364, %v668
    %v2417 = vmul.f32 %v2371, %v673
    %v2418 = vmul.f32 %v2378, %v678
    %v2419 = vmul.f32 %v2385, %v683
    %v2420 = vmul.f32 %v2392, %v688
    %v2421 = vmul.f32 %v2399, %v693
    %v2422 = vmul.f32 %v2406, %v698
    %v2423 = vsel %vm704, %v2407, 0.0
    %v2424 = vrot.slane %v2423, 4
    %v2425 = vadd.f32 %v2423, %v2424
    %v2426 = vrot.slane %v2425, 2
    %v2427 = vadd.f32 %v2425, %v2426
    %v2428 = vrot.slane %v2427, 1
    %v2429 = vadd.f32 %v2427, %v2428
    %v2430 = vsel %vm704, %v2408, 0.0
    %v2431 = vrot.slane %v2430, 4
    %v2432 = vadd.f32 %v2430, %v2431
    %v2433 = vrot.slane %v2432, 2
    %v2434 = vadd.f32 %v2432, %v2433
    %v2435 = vrot.slane %v2434, 1
    %v2436 = vadd.f32 %v2434, %v2435
    %v2437 = vsel %vm704, %v2409, 0.0
    %v2438 = vrot.slane %v2437, 4
    %v2439 = vadd.f32 %v2437, %v2438
    %v2440 = vrot.slane %v2439, 2
    %v2441 = vadd.f32 %v2439, %v2440
    %v2442 = vrot.slane %v2441, 1
    %v2443 = vadd.f32 %v2441, %v2442
    %v2444 = vsel %vm704, %v2410, 0.0
    %v2445 = vrot.slane %v2444, 4
    %v2446 = vadd.f32 %v2444, %v2445
    %v2447 = vrot.slane %v2446, 2
    %v2448 = vadd.f32 %v2446, %v2447
    %v2449 = vrot.slane %v2448, 1
    %v2450 = vadd.f32 %v2448, %v2449
    %v2451 = vsel %vm704, %v2411, 0.0
    %v2452 = vrot.slane %v2451, 4
    %v2453 = vadd.f32 %v2451, %v2452
    %v2454 = vrot.slane %v2453, 2
    %v2455 = vadd.f32 %v2453, %v2454
    %v2456 = vrot.slane %v2455, 1
    %v2457 = vadd.f32 %v2455, %v2456
    %v2458 = vsel %vm704, %v2412, 0.0
    %v2459 = vrot.slane %v2458, 4
    %v2460 = vadd.f32 %v2458, %v2459
    %v2461 = vrot.slane %v2460, 2
    %v2462 = vadd.f32 %v2460, %v2461
    %v2463 = vrot.slane %v2462, 1
    %v2464 = vadd.f32 %v2462, %v2463
    %v2465 = vsel %vm704, %v2413, 0.0
    %v2466 = vrot.slane %v2465, 4
    %v2467 = vadd.f32 %v2465, %v2466
    %v2468 = vrot.slane %v2467, 2
    %v2469 = vadd.f32 %v2467, %v2468
    %v2470 = vrot.slane %v2469, 1
    %v2471 = vadd.f32 %v2469, %v2470
    %v2472 = vsel %vm704, %v2414, 0.0
    %v2473 = vrot.slane %v2472, 4
    %v2474 = vadd.f32 %v2472, %v2473
    %v2475 = vrot.slane %v2474, 2
    %v2476 = vadd.f32 %v2474, %v2475
    %v2477 = vrot.slane %v2476, 1
    %v2478 = vadd.f32 %v2476, %v2477
    %v2479 = vsel %vm704, %v2415, 0.0
    %v2480 = vrot.slane %v2479, 4
    %v2481 = vadd.f32 %v2479, %v2480
    %v2482 = vrot.slane %v2481, 2
    %v2483 = vadd.f32 %v2481, %v2482
    %v2484 = vrot.slane %v2483, 1
    %v2485 = vadd.f32 %v2483, %v2484
    %v2486 = vsel %vm704, %v2416, 0.0
    %v2487 = vrot.slane %v2486, 4
    %v2488 = vadd.f32 %v2486, %v2487
    %v2489 = vrot.slane %v2488, 2
    %v2490 = vadd.f32 %v2488, %v2489
    %v2491 = vrot.slane %v2490, 1
    %v2492 = vadd.f32 %v2490, %v2491
    %v2493 = vsel %vm704, %v2417, 0.0
    %v2494 = vrot.slane %v2493, 4
    %v2495 = vadd.f32 %v2493, %v2494
    %v2496 = vrot.slane %v2495, 2
    %v2497 = vadd.f32 %v2495, %v2496
    %v2498 = vrot.slane %v2497, 1
    %v2499 = vadd.f32 %v2497, %v2498
    %v2500 = vsel %vm704, %v2418, 0.0
    %v2501 = vrot.slane %v2500, 4
    %v2502 = vadd.f32 %v2500, %v2501
    %v2503 = vrot.slane %v2502, 2
    %v2504 = vadd.f32 %v2502, %v2503
    %v2505 = vrot.slane %v2504, 1
    %v2506 = vadd.f32 %v2504, %v2505
    %v2507 = vsel %vm704, %v2419, 0.0
    %v2508 = vrot.slane %v2507, 4
    %v2509 = vadd.f32 %v2507, %v2508
    %v2510 = vrot.slane %v2509, 2
    %v2511 = vadd.f32 %v2509, %v2510
    %v2512 = vrot.slane %v2511, 1
    %v2513 = vadd.f32 %v2511, %v2512
    %v2514 = vsel %vm704, %v2420, 0.0
    %v2515 = vrot.slane %v2514, 4
    %v2516 = vadd.f32 %v2514, %v2515
    %v2517 = vrot.slane %v2516, 2
    %v2518 = vadd.f32 %v2516, %v2517
    %v2519 = vrot.slane %v2518, 1
    %v2520 = vadd.f32 %v2518, %v2519
    %v2521 = vsel %vm704, %v2421, 0.0
    %v2522 = vrot.slane %v2521, 4
    %v2523 = vadd.f32 %v2521, %v2522
    %v2524 = vrot.slane %v2523, 2
    %v2525 = vadd.f32 %v2523, %v2524
    %v2526 = vrot.slane %v2525, 1
    %v2527 = vadd.f32 %v2525, %v2526
    %v2528 = vsel %vm704, %v2422, 0.0
    %v2529 = vrot.slane %v2528, 4
    %v2530 = vadd.f32 %v2528, %v2529
    %v2531 = vrot.slane %v2530, 2
    %v2532 = vadd.f32 %v2530, %v2531
    %v2533 = vrot.slane %v2532, 1
    %v2534 = vadd.f32 %v2532, %v2533
    %v2551 = vsel %vm1182, %v2436, %v2429
    %v2552 = vsel %vm1184, %v2443, %v2551
    %v2553 = vsel %vm1186, %v2450, %v2552
    %v2554 = vsel %vm1188, %v2457, %v2553
    %v2555 = vsel %vm1190, %v2464, %v2554
    %v2556 = vsel %vm1192, %v2471, %v2555
    %v2557 = vsel %vm1194, %v2478, %v2556
    %v2558 = vsel %vm1182, %v2492, %v2485
    %v2559 = vsel %vm1184, %v2499, %v2558
    %v2560 = vsel %vm1186, %v2506, %v2559
    %v2561 = vsel %vm1188, %v2513, %v2560
    %v2562 = vsel %vm1190, %v2520, %v2561
    %v2563 = vsel %vm1192, %v2527, %v2562
    %v2564 = vsel %vm1194, %v2534, %v2563
    %v2567 = vadd.f32 %v2216, %v2557
    %v2568 = vadd.f32 %v2292, %v2564
    %2569 = vrot.lane.b32.xlu0 %v165, 112
    %v2570 = vpop.permute.xlu0 %2569
    %2571 = vrot.lane.b32.xlu0 %v177, 80
    %v2572 = vpop.permute.xlu0 %2571
    %v2573 = vsel %vm704, %v2570, 0
    %v2575 = vsel %vm704, %v2572, 0
    %2577 = vmatprep.subr.mxu0 0.0
    %2578 = vmatpush1.xpose.msra.mxu0 0.0
    %2579 = vmatprep.subr.mxu0 0.0
    %2580 = vmatpush1.xpose.msra.mxu0 0.0
    %2581 = vmatprep.subr.mxu0 0.0
    %2582 = vmatpush1.xpose.msra.mxu0 0.0
    %2583 = vmatprep.subr.mxu0 0.0
    %2584 = vmatpush1.xpose.msra.mxu0 0.0
    %2585 = vmatprep.subr.mxu0 0.0
    %2586 = vmatpush1.xpose.msra.mxu0 0.0
    %2587 = vmatprep.subr.mxu0 0.0
    %2588 = vmatpush1.xpose.msra.mxu0 0.0
    %2589 = vmatprep.subr.mxu0 0.0
    %2590 = vmatpush1.xpose.msra.mxu0 0.0
    %2591 = vmatprep.subr.mxu0 0.0
    %2592 = vmatpush1.xpose.msra.mxu0 0.0
    %2593 = vmatprep.subr.mxu0 0.0
    %2594 = vmatpush1.xpose.msra.mxu0 0.0
    %2595 = vmatprep.subr.mxu0 0.0
    %2596 = vmatpush1.xpose.msra.mxu0 0.0
    %2597 = vmatprep.subr.mxu0 0.0
    %2598 = vmatpush1.xpose.msra.mxu0 0.0
    %2599 = vmatprep.subr.mxu0 0.0
    %2600 = vmatpush1.xpose.msra.mxu0 0.0
    %2601 = vmatprep.subr.mxu0 0.0
    %2602 = vmatpush1.xpose.msra.mxu0 0.0
    %2603 = vmatprep.subr.mxu0 0.0
    %2604 = vmatpush1.xpose.msra.mxu0 0.0
    %2605 = vmatprep.subr.mxu0 0.0
    %2606 = vmatpush1.xpose.msra.mxu0 0.0
    %2607 = vmatprep.subr.mxu0 0.0
    %2608 = vmatpush1.xpose.msra.mxu0 %v2575
    %2609 = vmatprep.subr.mxu0 0.0
    %2610 = vmatpush2.xpose.msra.mxu0 0.0
    %2611 = vmatprep.subr.mxu0 0.0
    %2612 = vmatpush2.xpose.msra.mxu0 0.0
    %2613 = vmatprep.subr.mxu0 0.0
    %2614 = vmatpush2.xpose.msra.mxu0 0.0
    %2615 = vmatprep.subr.mxu0 0.0
    %2616 = vmatpush2.xpose.msra.mxu0 0.0
    %2617 = vmatprep.subr.mxu0 0.0
    %2618 = vmatpush2.xpose.msra.mxu0 0.0
    %2619 = vmatprep.subr.mxu0 0.0
    %2620 = vmatpush2.xpose.msra.mxu0 0.0
    %2621 = vmatprep.subr.mxu0 0.0
    %2622 = vmatpush2.xpose.msra.mxu0 0.0
    %2623 = vmatprep.subr.mxu0 0.0
    %2624 = vmatpush2.xpose.msra.mxu0 0.0
    %2625 = vmatprep.subr.mxu0 0.0
    %2626 = vmatpush2.xpose.msra.mxu0 0.0
    %2627 = vmatprep.subr.mxu0 0.0
    %2628 = vmatpush2.xpose.msra.mxu0 0.0
    %2629 = vmatprep.subr.mxu0 0.0
    %2630 = vmatpush2.xpose.msra.mxu0 0.0
    %2631 = vmatprep.subr.mxu0 0.0
    %2632 = vmatpush2.xpose.msra.mxu0 0.0
    %2633 = vmatprep.subr.mxu0 0.0
    %2634 = vmatpush2.xpose.msra.mxu0 0.0
    %2635 = vmatprep.subr.mxu0 0.0
    %2636 = vmatpush2.xpose.msra.mxu0 0.0
    %2637 = vmatprep.subr.mxu0 0.0
    %2638 = vmatpush2.xpose.msra.mxu0 0.0
    %2639 = vmatprep.subr.mxu0 0.0
    %2640 = vmatpush2.xpose.msra.mxu0 0.0
    %2641 = vmatprep.mubr.f32.mxu0 0.0
    %2642 = vmatmul.mubr.f32.gmra.mxu0 %v2573
    %v2643 = vpop.f32.mrf.mxu0
    %v2644 = vadd.f32 0.0, %v2643
    %v2645 = vpop.f32.mrf.mxu0
    %2646 = vdwg.mxu0
    %2647 = vrot.lane.b32.xlu0 %v166, 112
    %v2648 = vpop.permute.xlu0 %2647
    %2649 = vrot.lane.b32.xlu0 %v178, 80
    %v2650 = vpop.permute.xlu0 %2649
    %v2651 = vsel %vm704, %v2648, 0
    %v2653 = vsel %vm704, %v2650, 0
    %2655 = vmatprep.subr.mxu0 0.0
    %2656 = vmatpush1.xpose.msra.mxu0 0.0
    %2657 = vmatprep.subr.mxu0 0.0
    %2658 = vmatpush1.xpose.msra.mxu0 0.0
    %2659 = vmatprep.subr.mxu0 0.0
    %2660 = vmatpush1.xpose.msra.mxu0 0.0
    %2661 = vmatprep.subr.mxu0 0.0
    %2662 = vmatpush1.xpose.msra.mxu0 0.0
    %2663 = vmatprep.subr.mxu0 0.0
    %2664 = vmatpush1.xpose.msra.mxu0 0.0
    %2665 = vmatprep.subr.mxu0 0.0
    %2666 = vmatpush1.xpose.msra.mxu0 0.0
    %2667 = vmatprep.subr.mxu0 0.0
    %2668 = vmatpush1.xpose.msra.mxu0 0.0
    %2669 = vmatprep.subr.mxu0 0.0
    %2670 = vmatpush1.xpose.msra.mxu0 0.0
    %2671 = vmatprep.subr.mxu0 0.0
    %2672 = vmatpush1.xpose.msra.mxu0 0.0
    %2673 = vmatprep.subr.mxu0 0.0
    %2674 = vmatpush1.xpose.msra.mxu0 0.0
    %2675 = vmatprep.subr.mxu0 0.0
    %2676 = vmatpush1.xpose.msra.mxu0 0.0
    %2677 = vmatprep.subr.mxu0 0.0
    %2678 = vmatpush1.xpose.msra.mxu0 0.0
    %2679 = vmatprep.subr.mxu0 0.0
    %2680 = vmatpush1.xpose.msra.mxu0 0.0
    %2681 = vmatprep.subr.mxu0 0.0
    %2682 = vmatpush1.xpose.msra.mxu0 0.0
    %2683 = vmatprep.subr.mxu0 0.0
    %2684 = vmatpush1.xpose.msra.mxu0 0.0
    %2685 = vmatprep.subr.mxu0 0.0
    %2686 = vmatpush1.xpose.msra.mxu0 %v2653
    %2687 = vmatprep.subr.mxu0 0.0
    %2688 = vmatpush2.xpose.msra.mxu0 0.0
    %2689 = vmatprep.subr.mxu0 0.0
    %2690 = vmatpush2.xpose.msra.mxu0 0.0
    %2691 = vmatprep.subr.mxu0 0.0
    %2692 = vmatpush2.xpose.msra.mxu0 0.0
    %2693 = vmatprep.subr.mxu0 0.0
    %2694 = vmatpush2.xpose.msra.mxu0 0.0
    %2695 = vmatprep.subr.mxu0 0.0
    %2696 = vmatpush2.xpose.msra.mxu0 0.0
    %2697 = vmatprep.subr.mxu0 0.0
    %2698 = vmatpush2.xpose.msra.mxu0 0.0
    %2699 = vmatprep.subr.mxu0 0.0
    %2700 = vmatpush2.xpose.msra.mxu0 0.0
    %2701 = vmatprep.subr.mxu0 0.0
    %2702 = vmatpush2.xpose.msra.mxu0 0.0
    %2703 = vmatprep.subr.mxu0 0.0
    %2704 = vmatpush2.xpose.msra.mxu0 0.0
    %2705 = vmatprep.subr.mxu0 0.0
    %2706 = vmatpush2.xpose.msra.mxu0 0.0
    %2707 = vmatprep.subr.mxu0 0.0
    %2708 = vmatpush2.xpose.msra.mxu0 0.0
    %2709 = vmatprep.subr.mxu0 0.0
    %2710 = vmatpush2.xpose.msra.mxu0 0.0
    %2711 = vmatprep.subr.mxu0 0.0
    %2712 = vmatpush2.xpose.msra.mxu0 0.0
    %2713 = vmatprep.subr.mxu0 0.0
    %2714 = vmatpush2.xpose.msra.mxu0 0.0
    %2715 = vmatprep.subr.mxu0 0.0
    %2716 = vmatpush2.xpose.msra.mxu0 0.0
    %2717 = vmatprep.subr.mxu0 0.0
    %2718 = vmatpush2.xpose.msra.mxu0 0.0
    %2719 = vmatprep.mubr.f32.mxu0 0.0
    %2720 = vmatmul.mubr.f32.gmra.mxu0 %v2651
    %v2721 = vpop.f32.mrf.mxu0
    %v2722 = vadd.f32 0.0, %v2721
    %v2723 = vpop.f32.mrf.mxu0
    %2724 = vdwg.mxu0
    %v2725 = vmul.f32 %v2644, 0.35355338
    %v2726 = vmul.f32 %v2722, 0.35355338
    %2727 = vrot.lane.b32.xlu0 %v475, 16
    %v2728 = vpop.permute.xlu0 %2727
    %2729 = vrot.lane.b32.xlu0 %v480, 16
    %v2730 = vpop.permute.xlu0 %2729
    %2731 = vrot.lane.b32.xlu0 %v485, 16
    %v2732 = vpop.permute.xlu0 %2731
    %2733 = vrot.lane.b32.xlu0 %v490, 16
    %v2734 = vpop.permute.xlu0 %2733
    %2735 = vrot.lane.b32.xlu0 %v495, 16
    %v2736 = vpop.permute.xlu0 %2735
    %2737 = vrot.lane.b32.xlu0 %v500, 16
    %v2738 = vpop.permute.xlu0 %2737
    %2739 = vrot.lane.b32.xlu0 %v505, 16
    %v2740 = vpop.permute.xlu0 %2739
    %2741 = vrot.lane.b32.xlu0 %v510, 16
    %v2742 = vpop.permute.xlu0 %2741
    %2743 = vrot.lane.b32.xlu0 %v515, 16
    %v2744 = vpop.permute.xlu0 %2743
    %2745 = vrot.lane.b32.xlu0 %v520, 16
    %v2746 = vpop.permute.xlu0 %2745
    %2747 = vrot.lane.b32.xlu0 %v525, 16
    %v2748 = vpop.permute.xlu0 %2747
    %2749 = vrot.lane.b32.xlu0 %v530, 16
    %v2750 = vpop.permute.xlu0 %2749
    %2751 = vrot.lane.b32.xlu0 %v535, 16
    %v2752 = vpop.permute.xlu0 %2751
    %2753 = vrot.lane.b32.xlu0 %v540, 16
    %v2754 = vpop.permute.xlu0 %2753
    %2755 = vrot.lane.b32.xlu0 %v545, 16
    %v2756 = vpop.permute.xlu0 %2755
    %2757 = vrot.lane.b32.xlu0 %v550, 16
    %v2758 = vpop.permute.xlu0 %2757
    %v2775 = vmul.f32 %v961, %v2728
    %v2776 = vmul.f32 %v965, %v2730
    %v2777 = vmul.f32 %v969, %v2732
    %v2778 = vmul.f32 %v973, %v2734
    %v2779 = vmul.f32 %v977, %v2736
    %v2780 = vmul.f32 %v981, %v2738
    %v2781 = vmul.f32 %v985, %v2740
    %v2782 = vmul.f32 %v989, %v2742
    %v2783 = vmul.f32 %v993, %v2744
    %v2784 = vmul.f32 %v997, %v2746
    %v2785 = vmul.f32 %v1001, %v2748
    %v2786 = vmul.f32 %v1005, %v2750
    %v2787 = vmul.f32 %v1009, %v2752
    %v2788 = vmul.f32 %v1013, %v2754
    %v2789 = vmul.f32 %v1017, %v2756
    %v2790 = vmul.f32 %v1021, %v2758
    %2807 = vrot.lane.b32.xlu0 %v2775, 112
    %v2808 = vpop.permute.xlu0 %2807
    %2809 = vrot.lane.b32.xlu0 %v2776, 112
    %v2810 = vpop.permute.xlu0 %2809
    %2811 = vrot.lane.b32.xlu0 %v2777, 112
    %v2812 = vpop.permute.xlu0 %2811
    %2813 = vrot.lane.b32.xlu0 %v2778, 112
    %v2814 = vpop.permute.xlu0 %2813
    %2815 = vrot.lane.b32.xlu0 %v2779, 112
    %v2816 = vpop.permute.xlu0 %2815
    %2817 = vrot.lane.b32.xlu0 %v2780, 112
    %v2818 = vpop.permute.xlu0 %2817
    %2819 = vrot.lane.b32.xlu0 %v2781, 112
    %v2820 = vpop.permute.xlu0 %2819
    %2821 = vrot.lane.b32.xlu0 %v2782, 112
    %v2822 = vpop.permute.xlu0 %2821
    %2823 = vrot.lane.b32.xlu0 %v2783, 112
    %v2824 = vpop.permute.xlu0 %2823
    %2825 = vrot.lane.b32.xlu0 %v2784, 112
    %v2826 = vpop.permute.xlu0 %2825
    %2827 = vrot.lane.b32.xlu0 %v2785, 112
    %v2828 = vpop.permute.xlu0 %2827
    %2829 = vrot.lane.b32.xlu0 %v2786, 112
    %v2830 = vpop.permute.xlu0 %2829
    %2831 = vrot.lane.b32.xlu0 %v2787, 112
    %v2832 = vpop.permute.xlu0 %2831
    %2833 = vrot.lane.b32.xlu0 %v2788, 112
    %v2834 = vpop.permute.xlu0 %2833
    %2835 = vrot.lane.b32.xlu0 %v2789, 112
    %v2836 = vpop.permute.xlu0 %2835
    %2837 = vrot.lane.b32.xlu0 %v2790, 112
    %v2838 = vpop.permute.xlu0 %2837
    %v2855 = vsel %vm704, %v2808, 0.0
    %2856 = vadd.xlane.f32.xlu0 %v2855
    %v2857 = vpop.xlane.xlu0 %2856
    %v2858 = vsel %vm704, %v2810, 0.0
    %2859 = vadd.xlane.f32.xlu0 %v2858
    %v2860 = vpop.xlane.xlu0 %2859
    %v2861 = vsel %vm704, %v2812, 0.0
    %2862 = vadd.xlane.f32.xlu0 %v2861
    %v2863 = vpop.xlane.xlu0 %2862
    %v2864 = vsel %vm704, %v2814, 0.0
    %2865 = vadd.xlane.f32.xlu0 %v2864
    %v2866 = vpop.xlane.xlu0 %2865
    %v2867 = vsel %vm704, %v2816, 0.0
    %2868 = vadd.xlane.f32.xlu0 %v2867
    %v2869 = vpop.xlane.xlu0 %2868
    %v2870 = vsel %vm704, %v2818, 0.0
    %2871 = vadd.xlane.f32.xlu0 %v2870
    %v2872 = vpop.xlane.xlu0 %2871
    %v2873 = vsel %vm704, %v2820, 0.0
    %2874 = vadd.xlane.f32.xlu0 %v2873
    %v2875 = vpop.xlane.xlu0 %2874
    %v2876 = vsel %vm704, %v2822, 0.0
    %2877 = vadd.xlane.f32.xlu0 %v2876
    %v2878 = vpop.xlane.xlu0 %2877
    %v2879 = vsel %vm704, %v2824, 0.0
    %2880 = vadd.xlane.f32.xlu0 %v2879
    %v2881 = vpop.xlane.xlu0 %2880
    %v2882 = vsel %vm704, %v2826, 0.0
    %2883 = vadd.xlane.f32.xlu0 %v2882
    %v2884 = vpop.xlane.xlu0 %2883
    %v2885 = vsel %vm704, %v2828, 0.0
    %2886 = vadd.xlane.f32.xlu0 %v2885
    %v2887 = vpop.xlane.xlu0 %2886
    %v2888 = vsel %vm704, %v2830, 0.0
    %2889 = vadd.xlane.f32.xlu0 %v2888
    %v2890 = vpop.xlane.xlu0 %2889
    %v2891 = vsel %vm704, %v2832, 0.0
    %2892 = vadd.xlane.f32.xlu0 %v2891
    %v2893 = vpop.xlane.xlu0 %2892
    %v2894 = vsel %vm704, %v2834, 0.0
    %2895 = vadd.xlane.f32.xlu0 %v2894
    %v2896 = vpop.xlane.xlu0 %2895
    %v2897 = vsel %vm704, %v2836, 0.0
    %2898 = vadd.xlane.f32.xlu0 %v2897
    %v2899 = vpop.xlane.xlu0 %2898
    %v2900 = vsel %vm704, %v2838, 0.0
    %2901 = vadd.xlane.f32.xlu0 %v2900
    %v2902 = vpop.xlane.xlu0 %2901
    %v2919 = vlaneseq
    %v2920 = vshrl.u32 %v2919, 7
    %v2921 = vsub.s32 %v194, %v2920
    %v2922 = vrot.slane %v2857, %v2921
    %v2923 = vlaneseq
    %v2924 = vshrl.u32 %v2923, 7
    %v2925 = vsub.s32 %v194, %v2924
    %v2926 = vrot.slane %v2860, %v2925
    %v2927 = vlaneseq
    %v2928 = vshrl.u32 %v2927, 7
    %v2929 = vsub.s32 %v194, %v2928
    %v2930 = vrot.slane %v2863, %v2929
    %v2931 = vlaneseq
    %v2932 = vshrl.u32 %v2931, 7
    %v2933 = vsub.s32 %v194, %v2932
    %v2934 = vrot.slane %v2866, %v2933
    %v2935 = vlaneseq
    %v2936 = vshrl.u32 %v2935, 7
    %v2937 = vsub.s32 %v194, %v2936
    %v2938 = vrot.slane %v2869, %v2937
    %v2939 = vlaneseq
    %v2940 = vshrl.u32 %v2939, 7
    %v2941 = vsub.s32 %v194, %v2940
    %v2942 = vrot.slane %v2872, %v2941
    %v2943 = vlaneseq
    %v2944 = vshrl.u32 %v2943, 7
    %v2945 = vsub.s32 %v194, %v2944
    %v2946 = vrot.slane %v2875, %v2945
    %v2947 = vlaneseq
    %v2948 = vshrl.u32 %v2947, 7
    %v2949 = vsub.s32 %v194, %v2948
    %v2950 = vrot.slane %v2878, %v2949
    %v2951 = vlaneseq
    %v2952 = vshrl.u32 %v2951, 7
    %v2953 = vsub.s32 %v194, %v2952
    %v2954 = vrot.slane %v2881, %v2953
    %v2955 = vlaneseq
    %v2956 = vshrl.u32 %v2955, 7
    %v2957 = vsub.s32 %v194, %v2956
    %v2958 = vrot.slane %v2884, %v2957
    %v2959 = vlaneseq
    %v2960 = vshrl.u32 %v2959, 7
    %v2961 = vsub.s32 %v194, %v2960
    %v2962 = vrot.slane %v2887, %v2961
    %v2963 = vlaneseq
    %v2964 = vshrl.u32 %v2963, 7
    %v2965 = vsub.s32 %v194, %v2964
    %v2966 = vrot.slane %v2890, %v2965
    %v2967 = vlaneseq
    %v2968 = vshrl.u32 %v2967, 7
    %v2969 = vsub.s32 %v194, %v2968
    %v2970 = vrot.slane %v2893, %v2969
    %v2971 = vlaneseq
    %v2972 = vshrl.u32 %v2971, 7
    %v2973 = vsub.s32 %v194, %v2972
    %v2974 = vrot.slane %v2896, %v2973
    %v2975 = vlaneseq
    %v2976 = vshrl.u32 %v2975, 7
    %v2977 = vsub.s32 %v194, %v2976
    %v2978 = vrot.slane %v2899, %v2977
    %v2979 = vlaneseq
    %v2980 = vshrl.u32 %v2979, 7
    %v2981 = vsub.s32 %v194, %v2980
    %v2982 = vrot.slane %v2902, %v2981
    %v2983 = vsel %vm1182, %v2926, %v2922
    %v2984 = vsel %vm1184, %v2930, %v2983
    %v2985 = vsel %vm1186, %v2934, %v2984
    %v2986 = vsel %vm1188, %v2938, %v2985
    %v2987 = vsel %vm1190, %v2942, %v2986
    %v2988 = vsel %vm1192, %v2946, %v2987
    %v2989 = vsel %vm1194, %v2950, %v2988
    %v2990 = vsel %vm1182, %v2958, %v2954
    %v2991 = vsel %vm1184, %v2962, %v2990
    %v2992 = vsel %vm1186, %v2966, %v2991
    %v2993 = vsel %vm1188, %v2970, %v2992
    %v2994 = vsel %vm1190, %v2974, %v2993
    %v2995 = vsel %vm1192, %v2978, %v2994
    %v2996 = vsel %vm1194, %v2982, %v2995
    %v2999 = vadd.f32 %v2725, %v2989
    %v3000 = vadd.f32 %v2726, %v2996
    %v3001 = vadd.f32 %v2999, %v1212
    %v3002 = vadd.f32 %v3000, %v1216
    %v3003 = vsel %vm704, %v3001, -inf
    %3004 = vmax.xlane.f32.xlu0 %v3003
    %v3005 = vpop.xlane.xlu0 %3004
    %v3006 = vsel %vm704, %v3002, -inf
    %3007 = vmax.xlane.f32.xlu0 %v3006
    %v3008 = vpop.xlane.xlu0 %3007
    %v3009 = vsub.f32 %v3001, %v3005
    %v3010 = vsub.f32 %v3002, %v3008
    %v3011 = vmul.f32 %v3009, 1.442695
    %v3012 = vpow.pop %v3011
    %v3013 = vmul.f32 %v3010, 1.442695
    %v3014 = vpow.pop %v3013
    %v3015 = vsel %vm704, %v3012, 0.0
    %3016 = vadd.xlane.f32.xlu0 %v3015
    %v3017 = vpop.xlane.xlu0 %3016
    %v3018 = vsel %vm704, %v3014, 0.0
    %3019 = vadd.xlane.f32.xlu0 %v3018
    %v3020 = vpop.xlane.xlu0 %3019
    %v3021 = vrcp.pop %v3017
    %v3022 = vmul.f32 %v3012, %v3021
    %v3023 = vrcp.pop %v3020
    %v3024 = vmul.f32 %v3014, %v3023
    %3025 = vrot.lane.b32.xlu0 %v189, 48
    %v3026 = vpop.permute.xlu0 %3025
    %v3029 = vsel %vm704, %v3022, 0
    %3031 = vmatprep.subr.mxu0 0.0
    %3032 = vmatpush1.msra.mxu0 0.0
    %3033 = vmatprep.subr.mxu0 0.0
    %3034 = vmatpush1.msra.mxu0 0.0
    %3035 = vmatprep.subr.mxu0 0.0
    %3036 = vmatpush1.msra.mxu0 0.0
    %3037 = vmatprep.subr.mxu0 0.0
    %3038 = vmatpush1.msra.mxu0 0.0
    %3039 = vmatprep.subr.mxu0 0.0
    %3040 = vmatpush1.msra.mxu0 0.0
    %3041 = vmatprep.subr.mxu0 0.0
    %3042 = vmatpush1.msra.mxu0 0.0
    %3043 = vmatprep.subr.mxu0 0.0
    %3044 = vmatpush1.msra.mxu0 0.0
    %3045 = vmatprep.subr.mxu0 0.0
    %3046 = vmatpush1.msra.mxu0 0.0
    %3047 = vmatprep.subr.mxu0 0.0
    %3048 = vmatpush1.msra.mxu0 0.0
    %3049 = vmatprep.subr.mxu0 0.0
    %3050 = vmatpush1.msra.mxu0 0.0
    %3051 = vmatprep.subr.mxu0 0.0
    %3052 = vmatpush1.msra.mxu0 0.0
    %3053 = vmatprep.subr.mxu0 0.0
    %3054 = vmatpush1.msra.mxu0 0.0
    %3055 = vmatprep.subr.mxu0 0.0
    %3056 = vmatpush1.msra.mxu0 0.0
    %3057 = vmatprep.subr.mxu0 0.0
    %3058 = vmatpush1.msra.mxu0 0.0
    %3059 = vmatprep.subr.mxu0 0.0
    %3060 = vmatpush1.msra.mxu0 0.0
    %3061 = vmatprep.subr.mxu0 0.0
    %3062 = vmatpush1.msra.mxu0 %v3026
    %3063 = vmatprep.subr.mxu0 0.0
    %3064 = vmatpush2.msra.mxu0 0.0
    %3065 = vmatprep.subr.mxu0 0.0
    %3066 = vmatpush2.msra.mxu0 0.0
    %3067 = vmatprep.subr.mxu0 0.0
    %3068 = vmatpush2.msra.mxu0 0.0
    %3069 = vmatprep.subr.mxu0 0.0
    %3070 = vmatpush2.msra.mxu0 0.0
    %3071 = vmatprep.subr.mxu0 0.0
    %3072 = vmatpush2.msra.mxu0 0.0
    %3073 = vmatprep.subr.mxu0 0.0
    %3074 = vmatpush2.msra.mxu0 0.0
    %3075 = vmatprep.subr.mxu0 0.0
    %3076 = vmatpush2.msra.mxu0 0.0
    %3077 = vmatprep.subr.mxu0 0.0
    %3078 = vmatpush2.msra.mxu0 0.0
    %3079 = vmatprep.subr.mxu0 0.0
    %3080 = vmatpush2.msra.mxu0 0.0
    %3081 = vmatprep.subr.mxu0 0.0
    %3082 = vmatpush2.msra.mxu0 0.0
    %3083 = vmatprep.subr.mxu0 0.0
    %3084 = vmatpush2.msra.mxu0 0.0
    %3085 = vmatprep.subr.mxu0 0.0
    %3086 = vmatpush2.msra.mxu0 0.0
    %3087 = vmatprep.subr.mxu0 0.0
    %3088 = vmatpush2.msra.mxu0 0.0
    %3089 = vmatprep.subr.mxu0 0.0
    %3090 = vmatpush2.msra.mxu0 0.0
    %3091 = vmatprep.subr.mxu0 0.0
    %3092 = vmatpush2.msra.mxu0 0.0
    %3093 = vmatprep.subr.mxu0 0.0
    %3094 = vmatpush2.msra.mxu0 0.0
    %3095 = vmatprep.mubr.f32.mxu0 0.0
    %3096 = vmatmul.mubr.f32.gmra.mxu0 %v3029
    %v3097 = vpop.f32.mrf.mxu0
    %v3098 = vadd.f32 0.0, %v3097
    %v3099 = vpop.f32.mrf.mxu0
    %3100 = vdwg.mxu0
    %3101 = vrot.lane.b32.xlu0 %v190, 48
    %v3102 = vpop.permute.xlu0 %3101
    %v3105 = vsel %vm704, %v3024, 0
    %3107 = vmatprep.subr.mxu0 0.0
    %3108 = vmatpush1.msra.mxu0 0.0
    %3109 = vmatprep.subr.mxu0 0.0
    %3110 = vmatpush1.msra.mxu0 0.0
    %3111 = vmatprep.subr.mxu0 0.0
    %3112 = vmatpush1.msra.mxu0 0.0
    %3113 = vmatprep.subr.mxu0 0.0
    %3114 = vmatpush1.msra.mxu0 0.0
    %3115 = vmatprep.subr.mxu0 0.0
    %3116 = vmatpush1.msra.mxu0 0.0
    %3117 = vmatprep.subr.mxu0 0.0
    %3118 = vmatpush1.msra.mxu0 0.0
    %3119 = vmatprep.subr.mxu0 0.0
    %3120 = vmatpush1.msra.mxu0 0.0
    %3121 = vmatprep.subr.mxu0 0.0
    %3122 = vmatpush1.msra.mxu0 0.0
    %3123 = vmatprep.subr.mxu0 0.0
    %3124 = vmatpush1.msra.mxu0 0.0
    %3125 = vmatprep.subr.mxu0 0.0
    %3126 = vmatpush1.msra.mxu0 0.0
    %3127 = vmatprep.subr.mxu0 0.0
    %3128 = vmatpush1.msra.mxu0 0.0
    %3129 = vmatprep.subr.mxu0 0.0
    %3130 = vmatpush1.msra.mxu0 0.0
    %3131 = vmatprep.subr.mxu0 0.0
    %3132 = vmatpush1.msra.mxu0 0.0
    %3133 = vmatprep.subr.mxu0 0.0
    %3134 = vmatpush1.msra.mxu0 0.0
    %3135 = vmatprep.subr.mxu0 0.0
    %3136 = vmatpush1.msra.mxu0 0.0
    %3137 = vmatprep.subr.mxu0 0.0
    %3138 = vmatpush1.msra.mxu0 %v3102
    %3139 = vmatprep.subr.mxu0 0.0
    %3140 = vmatpush2.msra.mxu0 0.0
    %3141 = vmatprep.subr.mxu0 0.0
    %3142 = vmatpush2.msra.mxu0 0.0
    %3143 = vmatprep.subr.mxu0 0.0
    %3144 = vmatpush2.msra.mxu0 0.0
    %3145 = vmatprep.subr.mxu0 0.0
    %3146 = vmatpush2.msra.mxu0 0.0
    %3147 = vmatprep.subr.mxu0 0.0
    %3148 = vmatpush2.msra.mxu0 0.0
    %3149 = vmatprep.subr.mxu0 0.0
    %3150 = vmatpush2.msra.mxu0 0.0
    %3151 = vmatprep.subr.mxu0 0.0
    %3152 = vmatpush2.msra.mxu0 0.0
    %3153 = vmatprep.subr.mxu0 0.0
    %3154 = vmatpush2.msra.mxu0 0.0
    %3155 = vmatprep.subr.mxu0 0.0
    %3156 = vmatpush2.msra.mxu0 0.0
    %3157 = vmatprep.subr.mxu0 0.0
    %3158 = vmatpush2.msra.mxu0 0.0
    %3159 = vmatprep.subr.mxu0 0.0
    %3160 = vmatpush2.msra.mxu0 0.0
    %3161 = vmatprep.subr.mxu0 0.0
    %3162 = vmatpush2.msra.mxu0 0.0
    %3163 = vmatprep.subr.mxu0 0.0
    %3164 = vmatpush2.msra.mxu0 0.0
    %3165 = vmatprep.subr.mxu0 0.0
    %3166 = vmatpush2.msra.mxu0 0.0
    %3167 = vmatprep.subr.mxu0 0.0
    %3168 = vmatpush2.msra.mxu0 0.0
    %3169 = vmatprep.subr.mxu0 0.0
    %3170 = vmatpush2.msra.mxu0 0.0
    %3171 = vmatprep.mubr.f32.mxu0 0.0
    %3172 = vmatmul.mubr.f32.gmra.mxu0 %v3105
    %v3173 = vpop.f32.mrf.mxu0
    %v3174 = vadd.f32 0.0, %v3173
    %v3175 = vpop.f32.mrf.mxu0
    %3176 = vdwg.mxu0
    %v3177 = vlaneseq
    %v3178 = vshrl.u32 %v3177, 7
    %v3179 = vsub.s32 0, %v3178
    %v3180 = vrot.slane %v3022, %v3179
    %3182 = vbcast.lane.b32.xlu0 %v3180, 256
    %v3183 = vpop.permute.xlu0 %3182
    %v3184 = vlaneseq
    %v3185 = vshrl.u32 %v3184, 7
    %v3186 = vsub.s32 1, %v3185
    %v3187 = vrot.slane %v3022, %v3186
    %3189 = vbcast.lane.b32.xlu0 %v3187, 256
    %v3190 = vpop.permute.xlu0 %3189
    %v3191 = vlaneseq
    %v3192 = vshrl.u32 %v3191, 7
    %v3193 = vsub.s32 2, %v3192
    %v3194 = vrot.slane %v3022, %v3193
    %3196 = vbcast.lane.b32.xlu0 %v3194, 256
    %v3197 = vpop.permute.xlu0 %3196
    %v3198 = vlaneseq
    %v3199 = vshrl.u32 %v3198, 7
    %v3200 = vsub.s32 3, %v3199
    %v3201 = vrot.slane %v3022, %v3200
    %3203 = vbcast.lane.b32.xlu0 %v3201, 256
    %v3204 = vpop.permute.xlu0 %3203
    %v3205 = vlaneseq
    %v3206 = vshrl.u32 %v3205, 7
    %v3207 = vsub.s32 4, %v3206
    %v3208 = vrot.slane %v3022, %v3207
    %3210 = vbcast.lane.b32.xlu0 %v3208, 256
    %v3211 = vpop.permute.xlu0 %3210
    %v3212 = vlaneseq
    %v3213 = vshrl.u32 %v3212, 7
    %v3214 = vsub.s32 5, %v3213
    %v3215 = vrot.slane %v3022, %v3214
    %3217 = vbcast.lane.b32.xlu0 %v3215, 256
    %v3218 = vpop.permute.xlu0 %3217
    %v3219 = vlaneseq
    %v3220 = vshrl.u32 %v3219, 7
    %v3221 = vsub.s32 6, %v3220
    %v3222 = vrot.slane %v3022, %v3221
    %3224 = vbcast.lane.b32.xlu0 %v3222, 256
    %v3225 = vpop.permute.xlu0 %3224
    %v3226 = vlaneseq
    %v3227 = vshrl.u32 %v3226, 7
    %v3228 = vsub.s32 7, %v3227
    %v3229 = vrot.slane %v3022, %v3228
    %3231 = vbcast.lane.b32.xlu0 %v3229, 256
    %v3232 = vpop.permute.xlu0 %3231
    %v3233 = vlaneseq
    %v3234 = vshrl.u32 %v3233, 7
    %v3235 = vsub.s32 0, %v3234
    %v3236 = vrot.slane %v3024, %v3235
    %3238 = vbcast.lane.b32.xlu0 %v3236, 256
    %v3239 = vpop.permute.xlu0 %3238
    %v3240 = vlaneseq
    %v3241 = vshrl.u32 %v3240, 7
    %v3242 = vsub.s32 1, %v3241
    %v3243 = vrot.slane %v3024, %v3242
    %3245 = vbcast.lane.b32.xlu0 %v3243, 256
    %v3246 = vpop.permute.xlu0 %3245
    %v3247 = vlaneseq
    %v3248 = vshrl.u32 %v3247, 7
    %v3249 = vsub.s32 2, %v3248
    %v3250 = vrot.slane %v3024, %v3249
    %3252 = vbcast.lane.b32.xlu0 %v3250, 256
    %v3253 = vpop.permute.xlu0 %3252
    %v3254 = vlaneseq
    %v3255 = vshrl.u32 %v3254, 7
    %v3256 = vsub.s32 3, %v3255
    %v3257 = vrot.slane %v3024, %v3256
    %3259 = vbcast.lane.b32.xlu0 %v3257, 256
    %v3260 = vpop.permute.xlu0 %3259
    %v3261 = vlaneseq
    %v3262 = vshrl.u32 %v3261, 7
    %v3263 = vsub.s32 4, %v3262
    %v3264 = vrot.slane %v3024, %v3263
    %3266 = vbcast.lane.b32.xlu0 %v3264, 256
    %v3267 = vpop.permute.xlu0 %3266
    %v3268 = vlaneseq
    %v3269 = vshrl.u32 %v3268, 7
    %v3270 = vsub.s32 5, %v3269
    %v3271 = vrot.slane %v3024, %v3270
    %3273 = vbcast.lane.b32.xlu0 %v3271, 256
    %v3274 = vpop.permute.xlu0 %3273
    %v3275 = vlaneseq
    %v3276 = vshrl.u32 %v3275, 7
    %v3277 = vsub.s32 6, %v3276
    %v3278 = vrot.slane %v3024, %v3277
    %3280 = vbcast.lane.b32.xlu0 %v3278, 256
    %v3281 = vpop.permute.xlu0 %3280
    %v3282 = vlaneseq
    %v3283 = vshrl.u32 %v3282, 7
    %v3284 = vsub.s32 7, %v3283
    %v3285 = vrot.slane %v3024, %v3284
    %3287 = vbcast.lane.b32.xlu0 %v3285, 256
    %v3288 = vpop.permute.xlu0 %3287
    %v3289 = vmul.f32 %v3183, %v623
    %v3290 = vmul.f32 %v3190, %v628
    %v3291 = vmul.f32 %v3197, %v633
    %v3292 = vmul.f32 %v3204, %v638
    %v3293 = vmul.f32 %v3211, %v643
    %v3294 = vmul.f32 %v3218, %v648
    %v3295 = vmul.f32 %v3225, %v653
    %v3296 = vmul.f32 %v3232, %v658
    %v3297 = vmul.f32 %v3239, %v663
    %v3298 = vmul.f32 %v3246, %v668
    %v3299 = vmul.f32 %v3253, %v673
    %v3300 = vmul.f32 %v3260, %v678
    %v3301 = vmul.f32 %v3267, %v683
    %v3302 = vmul.f32 %v3274, %v688
    %v3303 = vmul.f32 %v3281, %v693
    %v3304 = vmul.f32 %v3288, %v698
    %v3305 = vsel %vm704, %v3289, 0.0
    %v3306 = vrot.slane %v3305, 4
    %v3307 = vadd.f32 %v3305, %v3306
    %v3308 = vrot.slane %v3307, 2
    %v3309 = vadd.f32 %v3307, %v3308
    %v3310 = vrot.slane %v3309, 1
    %v3311 = vadd.f32 %v3309, %v3310
    %v3312 = vsel %vm704, %v3290, 0.0
    %v3313 = vrot.slane %v3312, 4
    %v3314 = vadd.f32 %v3312, %v3313
    %v3315 = vrot.slane %v3314, 2
    %v3316 = vadd.f32 %v3314, %v3315
    %v3317 = vrot.slane %v3316, 1
    %v3318 = vadd.f32 %v3316, %v3317
    %v3319 = vsel %vm704, %v3291, 0.0
    %v3320 = vrot.slane %v3319, 4
    %v3321 = vadd.f32 %v3319, %v3320
    %v3322 = vrot.slane %v3321, 2
    %v3323 = vadd.f32 %v3321, %v3322
    %v3324 = vrot.slane %v3323, 1
    %v3325 = vadd.f32 %v3323, %v3324
    %v3326 = vsel %vm704, %v3292, 0.0
    %v3327 = vrot.slane %v3326, 4
    %v3328 = vadd.f32 %v3326, %v3327
    %v3329 = vrot.slane %v3328, 2
    %v3330 = vadd.f32 %v3328, %v3329
    %v3331 = vrot.slane %v3330, 1
    %v3332 = vadd.f32 %v3330, %v3331
    %v3333 = vsel %vm704, %v3293, 0.0
    %v3334 = vrot.slane %v3333, 4
    %v3335 = vadd.f32 %v3333, %v3334
    %v3336 = vrot.slane %v3335, 2
    %v3337 = vadd.f32 %v3335, %v3336
    %v3338 = vrot.slane %v3337, 1
    %v3339 = vadd.f32 %v3337, %v3338
    %v3340 = vsel %vm704, %v3294, 0.0
    %v3341 = vrot.slane %v3340, 4
    %v3342 = vadd.f32 %v3340, %v3341
    %v3343 = vrot.slane %v3342, 2
    %v3344 = vadd.f32 %v3342, %v3343
    %v3345 = vrot.slane %v3344, 1
    %v3346 = vadd.f32 %v3344, %v3345
    %v3347 = vsel %vm704, %v3295, 0.0
    %v3348 = vrot.slane %v3347, 4
    %v3349 = vadd.f32 %v3347, %v3348
    %v3350 = vrot.slane %v3349, 2
    %v3351 = vadd.f32 %v3349, %v3350
    %v3352 = vrot.slane %v3351, 1
    %v3353 = vadd.f32 %v3351, %v3352
    %v3354 = vsel %vm704, %v3296, 0.0
    %v3355 = vrot.slane %v3354, 4
    %v3356 = vadd.f32 %v3354, %v3355
    %v3357 = vrot.slane %v3356, 2
    %v3358 = vadd.f32 %v3356, %v3357
    %v3359 = vrot.slane %v3358, 1
    %v3360 = vadd.f32 %v3358, %v3359
    %v3361 = vsel %vm704, %v3297, 0.0
    %v3362 = vrot.slane %v3361, 4
    %v3363 = vadd.f32 %v3361, %v3362
    %v3364 = vrot.slane %v3363, 2
    %v3365 = vadd.f32 %v3363, %v3364
    %v3366 = vrot.slane %v3365, 1
    %v3367 = vadd.f32 %v3365, %v3366
    %v3368 = vsel %vm704, %v3298, 0.0
    %v3369 = vrot.slane %v3368, 4
    %v3370 = vadd.f32 %v3368, %v3369
    %v3371 = vrot.slane %v3370, 2
    %v3372 = vadd.f32 %v3370, %v3371
    %v3373 = vrot.slane %v3372, 1
    %v3374 = vadd.f32 %v3372, %v3373
    %v3375 = vsel %vm704, %v3299, 0.0
    %v3376 = vrot.slane %v3375, 4
    %v3377 = vadd.f32 %v3375, %v3376
    %v3378 = vrot.slane %v3377, 2
    %v3379 = vadd.f32 %v3377, %v3378
    %v3380 = vrot.slane %v3379, 1
    %v3381 = vadd.f32 %v3379, %v3380
    %v3382 = vsel %vm704, %v3300, 0.0
    %v3383 = vrot.slane %v3382, 4
    %v3384 = vadd.f32 %v3382, %v3383
    %v3385 = vrot.slane %v3384, 2
    %v3386 = vadd.f32 %v3384, %v3385
    %v3387 = vrot.slane %v3386, 1
    %v3388 = vadd.f32 %v3386, %v3387
    %v3389 = vsel %vm704, %v3301, 0.0
    %v3390 = vrot.slane %v3389, 4
    %v3391 = vadd.f32 %v3389, %v3390
    %v3392 = vrot.slane %v3391, 2
    %v3393 = vadd.f32 %v3391, %v3392
    %v3394 = vrot.slane %v3393, 1
    %v3395 = vadd.f32 %v3393, %v3394
    %v3396 = vsel %vm704, %v3302, 0.0
    %v3397 = vrot.slane %v3396, 4
    %v3398 = vadd.f32 %v3396, %v3397
    %v3399 = vrot.slane %v3398, 2
    %v3400 = vadd.f32 %v3398, %v3399
    %v3401 = vrot.slane %v3400, 1
    %v3402 = vadd.f32 %v3400, %v3401
    %v3403 = vsel %vm704, %v3303, 0.0
    %v3404 = vrot.slane %v3403, 4
    %v3405 = vadd.f32 %v3403, %v3404
    %v3406 = vrot.slane %v3405, 2
    %v3407 = vadd.f32 %v3405, %v3406
    %v3408 = vrot.slane %v3407, 1
    %v3409 = vadd.f32 %v3407, %v3408
    %v3410 = vsel %vm704, %v3304, 0.0
    %v3411 = vrot.slane %v3410, 4
    %v3412 = vadd.f32 %v3410, %v3411
    %v3413 = vrot.slane %v3412, 2
    %v3414 = vadd.f32 %v3412, %v3413
    %v3415 = vrot.slane %v3414, 1
    %v3416 = vadd.f32 %v3414, %v3415
    %v3433 = vsel %vm1182, %v3318, %v3311
    %v3434 = vsel %vm1184, %v3325, %v3433
    %v3435 = vsel %vm1186, %v3332, %v3434
    %v3436 = vsel %vm1188, %v3339, %v3435
    %v3437 = vsel %vm1190, %v3346, %v3436
    %v3438 = vsel %vm1192, %v3353, %v3437
    %v3439 = vsel %vm1194, %v3360, %v3438
    %v3440 = vsel %vm1182, %v3374, %v3367
    %v3441 = vsel %vm1184, %v3381, %v3440
    %v3442 = vsel %vm1186, %v3388, %v3441
    %v3443 = vsel %vm1188, %v3395, %v3442
    %v3444 = vsel %vm1190, %v3402, %v3443
    %v3445 = vsel %vm1192, %v3409, %v3444
    %v3446 = vsel %vm1194, %v3416, %v3445
    %v3449 = vadd.f32 %v3098, %v3439
    %v3450 = vadd.f32 %v3174, %v3446
    %3451 = vrot.lane.b32.xlu0 %v165, 104
    %v3452 = vpop.permute.xlu0 %3451
    %3453 = vrot.lane.b32.xlu0 %v177, 72
    %v3454 = vpop.permute.xlu0 %3453
    %v3455 = vsel %vm704, %v3452, 0
    %v3457 = vsel %vm704, %v3454, 0
    %3459 = vmatprep.subr.mxu0 0.0
    %3460 = vmatpush1.xpose.msra.mxu0 0.0
    %3461 = vmatprep.subr.mxu0 0.0
    %3462 = vmatpush1.xpose.msra.mxu0 0.0
    %3463 = vmatprep.subr.mxu0 0.0
    %3464 = vmatpush1.xpose.msra.mxu0 0.0
    %3465 = vmatprep.subr.mxu0 0.0
    %3466 = vmatpush1.xpose.msra.mxu0 0.0
    %3467 = vmatprep.subr.mxu0 0.0
    %3468 = vmatpush1.xpose.msra.mxu0 0.0
    %3469 = vmatprep.subr.mxu0 0.0
    %3470 = vmatpush1.xpose.msra.mxu0 0.0
    %3471 = vmatprep.subr.mxu0 0.0
    %3472 = vmatpush1.xpose.msra.mxu0 0.0
    %3473 = vmatprep.subr.mxu0 0.0
    %3474 = vmatpush1.xpose.msra.mxu0 0.0
    %3475 = vmatprep.subr.mxu0 0.0
    %3476 = vmatpush1.xpose.msra.mxu0 0.0
    %3477 = vmatprep.subr.mxu0 0.0
    %3478 = vmatpush1.xpose.msra.mxu0 0.0
    %3479 = vmatprep.subr.mxu0 0.0
    %3480 = vmatpush1.xpose.msra.mxu0 0.0
    %3481 = vmatprep.subr.mxu0 0.0
    %3482 = vmatpush1.xpose.msra.mxu0 0.0
    %3483 = vmatprep.subr.mxu0 0.0
    %3484 = vmatpush1.xpose.msra.mxu0 0.0
    %3485 = vmatprep.subr.mxu0 0.0
    %3486 = vmatpush1.xpose.msra.mxu0 0.0
    %3487 = vmatprep.subr.mxu0 0.0
    %3488 = vmatpush1.xpose.msra.mxu0 0.0
    %3489 = vmatprep.subr.mxu0 0.0
    %3490 = vmatpush1.xpose.msra.mxu0 %v3457
    %3491 = vmatprep.subr.mxu0 0.0
    %3492 = vmatpush2.xpose.msra.mxu0 0.0
    %3493 = vmatprep.subr.mxu0 0.0
    %3494 = vmatpush2.xpose.msra.mxu0 0.0
    %3495 = vmatprep.subr.mxu0 0.0
    %3496 = vmatpush2.xpose.msra.mxu0 0.0
    %3497 = vmatprep.subr.mxu0 0.0
    %3498 = vmatpush2.xpose.msra.mxu0 0.0
    %3499 = vmatprep.subr.mxu0 0.0
    %3500 = vmatpush2.xpose.msra.mxu0 0.0
    %3501 = vmatprep.subr.mxu0 0.0
    %3502 = vmatpush2.xpose.msra.mxu0 0.0
    %3503 = vmatprep.subr.mxu0 0.0
    %3504 = vmatpush2.xpose.msra.mxu0 0.0
    %3505 = vmatprep.subr.mxu0 0.0
    %3506 = vmatpush2.xpose.msra.mxu0 0.0
    %3507 = vmatprep.subr.mxu0 0.0
    %3508 = vmatpush2.xpose.msra.mxu0 0.0
    %3509 = vmatprep.subr.mxu0 0.0
    %3510 = vmatpush2.xpose.msra.mxu0 0.0
    %3511 = vmatprep.subr.mxu0 0.0
    %3512 = vmatpush2.xpose.msra.mxu0 0.0
    %3513 = vmatprep.subr.mxu0 0.0
    %3514 = vmatpush2.xpose.msra.mxu0 0.0
    %3515 = vmatprep.subr.mxu0 0.0
    %3516 = vmatpush2.xpose.msra.mxu0 0.0
    %3517 = vmatprep.subr.mxu0 0.0
    %3518 = vmatpush2.xpose.msra.mxu0 0.0
    %3519 = vmatprep.subr.mxu0 0.0
    %3520 = vmatpush2.xpose.msra.mxu0 0.0
    %3521 = vmatprep.subr.mxu0 0.0
    %3522 = vmatpush2.xpose.msra.mxu0 0.0
    %3523 = vmatprep.mubr.f32.mxu0 0.0
    %3524 = vmatmul.mubr.f32.gmra.mxu0 %v3455
    %v3525 = vpop.f32.mrf.mxu0
    %v3526 = vadd.f32 0.0, %v3525
    %v3527 = vpop.f32.mrf.mxu0
    %3528 = vdwg.mxu0
    %3529 = vrot.lane.b32.xlu0 %v166, 104
    %v3530 = vpop.permute.xlu0 %3529
    %3531 = vrot.lane.b32.xlu0 %v178, 72
    %v3532 = vpop.permute.xlu0 %3531
    %v3533 = vsel %vm704, %v3530, 0
    %v3535 = vsel %vm704, %v3532, 0
    %3537 = vmatprep.subr.mxu0 0.0
    %3538 = vmatpush1.xpose.msra.mxu0 0.0
    %3539 = vmatprep.subr.mxu0 0.0
    %3540 = vmatpush1.xpose.msra.mxu0 0.0
    %3541 = vmatprep.subr.mxu0 0.0
    %3542 = vmatpush1.xpose.msra.mxu0 0.0
    %3543 = vmatprep.subr.mxu0 0.0
    %3544 = vmatpush1.xpose.msra.mxu0 0.0
    %3545 = vmatprep.subr.mxu0 0.0
    %3546 = vmatpush1.xpose.msra.mxu0 0.0
    %3547 = vmatprep.subr.mxu0 0.0
    %3548 = vmatpush1.xpose.msra.mxu0 0.0
    %3549 = vmatprep.subr.mxu0 0.0
    %3550 = vmatpush1.xpose.msra.mxu0 0.0
    %3551 = vmatprep.subr.mxu0 0.0
    %3552 = vmatpush1.xpose.msra.mxu0 0.0
    %3553 = vmatprep.subr.mxu0 0.0
    %3554 = vmatpush1.xpose.msra.mxu0 0.0
    %3555 = vmatprep.subr.mxu0 0.0
    %3556 = vmatpush1.xpose.msra.mxu0 0.0
    %3557 = vmatprep.subr.mxu0 0.0
    %3558 = vmatpush1.xpose.msra.mxu0 0.0
    %3559 = vmatprep.subr.mxu0 0.0
    %3560 = vmatpush1.xpose.msra.mxu0 0.0
    %3561 = vmatprep.subr.mxu0 0.0
    %3562 = vmatpush1.xpose.msra.mxu0 0.0
    %3563 = vmatprep.subr.mxu0 0.0
    %3564 = vmatpush1.xpose.msra.mxu0 0.0
    %3565 = vmatprep.subr.mxu0 0.0
    %3566 = vmatpush1.xpose.msra.mxu0 0.0
    %3567 = vmatprep.subr.mxu0 0.0
    %3568 = vmatpush1.xpose.msra.mxu0 %v3535
    %3569 = vmatprep.subr.mxu0 0.0
    %3570 = vmatpush2.xpose.msra.mxu0 0.0
    %3571 = vmatprep.subr.mxu0 0.0
    %3572 = vmatpush2.xpose.msra.mxu0 0.0
    %3573 = vmatprep.subr.mxu0 0.0
    %3574 = vmatpush2.xpose.msra.mxu0 0.0
    %3575 = vmatprep.subr.mxu0 0.0
    %3576 = vmatpush2.xpose.msra.mxu0 0.0
    %3577 = vmatprep.subr.mxu0 0.0
    %3578 = vmatpush2.xpose.msra.mxu0 0.0
    %3579 = vmatprep.subr.mxu0 0.0
    %3580 = vmatpush2.xpose.msra.mxu0 0.0
    %3581 = vmatprep.subr.mxu0 0.0
    %3582 = vmatpush2.xpose.msra.mxu0 0.0
    %3583 = vmatprep.subr.mxu0 0.0
    %3584 = vmatpush2.xpose.msra.mxu0 0.0
    %3585 = vmatprep.subr.mxu0 0.0
    %3586 = vmatpush2.xpose.msra.mxu0 0.0
    %3587 = vmatprep.subr.mxu0 0.0
    %3588 = vmatpush2.xpose.msra.mxu0 0.0
    %3589 = vmatprep.subr.mxu0 0.0
    %3590 = vmatpush2.xpose.msra.mxu0 0.0
    %3591 = vmatprep.subr.mxu0 0.0
    %3592 = vmatpush2.xpose.msra.mxu0 0.0
    %3593 = vmatprep.subr.mxu0 0.0
    %3594 = vmatpush2.xpose.msra.mxu0 0.0
    %3595 = vmatprep.subr.mxu0 0.0
    %3596 = vmatpush2.xpose.msra.mxu0 0.0
    %3597 = vmatprep.subr.mxu0 0.0
    %3598 = vmatpush2.xpose.msra.mxu0 0.0
    %3599 = vmatprep.subr.mxu0 0.0
    %3600 = vmatpush2.xpose.msra.mxu0 0.0
    %3601 = vmatprep.mubr.f32.mxu0 0.0
    %3602 = vmatmul.mubr.f32.gmra.mxu0 %v3533
    %v3603 = vpop.f32.mrf.mxu0
    %v3604 = vadd.f32 0.0, %v3603
    %v3605 = vpop.f32.mrf.mxu0
    %3606 = vdwg.mxu0
    %v3607 = vmul.f32 %v3526, 0.35355338
    %v3608 = vmul.f32 %v3604, 0.35355338
    %3609 = vrot.lane.b32.xlu0 %v475, 24
    %v3610 = vpop.permute.xlu0 %3609
    %3611 = vrot.lane.b32.xlu0 %v480, 24
    %v3612 = vpop.permute.xlu0 %3611
    %3613 = vrot.lane.b32.xlu0 %v485, 24
    %v3614 = vpop.permute.xlu0 %3613
    %3615 = vrot.lane.b32.xlu0 %v490, 24
    %v3616 = vpop.permute.xlu0 %3615
    %3617 = vrot.lane.b32.xlu0 %v495, 24
    %v3618 = vpop.permute.xlu0 %3617
    %3619 = vrot.lane.b32.xlu0 %v500, 24
    %v3620 = vpop.permute.xlu0 %3619
    %3621 = vrot.lane.b32.xlu0 %v505, 24
    %v3622 = vpop.permute.xlu0 %3621
    %3623 = vrot.lane.b32.xlu0 %v510, 24
    %v3624 = vpop.permute.xlu0 %3623
    %3625 = vrot.lane.b32.xlu0 %v515, 24
    %v3626 = vpop.permute.xlu0 %3625
    %3627 = vrot.lane.b32.xlu0 %v520, 24
    %v3628 = vpop.permute.xlu0 %3627
    %3629 = vrot.lane.b32.xlu0 %v525, 24
    %v3630 = vpop.permute.xlu0 %3629
    %3631 = vrot.lane.b32.xlu0 %v530, 24
    %v3632 = vpop.permute.xlu0 %3631
    %3633 = vrot.lane.b32.xlu0 %v535, 24
    %v3634 = vpop.permute.xlu0 %3633
    %3635 = vrot.lane.b32.xlu0 %v540, 24
    %v3636 = vpop.permute.xlu0 %3635
    %3637 = vrot.lane.b32.xlu0 %v545, 24
    %v3638 = vpop.permute.xlu0 %3637
    %3639 = vrot.lane.b32.xlu0 %v550, 24
    %v3640 = vpop.permute.xlu0 %3639
    %v3657 = vmul.f32 %v961, %v3610
    %v3658 = vmul.f32 %v965, %v3612
    %v3659 = vmul.f32 %v969, %v3614
    %v3660 = vmul.f32 %v973, %v3616
    %v3661 = vmul.f32 %v977, %v3618
    %v3662 = vmul.f32 %v981, %v3620
    %v3663 = vmul.f32 %v985, %v3622
    %v3664 = vmul.f32 %v989, %v3624
    %v3665 = vmul.f32 %v993, %v3626
    %v3666 = vmul.f32 %v997, %v3628
    %v3667 = vmul.f32 %v1001, %v3630
    %v3668 = vmul.f32 %v1005, %v3632
    %v3669 = vmul.f32 %v1009, %v3634
    %v3670 = vmul.f32 %v1013, %v3636
    %v3671 = vmul.f32 %v1017, %v3638
    %v3672 = vmul.f32 %v1021, %v3640
    %3689 = vrot.lane.b32.xlu0 %v3657, 104
    %v3690 = vpop.permute.xlu0 %3689
    %3691 = vrot.lane.b32.xlu0 %v3658, 104
    %v3692 = vpop.permute.xlu0 %3691
    %3693 = vrot.lane.b32.xlu0 %v3659, 104
    %v3694 = vpop.permute.xlu0 %3693
    %3695 = vrot.lane.b32.xlu0 %v3660, 104
    %v3696 = vpop.permute.xlu0 %3695
    %3697 = vrot.lane.b32.xlu0 %v3661, 104
    %v3698 = vpop.permute.xlu0 %3697
    %3699 = vrot.lane.b32.xlu0 %v3662, 104
    %v3700 = vpop.permute.xlu0 %3699
    %3701 = vrot.lane.b32.xlu0 %v3663, 104
    %v3702 = vpop.permute.xlu0 %3701
    %3703 = vrot.lane.b32.xlu0 %v3664, 104
    %v3704 = vpop.permute.xlu0 %3703
    %3705 = vrot.lane.b32.xlu0 %v3665, 104
    %v3706 = vpop.permute.xlu0 %3705
    %3707 = vrot.lane.b32.xlu0 %v3666, 104
    %v3708 = vpop.permute.xlu0 %3707
    %3709 = vrot.lane.b32.xlu0 %v3667, 104
    %v3710 = vpop.permute.xlu0 %3709
    %3711 = vrot.lane.b32.xlu0 %v3668, 104
    %v3712 = vpop.permute.xlu0 %3711
    %3713 = vrot.lane.b32.xlu0 %v3669, 104
    %v3714 = vpop.permute.xlu0 %3713
    %3715 = vrot.lane.b32.xlu0 %v3670, 104
    %v3716 = vpop.permute.xlu0 %3715
    %3717 = vrot.lane.b32.xlu0 %v3671, 104
    %v3718 = vpop.permute.xlu0 %3717
    %3719 = vrot.lane.b32.xlu0 %v3672, 104
    %v3720 = vpop.permute.xlu0 %3719
    %v3737 = vsel %vm704, %v3690, 0.0
    %3738 = vadd.xlane.f32.xlu0 %v3737
    %v3739 = vpop.xlane.xlu0 %3738
    %v3740 = vsel %vm704, %v3692, 0.0
    %3741 = vadd.xlane.f32.xlu0 %v3740
    %v3742 = vpop.xlane.xlu0 %3741
    %v3743 = vsel %vm704, %v3694, 0.0
    %3744 = vadd.xlane.f32.xlu0 %v3743
    %v3745 = vpop.xlane.xlu0 %3744
    %v3746 = vsel %vm704, %v3696, 0.0
    %3747 = vadd.xlane.f32.xlu0 %v3746
    %v3748 = vpop.xlane.xlu0 %3747
    %v3749 = vsel %vm704, %v3698, 0.0
    %3750 = vadd.xlane.f32.xlu0 %v3749
    %v3751 = vpop.xlane.xlu0 %3750
    %v3752 = vsel %vm704, %v3700, 0.0
    %3753 = vadd.xlane.f32.xlu0 %v3752
    %v3754 = vpop.xlane.xlu0 %3753
    %v3755 = vsel %vm704, %v3702, 0.0
    %3756 = vadd.xlane.f32.xlu0 %v3755
    %v3757 = vpop.xlane.xlu0 %3756
    %v3758 = vsel %vm704, %v3704, 0.0
    %3759 = vadd.xlane.f32.xlu0 %v3758
    %v3760 = vpop.xlane.xlu0 %3759
    %v3761 = vsel %vm704, %v3706, 0.0
    %3762 = vadd.xlane.f32.xlu0 %v3761
    %v3763 = vpop.xlane.xlu0 %3762
    %v3764 = vsel %vm704, %v3708, 0.0
    %3765 = vadd.xlane.f32.xlu0 %v3764
    %v3766 = vpop.xlane.xlu0 %3765
    %v3767 = vsel %vm704, %v3710, 0.0
    %3768 = vadd.xlane.f32.xlu0 %v3767
    %v3769 = vpop.xlane.xlu0 %3768
    %v3770 = vsel %vm704, %v3712, 0.0
    %3771 = vadd.xlane.f32.xlu0 %v3770
    %v3772 = vpop.xlane.xlu0 %3771
    %v3773 = vsel %vm704, %v3714, 0.0
    %3774 = vadd.xlane.f32.xlu0 %v3773
    %v3775 = vpop.xlane.xlu0 %3774
    %v3776 = vsel %vm704, %v3716, 0.0
    %3777 = vadd.xlane.f32.xlu0 %v3776
    %v3778 = vpop.xlane.xlu0 %3777
    %v3779 = vsel %vm704, %v3718, 0.0
    %3780 = vadd.xlane.f32.xlu0 %v3779
    %v3781 = vpop.xlane.xlu0 %3780
    %v3782 = vsel %vm704, %v3720, 0.0
    %3783 = vadd.xlane.f32.xlu0 %v3782
    %v3784 = vpop.xlane.xlu0 %3783
    %v3801 = vlaneseq
    %v3802 = vshrl.u32 %v3801, 7
    %v3803 = vsub.s32 %v194, %v3802
    %v3804 = vrot.slane %v3739, %v3803
    %v3805 = vlaneseq
    %v3806 = vshrl.u32 %v3805, 7
    %v3807 = vsub.s32 %v194, %v3806
    %v3808 = vrot.slane %v3742, %v3807
    %v3809 = vlaneseq
    %v3810 = vshrl.u32 %v3809, 7
    %v3811 = vsub.s32 %v194, %v3810
    %v3812 = vrot.slane %v3745, %v3811
    %v3813 = vlaneseq
    %v3814 = vshrl.u32 %v3813, 7
    %v3815 = vsub.s32 %v194, %v3814
    %v3816 = vrot.slane %v3748, %v3815
    %v3817 = vlaneseq
    %v3818 = vshrl.u32 %v3817, 7
    %v3819 = vsub.s32 %v194, %v3818
    %v3820 = vrot.slane %v3751, %v3819
    %v3821 = vlaneseq
    %v3822 = vshrl.u32 %v3821, 7
    %v3823 = vsub.s32 %v194, %v3822
    %v3824 = vrot.slane %v3754, %v3823
    %v3825 = vlaneseq
    %v3826 = vshrl.u32 %v3825, 7
    %v3827 = vsub.s32 %v194, %v3826
    %v3828 = vrot.slane %v3757, %v3827
    %v3829 = vlaneseq
    %v3830 = vshrl.u32 %v3829, 7
    %v3831 = vsub.s32 %v194, %v3830
    %v3832 = vrot.slane %v3760, %v3831
    %v3833 = vlaneseq
    %v3834 = vshrl.u32 %v3833, 7
    %v3835 = vsub.s32 %v194, %v3834
    %v3836 = vrot.slane %v3763, %v3835
    %v3837 = vlaneseq
    %v3838 = vshrl.u32 %v3837, 7
    %v3839 = vsub.s32 %v194, %v3838
    %v3840 = vrot.slane %v3766, %v3839
    %v3841 = vlaneseq
    %v3842 = vshrl.u32 %v3841, 7
    %v3843 = vsub.s32 %v194, %v3842
    %v3844 = vrot.slane %v3769, %v3843
    %v3845 = vlaneseq
    %v3846 = vshrl.u32 %v3845, 7
    %v3847 = vsub.s32 %v194, %v3846
    %v3848 = vrot.slane %v3772, %v3847
    %v3849 = vlaneseq
    %v3850 = vshrl.u32 %v3849, 7
    %v3851 = vsub.s32 %v194, %v3850
    %v3852 = vrot.slane %v3775, %v3851
    %v3853 = vlaneseq
    %v3854 = vshrl.u32 %v3853, 7
    %v3855 = vsub.s32 %v194, %v3854
    %v3856 = vrot.slane %v3778, %v3855
    %v3857 = vlaneseq
    %v3858 = vshrl.u32 %v3857, 7
    %v3859 = vsub.s32 %v194, %v3858
    %v3860 = vrot.slane %v3781, %v3859
    %v3861 = vlaneseq
    %v3862 = vshrl.u32 %v3861, 7
    %v3863 = vsub.s32 %v194, %v3862
    %v3864 = vrot.slane %v3784, %v3863
    %v3865 = vsel %vm1182, %v3808, %v3804
    %v3866 = vsel %vm1184, %v3812, %v3865
    %v3867 = vsel %vm1186, %v3816, %v3866
    %v3868 = vsel %vm1188, %v3820, %v3867
    %v3869 = vsel %vm1190, %v3824, %v3868
    %v3870 = vsel %vm1192, %v3828, %v3869
    %v3871 = vsel %vm1194, %v3832, %v3870
    %v3872 = vsel %vm1182, %v3840, %v3836
    %v3873 = vsel %vm1184, %v3844, %v3872
    %v3874 = vsel %vm1186, %v3848, %v3873
    %v3875 = vsel %vm1188, %v3852, %v3874
    %v3876 = vsel %vm1190, %v3856, %v3875
    %v3877 = vsel %vm1192, %v3860, %v3876
    %v3878 = vsel %vm1194, %v3864, %v3877
    %v3881 = vadd.f32 %v3607, %v3871
    %v3882 = vadd.f32 %v3608, %v3878
    %v3883 = vadd.f32 %v3881, %v1212
    %v3884 = vadd.f32 %v3882, %v1216
    %v3885 = vsel %vm704, %v3883, -inf
    %3886 = vmax.xlane.f32.xlu0 %v3885
    %v3887 = vpop.xlane.xlu0 %3886
    %v3888 = vsel %vm704, %v3884, -inf
    %3889 = vmax.xlane.f32.xlu0 %v3888
    %v3890 = vpop.xlane.xlu0 %3889
    %v3891 = vsub.f32 %v3883, %v3887
    %v3892 = vsub.f32 %v3884, %v3890
    %v3893 = vmul.f32 %v3891, 1.442695
    %v3894 = vpow.pop %v3893
    %v3895 = vmul.f32 %v3892, 1.442695
    %v3896 = vpow.pop %v3895
    %v3897 = vsel %vm704, %v3894, 0.0
    %3898 = vadd.xlane.f32.xlu0 %v3897
    %v3899 = vpop.xlane.xlu0 %3898
    %v3900 = vsel %vm704, %v3896, 0.0
    %3901 = vadd.xlane.f32.xlu0 %v3900
    %v3902 = vpop.xlane.xlu0 %3901
    %v3903 = vrcp.pop %v3899
    %v3904 = vmul.f32 %v3894, %v3903
    %v3905 = vrcp.pop %v3902
    %v3906 = vmul.f32 %v3896, %v3905
    %3907 = vrot.lane.b32.xlu0 %v189, 40
    %v3908 = vpop.permute.xlu0 %3907
    %v3911 = vsel %vm704, %v3904, 0
    %3913 = vmatprep.subr.mxu0 0.0
    %3914 = vmatpush1.msra.mxu0 0.0
    %3915 = vmatprep.subr.mxu0 0.0
    %3916 = vmatpush1.msra.mxu0 0.0
    %3917 = vmatprep.subr.mxu0 0.0
    %3918 = vmatpush1.msra.mxu0 0.0
    %3919 = vmatprep.subr.mxu0 0.0
    %3920 = vmatpush1.msra.mxu0 0.0
    %3921 = vmatprep.subr.mxu0 0.0
    %3922 = vmatpush1.msra.mxu0 0.0
    %3923 = vmatprep.subr.mxu0 0.0
    %3924 = vmatpush1.msra.mxu0 0.0
    %3925 = vmatprep.subr.mxu0 0.0
    %3926 = vmatpush1.msra.mxu0 0.0
    %3927 = vmatprep.subr.mxu0 0.0
    %3928 = vmatpush1.msra.mxu0 0.0
    %3929 = vmatprep.subr.mxu0 0.0
    %3930 = vmatpush1.msra.mxu0 0.0
    %3931 = vmatprep.subr.mxu0 0.0
    %3932 = vmatpush1.msra.mxu0 0.0
    %3933 = vmatprep.subr.mxu0 0.0
    %3934 = vmatpush1.msra.mxu0 0.0
    %3935 = vmatprep.subr.mxu0 0.0
    %3936 = vmatpush1.msra.mxu0 0.0
    %3937 = vmatprep.subr.mxu0 0.0
    %3938 = vmatpush1.msra.mxu0 0.0
    %3939 = vmatprep.subr.mxu0 0.0
    %3940 = vmatpush1.msra.mxu0 0.0
    %3941 = vmatprep.subr.mxu0 0.0
    %3942 = vmatpush1.msra.mxu0 0.0
    %3943 = vmatprep.subr.mxu0 0.0
    %3944 = vmatpush1.msra.mxu0 %v3908
    %3945 = vmatprep.subr.mxu0 0.0
    %3946 = vmatpush2.msra.mxu0 0.0
    %3947 = vmatprep.subr.mxu0 0.0
    %3948 = vmatpush2.msra.mxu0 0.0
    %3949 = vmatprep.subr.mxu0 0.0
    %3950 = vmatpush2.msra.mxu0 0.0
    %3951 = vmatprep.subr.mxu0 0.0
    %3952 = vmatpush2.msra.mxu0 0.0
    %3953 = vmatprep.subr.mxu0 0.0
    %3954 = vmatpush2.msra.mxu0 0.0
    %3955 = vmatprep.subr.mxu0 0.0
    %3956 = vmatpush2.msra.mxu0 0.0
    %3957 = vmatprep.subr.mxu0 0.0
    %3958 = vmatpush2.msra.mxu0 0.0
    %3959 = vmatprep.subr.mxu0 0.0
    %3960 = vmatpush2.msra.mxu0 0.0
    %3961 = vmatprep.subr.mxu0 0.0
    %3962 = vmatpush2.msra.mxu0 0.0
    %3963 = vmatprep.subr.mxu0 0.0
    %3964 = vmatpush2.msra.mxu0 0.0
    %3965 = vmatprep.subr.mxu0 0.0
    %3966 = vmatpush2.msra.mxu0 0.0
    %3967 = vmatprep.subr.mxu0 0.0
    %3968 = vmatpush2.msra.mxu0 0.0
    %3969 = vmatprep.subr.mxu0 0.0
    %3970 = vmatpush2.msra.mxu0 0.0
    %3971 = vmatprep.subr.mxu0 0.0
    %3972 = vmatpush2.msra.mxu0 0.0
    %3973 = vmatprep.subr.mxu0 0.0
    %3974 = vmatpush2.msra.mxu0 0.0
    %3975 = vmatprep.subr.mxu0 0.0
    %3976 = vmatpush2.msra.mxu0 0.0
    %3977 = vmatprep.mubr.f32.mxu0 0.0
    %3978 = vmatmul.mubr.f32.gmra.mxu0 %v3911
    %v3979 = vpop.f32.mrf.mxu0
    %v3980 = vadd.f32 0.0, %v3979
    %v3981 = vpop.f32.mrf.mxu0
    %3982 = vdwg.mxu0
    %3983 = vrot.lane.b32.xlu0 %v190, 40
    %v3984 = vpop.permute.xlu0 %3983
    %v3987 = vsel %vm704, %v3906, 0
    %3989 = vmatprep.subr.mxu0 0.0
    %3990 = vmatpush1.msra.mxu0 0.0
    %3991 = vmatprep.subr.mxu0 0.0
    %3992 = vmatpush1.msra.mxu0 0.0
    %3993 = vmatprep.subr.mxu0 0.0
    %3994 = vmatpush1.msra.mxu0 0.0
    %3995 = vmatprep.subr.mxu0 0.0
    %3996 = vmatpush1.msra.mxu0 0.0
    %3997 = vmatprep.subr.mxu0 0.0
    %3998 = vmatpush1.msra.mxu0 0.0
    %3999 = vmatprep.subr.mxu0 0.0
    %4000 = vmatpush1.msra.mxu0 0.0
    %4001 = vmatprep.subr.mxu0 0.0
    %4002 = vmatpush1.msra.mxu0 0.0
    %4003 = vmatprep.subr.mxu0 0.0
    %4004 = vmatpush1.msra.mxu0 0.0
    %4005 = vmatprep.subr.mxu0 0.0
    %4006 = vmatpush1.msra.mxu0 0.0
    %4007 = vmatprep.subr.mxu0 0.0
    %4008 = vmatpush1.msra.mxu0 0.0
    %4009 = vmatprep.subr.mxu0 0.0
    %4010 = vmatpush1.msra.mxu0 0.0
    %4011 = vmatprep.subr.mxu0 0.0
    %4012 = vmatpush1.msra.mxu0 0.0
    %4013 = vmatprep.subr.mxu0 0.0
    %4014 = vmatpush1.msra.mxu0 0.0
    %4015 = vmatprep.subr.mxu0 0.0
    %4016 = vmatpush1.msra.mxu0 0.0
    %4017 = vmatprep.subr.mxu0 0.0
    %4018 = vmatpush1.msra.mxu0 0.0
    %4019 = vmatprep.subr.mxu0 0.0
    %4020 = vmatpush1.msra.mxu0 %v3984
    %4021 = vmatprep.subr.mxu0 0.0
    %4022 = vmatpush2.msra.mxu0 0.0
    %4023 = vmatprep.subr.mxu0 0.0
    %4024 = vmatpush2.msra.mxu0 0.0
    %4025 = vmatprep.subr.mxu0 0.0
    %4026 = vmatpush2.msra.mxu0 0.0
    %4027 = vmatprep.subr.mxu0 0.0
    %4028 = vmatpush2.msra.mxu0 0.0
    %4029 = vmatprep.subr.mxu0 0.0
    %4030 = vmatpush2.msra.mxu0 0.0
    %4031 = vmatprep.subr.mxu0 0.0
    %4032 = vmatpush2.msra.mxu0 0.0
    %4033 = vmatprep.subr.mxu0 0.0
    %4034 = vmatpush2.msra.mxu0 0.0
    %4035 = vmatprep.subr.mxu0 0.0
    %4036 = vmatpush2.msra.mxu0 0.0
    %4037 = vmatprep.subr.mxu0 0.0
    %4038 = vmatpush2.msra.mxu0 0.0
    %4039 = vmatprep.subr.mxu0 0.0
    %4040 = vmatpush2.msra.mxu0 0.0
    %4041 = vmatprep.subr.mxu0 0.0
    %4042 = vmatpush2.msra.mxu0 0.0
    %4043 = vmatprep.subr.mxu0 0.0
    %4044 = vmatpush2.msra.mxu0 0.0
    %4045 = vmatprep.subr.mxu0 0.0
    %4046 = vmatpush2.msra.mxu0 0.0
    %4047 = vmatprep.subr.mxu0 0.0
    %4048 = vmatpush2.msra.mxu0 0.0
    %4049 = vmatprep.subr.mxu0 0.0
    %4050 = vmatpush2.msra.mxu0 0.0
    %4051 = vmatprep.subr.mxu0 0.0
    %4052 = vmatpush2.msra.mxu0 0.0
    %4053 = vmatprep.mubr.f32.mxu0 0.0
    %4054 = vmatmul.mubr.f32.gmra.mxu0 %v3987
    %v4055 = vpop.f32.mrf.mxu0
    %v4056 = vadd.f32 0.0, %v4055
    %v4057 = vpop.f32.mrf.mxu0
    %4058 = vdwg.mxu0
    %v4059 = vlaneseq
    %v4060 = vshrl.u32 %v4059, 7
    %v4061 = vsub.s32 0, %v4060
    %v4062 = vrot.slane %v3904, %v4061
    %4064 = vbcast.lane.b32.xlu0 %v4062, 256
    %v4065 = vpop.permute.xlu0 %4064
    %v4066 = vlaneseq
    %v4067 = vshrl.u32 %v4066, 7
    %v4068 = vsub.s32 1, %v4067
    %v4069 = vrot.slane %v3904, %v4068
    %4071 = vbcast.lane.b32.xlu0 %v4069, 256
    %v4072 = vpop.permute.xlu0 %4071
    %v4073 = vlaneseq
    %v4074 = vshrl.u32 %v4073, 7
    %v4075 = vsub.s32 2, %v4074
    %v4076 = vrot.slane %v3904, %v4075
    %4078 = vbcast.lane.b32.xlu0 %v4076, 256
    %v4079 = vpop.permute.xlu0 %4078
    %v4080 = vlaneseq
    %v4081 = vshrl.u32 %v4080, 7
    %v4082 = vsub.s32 3, %v4081
    %v4083 = vrot.slane %v3904, %v4082
    %4085 = vbcast.lane.b32.xlu0 %v4083, 256
    %v4086 = vpop.permute.xlu0 %4085
    %v4087 = vlaneseq
    %v4088 = vshrl.u32 %v4087, 7
    %v4089 = vsub.s32 4, %v4088
    %v4090 = vrot.slane %v3904, %v4089
    %4092 = vbcast.lane.b32.xlu0 %v4090, 256
    %v4093 = vpop.permute.xlu0 %4092
    %v4094 = vlaneseq
    %v4095 = vshrl.u32 %v4094, 7
    %v4096 = vsub.s32 5, %v4095
    %v4097 = vrot.slane %v3904, %v4096
    %4099 = vbcast.lane.b32.xlu0 %v4097, 256
    %v4100 = vpop.permute.xlu0 %4099
    %v4101 = vlaneseq
    %v4102 = vshrl.u32 %v4101, 7
    %v4103 = vsub.s32 6, %v4102
    %v4104 = vrot.slane %v3904, %v4103
    %4106 = vbcast.lane.b32.xlu0 %v4104, 256
    %v4107 = vpop.permute.xlu0 %4106
    %v4108 = vlaneseq
    %v4109 = vshrl.u32 %v4108, 7
    %v4110 = vsub.s32 7, %v4109
    %v4111 = vrot.slane %v3904, %v4110
    %4113 = vbcast.lane.b32.xlu0 %v4111, 256
    %v4114 = vpop.permute.xlu0 %4113
    %v4115 = vlaneseq
    %v4116 = vshrl.u32 %v4115, 7
    %v4117 = vsub.s32 0, %v4116
    %v4118 = vrot.slane %v3906, %v4117
    %4120 = vbcast.lane.b32.xlu0 %v4118, 256
    %v4121 = vpop.permute.xlu0 %4120
    %v4122 = vlaneseq
    %v4123 = vshrl.u32 %v4122, 7
    %v4124 = vsub.s32 1, %v4123
    %v4125 = vrot.slane %v3906, %v4124
    %4127 = vbcast.lane.b32.xlu0 %v4125, 256
    %v4128 = vpop.permute.xlu0 %4127
    %v4129 = vlaneseq
    %v4130 = vshrl.u32 %v4129, 7
    %v4131 = vsub.s32 2, %v4130
    %v4132 = vrot.slane %v3906, %v4131
    %4134 = vbcast.lane.b32.xlu0 %v4132, 256
    %v4135 = vpop.permute.xlu0 %4134
    %v4136 = vlaneseq
    %v4137 = vshrl.u32 %v4136, 7
    %v4138 = vsub.s32 3, %v4137
    %v4139 = vrot.slane %v3906, %v4138
    %4141 = vbcast.lane.b32.xlu0 %v4139, 256
    %v4142 = vpop.permute.xlu0 %4141
    %v4143 = vlaneseq
    %v4144 = vshrl.u32 %v4143, 7
    %v4145 = vsub.s32 4, %v4144
    %v4146 = vrot.slane %v3906, %v4145
    %4148 = vbcast.lane.b32.xlu0 %v4146, 256
    %v4149 = vpop.permute.xlu0 %4148
    %v4150 = vlaneseq
    %v4151 = vshrl.u32 %v4150, 7
    %v4152 = vsub.s32 5, %v4151
    %v4153 = vrot.slane %v3906, %v4152
    %4155 = vbcast.lane.b32.xlu0 %v4153, 256
    %v4156 = vpop.permute.xlu0 %4155
    %v4157 = vlaneseq
    %v4158 = vshrl.u32 %v4157, 7
    %v4159 = vsub.s32 6, %v4158
    %v4160 = vrot.slane %v3906, %v4159
    %4162 = vbcast.lane.b32.xlu0 %v4160, 256
    %v4163 = vpop.permute.xlu0 %4162
    %v4164 = vlaneseq
    %v4165 = vshrl.u32 %v4164, 7
    %v4166 = vsub.s32 7, %v4165
    %v4167 = vrot.slane %v3906, %v4166
    %4169 = vbcast.lane.b32.xlu0 %v4167, 256
    %v4170 = vpop.permute.xlu0 %4169
    %v4171 = vmul.f32 %v4065, %v623
    %v4172 = vmul.f32 %v4072, %v628
    %v4173 = vmul.f32 %v4079, %v633
    %v4174 = vmul.f32 %v4086, %v638
    %v4175 = vmul.f32 %v4093, %v643
    %v4176 = vmul.f32 %v4100, %v648
    %v4177 = vmul.f32 %v4107, %v653
    %v4178 = vmul.f32 %v4114, %v658
    %v4179 = vmul.f32 %v4121, %v663
    %v4180 = vmul.f32 %v4128, %v668
    %v4181 = vmul.f32 %v4135, %v673
    %v4182 = vmul.f32 %v4142, %v678
    %v4183 = vmul.f32 %v4149, %v683
    %v4184 = vmul.f32 %v4156, %v688
    %v4185 = vmul.f32 %v4163, %v693
    %v4186 = vmul.f32 %v4170, %v698
    %v4187 = vsel %vm704, %v4171, 0.0
    %v4188 = vrot.slane %v4187, 4
    %v4189 = vadd.f32 %v4187, %v4188
    %v4190 = vrot.slane %v4189, 2
    %v4191 = vadd.f32 %v4189, %v4190
    %v4192 = vrot.slane %v4191, 1
    %v4193 = vadd.f32 %v4191, %v4192
    %v4194 = vsel %vm704, %v4172, 0.0
    %v4195 = vrot.slane %v4194, 4
    %v4196 = vadd.f32 %v4194, %v4195
    %v4197 = vrot.slane %v4196, 2
    %v4198 = vadd.f32 %v4196, %v4197
    %v4199 = vrot.slane %v4198, 1
    %v4200 = vadd.f32 %v4198, %v4199
    %v4201 = vsel %vm704, %v4173, 0.0
    %v4202 = vrot.slane %v4201, 4
    %v4203 = vadd.f32 %v4201, %v4202
    %v4204 = vrot.slane %v4203, 2
    %v4205 = vadd.f32 %v4203, %v4204
    %v4206 = vrot.slane %v4205, 1
    %v4207 = vadd.f32 %v4205, %v4206
    %v4208 = vsel %vm704, %v4174, 0.0
    %v4209 = vrot.slane %v4208, 4
    %v4210 = vadd.f32 %v4208, %v4209
    %v4211 = vrot.slane %v4210, 2
    %v4212 = vadd.f32 %v4210, %v4211
    %v4213 = vrot.slane %v4212, 1
    %v4214 = vadd.f32 %v4212, %v4213
    %v4215 = vsel %vm704, %v4175, 0.0
    %v4216 = vrot.slane %v4215, 4
    %v4217 = vadd.f32 %v4215, %v4216
    %v4218 = vrot.slane %v4217, 2
    %v4219 = vadd.f32 %v4217, %v4218
    %v4220 = vrot.slane %v4219, 1
    %v4221 = vadd.f32 %v4219, %v4220
    %v4222 = vsel %vm704, %v4176, 0.0
    %v4223 = vrot.slane %v4222, 4
    %v4224 = vadd.f32 %v4222, %v4223
    %v4225 = vrot.slane %v4224, 2
    %v4226 = vadd.f32 %v4224, %v4225
    %v4227 = vrot.slane %v4226, 1
    %v4228 = vadd.f32 %v4226, %v4227
    %v4229 = vsel %vm704, %v4177, 0.0
    %v4230 = vrot.slane %v4229, 4
    %v4231 = vadd.f32 %v4229, %v4230
    %v4232 = vrot.slane %v4231, 2
    %v4233 = vadd.f32 %v4231, %v4232
    %v4234 = vrot.slane %v4233, 1
    %v4235 = vadd.f32 %v4233, %v4234
    %v4236 = vsel %vm704, %v4178, 0.0
    %v4237 = vrot.slane %v4236, 4
    %v4238 = vadd.f32 %v4236, %v4237
    %v4239 = vrot.slane %v4238, 2
    %v4240 = vadd.f32 %v4238, %v4239
    %v4241 = vrot.slane %v4240, 1
    %v4242 = vadd.f32 %v4240, %v4241
    %v4243 = vsel %vm704, %v4179, 0.0
    %v4244 = vrot.slane %v4243, 4
    %v4245 = vadd.f32 %v4243, %v4244
    %v4246 = vrot.slane %v4245, 2
    %v4247 = vadd.f32 %v4245, %v4246
    %v4248 = vrot.slane %v4247, 1
    %v4249 = vadd.f32 %v4247, %v4248
    %v4250 = vsel %vm704, %v4180, 0.0
    %v4251 = vrot.slane %v4250, 4
    %v4252 = vadd.f32 %v4250, %v4251
    %v4253 = vrot.slane %v4252, 2
    %v4254 = vadd.f32 %v4252, %v4253
    %v4255 = vrot.slane %v4254, 1
    %v4256 = vadd.f32 %v4254, %v4255
    %v4257 = vsel %vm704, %v4181, 0.0
    %v4258 = vrot.slane %v4257, 4
    %v4259 = vadd.f32 %v4257, %v4258
    %v4260 = vrot.slane %v4259, 2
    %v4261 = vadd.f32 %v4259, %v4260
    %v4262 = vrot.slane %v4261, 1
    %v4263 = vadd.f32 %v4261, %v4262
    %v4264 = vsel %vm704, %v4182, 0.0
    %v4265 = vrot.slane %v4264, 4
    %v4266 = vadd.f32 %v4264, %v4265
    %v4267 = vrot.slane %v4266, 2
    %v4268 = vadd.f32 %v4266, %v4267
    %v4269 = vrot.slane %v4268, 1
    %v4270 = vadd.f32 %v4268, %v4269
    %v4271 = vsel %vm704, %v4183, 0.0
    %v4272 = vrot.slane %v4271, 4
    %v4273 = vadd.f32 %v4271, %v4272
    %v4274 = vrot.slane %v4273, 2
    %v4275 = vadd.f32 %v4273, %v4274
    %v4276 = vrot.slane %v4275, 1
    %v4277 = vadd.f32 %v4275, %v4276
    %v4278 = vsel %vm704, %v4184, 0.0
    %v4279 = vrot.slane %v4278, 4
    %v4280 = vadd.f32 %v4278, %v4279
    %v4281 = vrot.slane %v4280, 2
    %v4282 = vadd.f32 %v4280, %v4281
    %v4283 = vrot.slane %v4282, 1
    %v4284 = vadd.f32 %v4282, %v4283
    %v4285 = vsel %vm704, %v4185, 0.0
    %v4286 = vrot.slane %v4285, 4
    %v4287 = vadd.f32 %v4285, %v4286
    %v4288 = vrot.slane %v4287, 2
    %v4289 = vadd.f32 %v4287, %v4288
    %v4290 = vrot.slane %v4289, 1
    %v4291 = vadd.f32 %v4289, %v4290
    %v4292 = vsel %vm704, %v4186, 0.0
    %v4293 = vrot.slane %v4292, 4
    %v4294 = vadd.f32 %v4292, %v4293
    %v4295 = vrot.slane %v4294, 2
    %v4296 = vadd.f32 %v4294, %v4295
    %v4297 = vrot.slane %v4296, 1
    %v4298 = vadd.f32 %v4296, %v4297
    %v4315 = vsel %vm1182, %v4200, %v4193
    %v4316 = vsel %vm1184, %v4207, %v4315
    %v4317 = vsel %vm1186, %v4214, %v4316
    %v4318 = vsel %vm1188, %v4221, %v4317
    %v4319 = vsel %vm1190, %v4228, %v4318
    %v4320 = vsel %vm1192, %v4235, %v4319
    %v4321 = vsel %vm1194, %v4242, %v4320
    %v4322 = vsel %vm1182, %v4256, %v4249
    %v4323 = vsel %vm1184, %v4263, %v4322
    %v4324 = vsel %vm1186, %v4270, %v4323
    %v4325 = vsel %vm1188, %v4277, %v4324
    %v4326 = vsel %vm1190, %v4284, %v4325
    %v4327 = vsel %vm1192, %v4291, %v4326
    %v4328 = vsel %vm1194, %v4298, %v4327
    %v4331 = vadd.f32 %v3980, %v4321
    %v4332 = vadd.f32 %v4056, %v4328
    %4335 = vrot.lane.b32.xlu0 %v2567, 8
    %v4336 = vpop.permute.xlu0 %4335
    %4337 = vrot.lane.b32.xlu0 %v2568, 8
    %v4338 = vpop.permute.xlu0 %4337
    %4343 = vrot.lane.b32.xlu0 %v3449, 16
    %v4344 = vpop.permute.xlu0 %4343
    %4345 = vrot.lane.b32.xlu0 %v3450, 16
    %v4346 = vpop.permute.xlu0 %4345
    %4351 = vrot.lane.b32.xlu0 %v4331, 24
    %v4352 = vpop.permute.xlu0 %4351
    %4353 = vrot.lane.b32.xlu0 %v4332, 24
    %v4354 = vpop.permute.xlu0 %4353
    %v4357 = vsel %vm704, %v1669, %v4336
    %v4358 = vsel %vm704, %v1670, %v4338
    %vm4359 = vcmask 130048
    %v4360 = vsel %vm4359, %v4357, %v4344
    %v4361 = vsel %vm4359, %v4358, %v4346
    %vm4362 = vcmask 195584
    %v4363 = vsel %vm4362, %v4360, %v4352
    %v4364 = vsel %vm4362, %v4361, %v4354
    %s4365 = scalar_lea.vmem [#allocation7], 3
    %v4366 = vld [vmem:[%s4365] sm:$0x1]
    %v4368 = vlaneseq
    %v4369 = vshrl.u32 %v4368, 7
    %v4370 = vsub.s32 0, %v4369
    %v4371 = vrot.slane %v4366, %v4370
    %4377 = vrot.lane.b32.xlu0 %v69, 32
    %v4378 = vpop.permute.xlu0 %4377
    %4379 = vrot.lane.b32.xlu0 %v70, 32
    %v4380 = vpop.permute.xlu0 %4379
    %4381 = vrot.lane.b32.xlu0 %v71, 32
    %v4382 = vpop.permute.xlu0 %4381
    %4383 = vrot.lane.b32.xlu0 %v72, 32
    %v4384 = vpop.permute.xlu0 %4383
    %v4390 = vsel %vm76, %v4363, 0
    %v4393 = vsel %vm76, %v4364, 0
    %4395 = vmatprep.subr.mxu0 0.0
    %4396 = vmatpush1.msra.mxu0 0.0
    %4397 = vmatprep.subr.mxu0 0.0
    %4398 = vmatpush1.msra.mxu0 0.0
    %4399 = vmatprep.subr.mxu0 0.0
    %4400 = vmatpush1.msra.mxu0 0.0
    %4401 = vmatprep.subr.mxu0 0.0
    %4402 = vmatpush1.msra.mxu0 0.0
    %4403 = vmatprep.subr.mxu0 0.0
    %4404 = vmatpush1.msra.mxu0 0.0
    %4405 = vmatprep.subr.mxu0 0.0
    %4406 = vmatpush1.msra.mxu0 0.0
    %4407 = vmatprep.subr.mxu0 0.0
    %4408 = vmatpush1.msra.mxu0 0.0
    %4409 = vmatprep.subr.mxu0 0.0
    %4410 = vmatpush1.msra.mxu0 0.0
    %4411 = vmatprep.subr.mxu0 0.0
    %4412 = vmatpush1.msra.mxu0 0.0
    %4413 = vmatprep.subr.mxu0 0.0
    %4414 = vmatpush1.msra.mxu0 0.0
    %4415 = vmatprep.subr.mxu0 0.0
    %4416 = vmatpush1.msra.mxu0 0.0
    %4417 = vmatprep.subr.mxu0 0.0
    %4418 = vmatpush1.msra.mxu0 0.0
    %4419 = vmatprep.subr.mxu0 0.0
    %4420 = vmatpush1.msra.mxu0 %v4384
    %4421 = vmatprep.subr.mxu0 0.0
    %4422 = vmatpush1.msra.mxu0 %v4382
    %4423 = vmatprep.subr.mxu0 0.0
    %4424 = vmatpush1.msra.mxu0 %v4380
    %4425 = vmatprep.subr.mxu0 0.0
    %4426 = vmatpush1.msra.mxu0 %v4378
    %4427 = vmatprep.subr.mxu0 0.0
    %4428 = vmatpush2.msra.mxu0 0.0
    %4429 = vmatprep.subr.mxu0 0.0
    %4430 = vmatpush2.msra.mxu0 0.0
    %4431 = vmatprep.subr.mxu0 0.0
    %4432 = vmatpush2.msra.mxu0 0.0
    %4433 = vmatprep.subr.mxu0 0.0
    %4434 = vmatpush2.msra.mxu0 0.0
    %4435 = vmatprep.subr.mxu0 0.0
    %4436 = vmatpush2.msra.mxu0 0.0
    %4437 = vmatprep.subr.mxu0 0.0
    %4438 = vmatpush2.msra.mxu0 0.0
    %4439 = vmatprep.subr.mxu0 0.0
    %4440 = vmatpush2.msra.mxu0 0.0
    %4441 = vmatprep.subr.mxu0 0.0
    %4442 = vmatpush2.msra.mxu0 0.0
    %4443 = vmatprep.subr.mxu0 0.0
    %4444 = vmatpush2.msra.mxu0 0.0
    %4445 = vmatprep.subr.mxu0 0.0
    %4446 = vmatpush2.msra.mxu0 0.0
    %4447 = vmatprep.subr.mxu0 0.0
    %4448 = vmatpush2.msra.mxu0 0.0
    %4449 = vmatprep.subr.mxu0 0.0
    %4450 = vmatpush2.msra.mxu0 0.0
    %4451 = vmatprep.subr.mxu0 0.0
    %4452 = vmatpush2.msra.mxu0 0.0
    %4453 = vmatprep.subr.mxu0 0.0
    %4454 = vmatpush2.msra.mxu0 0.0
    %4455 = vmatprep.subr.mxu0 0.0
    %4456 = vmatpush2.msra.mxu0 0.0
    %4457 = vmatprep.subr.mxu0 0.0
    %4458 = vmatpush2.msra.mxu0 0.0
    %4459 = vmatprep.mubr.f32.mxu0 0.0
    %4460 = vmatmul.mubr.f32.gmra.mxu0 %v4390
    %v4461 = vpop.f32.mrf.mxu0
    %v4462 = vadd.f32 %v4371, %v4461
    %v4463 = vpop.f32.mrf.mxu0
    %4464 = vmatprep.mubr.f32.mxu0 0.0
    %4465 = vmatmul.mubr.f32.gmra.mxu0 %v4393
    %v4466 = vpop.f32.mrf.mxu0
    %v4467 = vadd.f32 %v4371, %v4466
    %v4468 = vpop.f32.mrf.mxu0
    %4469 = vdwg.mxu0
    %v4470 = vadd.f32 %v4462, %v65
    %v4471 = vadd.f32 %v4467, %v66
    %v4472 = vsel %vm76, %v4470, 0.0
    %4473 = vadd.xlane.f32.xlu0 %v4472
    %v4474 = vpop.xlane.xlu0 %4473
    %v4475 = vsel %vm76, %v4471, 0.0
    %4476 = vadd.xlane.f32.xlu0 %v4475
    %v4477 = vpop.xlane.xlu0 %4476
    %v4478 = vrcp.pop 32.0
    %v4479 = vmul.f32 %v4474, %v4478
    %v4480 = vmul.f32 %v4477, %v4478
    %v4481 = vsub.f32 %v4470, %v4479
    %v4482 = vsub.f32 %v4471, %v4480
    %v4483 = vmul.f32 %v4481, %v4481
    %v4484 = vmul.f32 %v4482, %v4482
    %v4485 = vsel %vm76, %v4483, 0.0
    %4486 = vadd.xlane.f32.xlu0 %v4485
    %v4487 = vpop.xlane.xlu0 %4486
    %v4488 = vsel %vm76, %v4484, 0.0
    %4489 = vadd.xlane.f32.xlu0 %v4488
    %v4490 = vpop.xlane.xlu0 %4489
    %v4491 = vmul.f32 %v4487, %v4478
    %v4492 = vmul.f32 %v4490, %v4478
    %v4493 = vadd.f32 %v4491, 1e-12
    %v4494 = vadd.f32 %v4492, 1e-12
    %v4495 = vrsqrt.pop %v4493
    %v4496 = vmul.f32 %v4493, %v4495
    %vm4497 = vcmp.eq.f32.partialorder %v4493, inf
    %v4498 = vsel %vm4497, %v4493, %v4496
    %vm4499 = vcmp.eq.f32.partialorder %v4493, 0.0
    %v4500 = vand.u32 %v4493, 2147483648
    %v4501 = vsel %vm4499, %v4500, %v4498
    %v4502 = vrsqrt.pop %v4494
    %v4503 = vmul.f32 %v4494, %v4502
    %vm4504 = vcmp.eq.f32.partialorder %v4494, inf
    %v4505 = vsel %vm4504, %v4494, %v4503
    %vm4506 = vcmp.eq.f32.partialorder %v4494, 0.0
    %v4507 = vand.u32 %v4494, 2147483648
    %v4508 = vsel %vm4506, %v4507, %v4505
    %v4509 = vrcp.pop %v4501
    %v4510 = vmul.f32 %v4481, %v4509
    %v4511 = vrcp.pop %v4508
    %v4512 = vmul.f32 %v4482, %v4511
    %s4513 = scalar_lea.vmem [#allocation7], 4
    %v4514 = vld [vmem:[%s4513] sm:$0x1]
    %v4516 = vlaneseq
    %v4517 = vshrl.u32 %v4516, 7
    %v4518 = vsub.s32 0, %v4517
    %v4519 = vrot.slane %v4514, %v4518
    %v4521 = vmul.f32 %v4510, %v4519
    %v4522 = vmul.f32 %v4512, %v4519
    %s4523 = scalar_lea.vmem [#allocation7], 5
    %v4524 = vld [vmem:[%s4523] sm:$0x1]
    %v4526 = vlaneseq
    %v4527 = vshrl.u32 %v4526, 7
    %v4528 = vsub.s32 0, %v4527
    %v4529 = vrot.slane %v4524, %v4528
    %v4531 = vadd.f32 %v4521, %v4529
    %v4532 = vadd.f32 %v4522, %v4529
    %4533 = vst.msk [vmem:[#allocation8] sm:$0xff] %vm76, %v4531
    %4534 = vst.msk [vmem:[#allocation8 + $0x8] sm:$0xff] %vm76, %v4532
    // Predicated region
    $region38: #{tpu_custom_call.1} parent=1 // pred_check
      _
    $region39: #{tpu_custom_call.1} parent=1 // pred_check_branch
      %4536 = sbr.rel (0) target = $region41
    $region40: #{tpu_custom_call.1} parent=1 // pred_region
      %s4538 = ssub.s32 256, 256
      %4539 = vsyncadd [#allocation4], %s4538
      %s4540 = sshll.u32 [#allocation8], 4
      %s4541 = int_to_ptr.vmem [resolvable:$true] %s4540
      %4546 = dma.vmem_to_hbm [thread:$0]  %s4541, 256, %s6, [#allocation4], 128, 128, 8
    $region41: #{tpu_custom_call.1} parent=1 // pred_fallthru
      _
    // Predicated region
    $region42: #{tpu_custom_call.1} parent=1 // pred_check
      _
    $region43: #{tpu_custom_call.1} parent=1 // pred_check_branch
      %4548 = sbr.rel (0) target = $region45
    $region44: #{tpu_custom_call.1} parent=1 // pred_region
      %4549 = dma.done [#allocation4], 256
    $region45: #{tpu_custom_call.1} parent=1 // pred_fallthru
      _
    %4550 = vsyncpa [#allocation3], 1
    %4551 = vsyncpa [#allocation6], 1
    %4552 = vsyncpa [#allocation4], 1

</llo_original>
